<compile_context>
chip_gen: v7x
topology: tpu7x:2x2x1
jax: 0.10.0
libtpu: 0.0.40
codegen_flags: <defaults>
</compile_context>

<pallas_src>
import functools

import jax
import jax.numpy as jnp
from jax import lax
from jax.experimental import pallas as pl
from jax.experimental.pallas import tpu as pltpu


# ----------------------------------------------------------------------------
# Kernel building blocks (traced inline into the single fused kernel)
# ----------------------------------------------------------------------------
def _conv_block(h, w_ref, s_ref, t_ref, mlo_ref, mhi_ref, y_scr):
    """Conv1d(k=3, pad=1) + folded BN(eval) + ReLU + MaxPool1d(2).

    h       : (B*L, Cin)  value, rows ordered b*L + l, channels on lanes
    w_ref   : (3, Cin, Cout) ref, tap-major conv weight (k, ci, co)
    s_ref   : (1, Cout)   folded BN scale
    t_ref   : (1, Cout)   folded BN shift (conv bias folded in)
    mlo_ref : (B*L, 1)    0. where l == 0 else 1.   (masks the k=0 tap)
    mhi_ref : (B*L, 1)    0. where l == L-1 else 1. (masks the k=2 tap)
    y_scr   : (B*L, Cout) VMEM scratch for the pre-pool activation
    returns : (B*L//2, Cout) pooled activation (value)
    """
    R, Cin = h.shape
    # Shifted copies via XLU sublane rotation; masks zero the taps that would
    # otherwise read across a sample boundary (== the conv's zero padding).
    hm1 = pltpu.roll(h, shift=1, axis=0) * mlo_ref[...]       # h[r-1]
    hp1 = pltpu.roll(h, shift=R - 1, axis=0) * mhi_ref[...]   # h[r+1]

    if Cin == 1:
        # Degenerate K=1 contraction: do it on the VPU with broadcasts instead
        # of wasting MXU pushes on (R,1)@(1,Cout) matmuls.
        y = hm1 * w_ref[0] + h * w_ref[1] + hp1 * w_ref[2]
    else:
        y = jnp.dot(hm1, w_ref[0], preferred_element_type=jnp.float32)
        y = y + jnp.dot(h, w_ref[1], preferred_element_type=jnp.float32)
        y = y + jnp.dot(hp1, w_ref[2], preferred_element_type=jnp.float32)

    # Folded BatchNorm (eval) + ReLU.
    y = jnp.maximum(y * s_ref[...] + t_ref[...], 0.0)

    # MaxPool1d(2): stage in VMEM scratch, read even/odd rows with stride-2
    # slices (pairs never cross a batch boundary because L is even).
    y_scr[...] = y
    half = R // 2
    even = y_scr[pl.ds(0, half, 2), :]
    odd = y_scr[pl.ds(1, half, 2), :]
    return jnp.maximum(even, odd)


def _fc_head(h, w1_ref, s_ref, t_ref, w2_ref, b2_ref, out_ref, p_scr):
    """Linear(F,64) + BN(64,eval) + ReLU + Dropout(id) + Linear(64,1).

    h      : (B*L3, C3) final pooled activation (rows b*L3 + l, channels on lanes)
    w1_ref : (L3, C3, H) FC1 weight pre-permuted so w1_ref[l, c, j] == W1[j, c*L3+l]
    w2_ref : (1, H)      FC2 weight row
    out_ref: (B, 1)
    p_scr  : (B*L3, C3) VMEM scratch (for strided per-position reads)
    """
    L3, C3, H = w1_ref.shape
    B = out_ref.shape[0]

    p_scr[...] = h
    # out[b, j] = sum_{l, c} h[b*L3 + l, c] * W1[j, c*L3 + l]
    # Decompose over l: each term is a (B, C3) @ (C3, H) matmul, where the (B, C3)
    # slab is a stride-L3 read of rows {b*L3 + l}.  Matches torch's flatten(1).
    acc = jnp.dot(p_scr[pl.ds(0, B, L3), :], w1_ref[0],
                  preferred_element_type=jnp.float32)
    for l in range(1, L3):
        acc = acc + jnp.dot(p_scr[pl.ds(l, B, L3), :], w1_ref[l],
                            preferred_element_type=jnp.float32)

    # Folded BN(eval) + ReLU; Dropout is identity in eval mode.
    z = jnp.maximum(acc * s_ref[...] + t_ref[...], 0.0)

    # 64 -> 1 projection as VPU multiply + lane reduction (no 1-lane MXU matmul).
    out = jnp.sum(z * w2_ref[...], axis=1, keepdims=True) + b2_ref[...]
    out_ref[...] = out.astype(out_ref.dtype)


def _fused_kernel(n_blocks, *refs):
    """Whole BaselineCNN forward, one invocation, activations resident in VMEM."""
    n_in = 1 + 5 * n_blocks + 5
    in_refs, out_ref, scr = refs[:n_in], refs[n_in], refs[n_in + 1:]

    h = in_refs[0][...]                     # (B*L0, 1)
    a = 1
    for i in range(n_blocks):
        w_ref, s_ref, t_ref, mlo_ref, mhi_ref = in_refs[a:a + 5]
        a += 5
        h = _conv_block(h, w_ref, s_ref, t_ref, mlo_ref, mhi_ref, scr[i])
    _fc_head(h, *in_refs[a:a + 5], out_ref, scr[n_blocks])


# ----------------------------------------------------------------------------
# Wrapper: parameter folding / weight permutation / edge masks, single pallas_call
# ----------------------------------------------------------------------------
def baseline_cnn_forward(x, params, eps=1e-5):
    """x: (B, input_size) float32 -> (B,) float32 (BaselineCNN.forward, eval mode)."""
    B, L0 = x.shape
    blocks = params["blocks"]
    f32 = jnp.float32

    args = [x.reshape(B * L0, 1).astype(f32)]
    scratch = []

    L = L0
    out_ch = 1
    for blk in blocks:
        w = blk["w"]                                  # (Cout, Cin, K=3), torch layout
        out_ch = w.shape[0]
        assert L % 2 == 0, "sequence length must stay even through each MaxPool1d(2)"
        R = B * L
        s = blk["gamma"] / jnp.sqrt(blk["var"] + eps)
        t = (blk["b"] - blk["mean"]) * s + blk["beta"]      # conv bias folded into BN shift
        r = jnp.arange(R) % L
        mlo = (r != 0).astype(f32).reshape(R, 1)            # l > 0
        mhi = (r != L - 1).astype(f32).reshape(R, 1)        # l < L-1
        args += [
            jnp.transpose(w, (2, 1, 0)).astype(f32),        # (K, Cin, Cout)
            s.reshape(1, out_ch).astype(f32),
            t.reshape(1, out_ch).astype(f32),
            mlo, mhi,
        ]
        scratch.append(pltpu.VMEM((R, out_ch), f32))        # pre-pool activation
        L //= 2

    fc = params["fc"]
    C3, L3 = out_ch, L
    H = fc["w1"].shape[0]
    s = fc["gamma"] / jnp.sqrt(fc["var"] + eps)
    t = (fc["b1"] - fc["mean"]) * s + fc["beta"]
    # Permute FC1 so row (l, c) of the permuted weight equals torch column c*L3 + l:
    # this makes the in-kernel contraction match torch's x.flatten(1) on (B, C, L').
    w1p = jnp.transpose(fc["w1"].reshape(H, C3, L3), (2, 1, 0)).astype(f32)   # (L3,C3,H)
    args += [
        w1p,
        s.reshape(1, H).astype(f32),
        t.reshape(1, H).astype(f32),
        fc["w2"].reshape(1, H).astype(f32),
        fc["b2"].reshape(1, 1).astype(f32),
    ]
    scratch.append(pltpu.VMEM((B * L3, C3), f32))           # final pooled activation

    out = pl.pallas_call(
        functools.partial(_fused_kernel, len(blocks)),
        out_shape=jax.ShapeDtypeStruct((B, 1), f32),
        scratch_shapes=scratch,
        # No grid: the whole (tiny) batch is one invocation — nothing to shard
        # across v7x's two TensorCores at this size.
    )(*args)
    return out[:, 0]


# ----------------------------------------------------------------------------
# Deterministic parameter initialization (same shapes as the PyTorch module)
# ----------------------------------------------------------------------------
def init_params(key, input_size, hidden_channels=(32, 64, 128), kernel_size=3):
    params = {"blocks": []}
    in_ch, L = 1, input_size
    for out_ch in hidden_channels:
        key, k1, k2, k3, k4, k5, k6 = jax.random.split(key, 7)
        fan_in = in_ch * kernel_size
        params["blocks"].append(dict(
            w=jax.random.normal(k1, (out_ch, in_ch, kernel_size), jnp.float32) / jnp.sqrt(fan_in),
            b=0.1 * jax.random.normal(k2, (out_ch,), jnp.float32),
            gamma=1.0 + 0.1 * jax.random.normal(k3, (out_ch,), jnp.float32),
            beta=0.1 * jax.random.normal(k4, (out_ch,), jnp.float32),
            mean=0.05 * jax.random.normal(k5, (out_ch,), jnp.float32),
            var=1.0 + 0.1 * jax.nn.softplus(jax.random.normal(k6, (out_ch,), jnp.float32)),
        ))
        in_ch = out_ch
        L //= 2
    F = in_ch * L
    key, k1, k2, k3, k4, k5, k6, k7, k8 = jax.random.split(key, 9)
    params["fc"] = dict(
        w1=jax.random.normal(k1, (64, F), jnp.float32) / jnp.sqrt(F),
        b1=0.1 * jax.random.normal(k2, (64,), jnp.float32),
        gamma=1.0 + 0.1 * jax.random.normal(k3, (64,), jnp.float32),
        beta=0.1 * jax.random.normal(k4, (64,), jnp.float32),
        mean=0.05 * jax.random.normal(k5, (64,), jnp.float32),
        var=1.0 + 0.1 * jax.nn.softplus(jax.random.normal(k6, (64,), jnp.float32)),
        w2=jax.random.normal(k7, (1, 64), jnp.float32) / 8.0,
        b2=0.1 * jax.random.normal(k8, (1,), jnp.float32),
    )
    return params


# ----------------------------------------------------------------------------
# Pure-JAX reference (same eval-mode math) for correctness checking
# ----------------------------------------------------------------------------
def reference_forward(x, params, eps=1e-5):
    h = x[:, None, :]  # (B, 1, L), NCL like torch
    for blk in params["blocks"]:
        w = blk["w"]
        K = w.shape[2]
        y = lax.conv_general_dilated(
            h, w, window_strides=(1,), padding=[(K // 2, K // 2)],
            dimension_numbers=("NCW", "OIW", "NCW"))
        y = y + blk["b"][None, :, None]
        scale = blk["gamma"] / jnp.sqrt(blk["var"] + eps)
        shift = blk["beta"] - blk["mean"] * scale
        y = jnp.maximum(y * scale[None, :, None] + shift[None, :, None], 0.0)
        B, C, L = y.shape
        h = y.reshape(B, C, L // 2, 2).max(axis=3)
    f = h.reshape(h.shape[0], -1)
    fc = params["fc"]
    z = f @ fc["w1"].T + fc["b1"]
    scale = fc["gamma"] / jnp.sqrt(fc["var"] + eps)
    shift = fc["beta"] - fc["mean"] * scale
    z = jnp.maximum(z * scale + shift, 0.0)
    z = z @ fc["w2"].T + fc["b2"]
    return z[:, 0]


if __name__ == "__main__":
    batch, input_size = 4, 64  # 64 -> 32 -> 16 -> 8 after the three pools

    x = jax.random.normal(jax.random.PRNGKey(0), (batch, input_size), dtype=jnp.float32)
    params = init_params(jax.random.PRNGKey(42), input_size)

    fwd = jax.jit(baseline_cnn_forward)
    out = jax.block_until_ready(fwd(x, params))
    assert out.shape == (batch,), out.shape

    ref = reference_forward(x, params)
    if not bool(jnp.allclose(out, ref, rtol=1e-3, atol=1e-3)):
        raise AssertionError(f"Pallas output mismatch:\n{out}\nvs\n{ref}")

    print("KERNEL_OK")
</pallas_src>

<mosaic_0001>
module attributes {stable_mosaic.version = 11 : i64} {
  func.func @_fused_kernel(%arg0: memref<256x1xf32, #tpu.memory_space<vmem>>, %arg1: memref<3x1x32xf32, #tpu.memory_space<vmem>>, %arg2: memref<1x32xf32, #tpu.memory_space<vmem>>, %arg3: memref<1x32xf32, #tpu.memory_space<vmem>>, %arg4: memref<256x1xf32, #tpu.memory_space<vmem>>, %arg5: memref<256x1xf32, #tpu.memory_space<vmem>>, %arg6: memref<3x32x64xf32, #tpu.memory_space<vmem>>, %arg7: memref<1x64xf32, #tpu.memory_space<vmem>>, %arg8: memref<1x64xf32, #tpu.memory_space<vmem>>, %arg9: memref<128x1xf32, #tpu.memory_space<vmem>>, %arg10: memref<128x1xf32, #tpu.memory_space<vmem>>, %arg11: memref<3x64x128xf32, #tpu.memory_space<vmem>>, %arg12: memref<1x128xf32, #tpu.memory_space<vmem>>, %arg13: memref<1x128xf32, #tpu.memory_space<vmem>>, %arg14: memref<64x1xf32, #tpu.memory_space<vmem>>, %arg15: memref<64x1xf32, #tpu.memory_space<vmem>>, %arg16: memref<8x128x64xf32, #tpu.memory_space<vmem>>, %arg17: memref<1x64xf32, #tpu.memory_space<vmem>>, %arg18: memref<1x64xf32, #tpu.memory_space<vmem>>, %arg19: memref<1x64xf32, #tpu.memory_space<vmem>>, %arg20: memref<1x1xf32, #tpu.memory_space<vmem>>, %arg21: memref<4x1xf32, #tpu.memory_space<vmem>>, %arg22: memref<256x32xf32, #tpu.memory_space<vmem>>, %arg23: memref<128x64xf32, #tpu.memory_space<vmem>>, %arg24: memref<64x128xf32, #tpu.memory_space<vmem>>, %arg25: memref<32x128xf32, #tpu.memory_space<vmem>>) attributes {dimension_semantics = [], scalar_prefetch = 0 : i64, scratch_operands = 4 : i64, tpu.core_type = #tpu.core_type<tc>} {
    %c0 = arith.constant 0 : index
    %c0_0 = arith.constant 0 : index
    %0 = vector.load %arg0[%c0, %c0_0] : memref<256x1xf32, #tpu.memory_space<vmem>>, vector<256x1xf32>
    %c1_i32 = arith.constant 1 : i32
    %1 = tpu.dynamic_rotate %0 by %c1_i32 dim 0 : vector<256x1xf32>, i32 -> vector<256x1xf32>
    %c0_1 = arith.constant 0 : index
    %c0_2 = arith.constant 0 : index
    %2 = vector.load %arg4[%c0_1, %c0_2] : memref<256x1xf32, #tpu.memory_space<vmem>>, vector<256x1xf32>
    %3 = arith.mulf %1, %2 : vector<256x1xf32>
    %c255_i32 = arith.constant 255 : i32
    %4 = tpu.dynamic_rotate %0 by %c255_i32 dim 0 : vector<256x1xf32>, i32 -> vector<256x1xf32>
    %c0_3 = arith.constant 0 : index
    %c0_4 = arith.constant 0 : index
    %5 = vector.load %arg5[%c0_3, %c0_4] : memref<256x1xf32, #tpu.memory_space<vmem>>, vector<256x1xf32>
    %6 = arith.mulf %4, %5 : vector<256x1xf32>
    %c0_5 = arith.constant 0 : index
    %c0_6 = arith.constant 0 : index
    %c0_7 = arith.constant 0 : index
    %7 = vector.load %arg1[%c0_5, %c0_6, %c0_7] : memref<3x1x32xf32, #tpu.memory_space<vmem>>, vector<1x1x32xf32>
    %8 = vector.shape_cast %7 : vector<1x1x32xf32> to vector<1x32xf32>
    %9 = vector.broadcast %3 : vector<256x1xf32> to vector<256x32xf32>
    %10 = vector.broadcast %8 : vector<1x32xf32> to vector<256x32xf32>
    %11 = arith.mulf %9, %10 : vector<256x32xf32>
    %c1 = arith.constant 1 : index
    %c0_8 = arith.constant 0 : index
    %c0_9 = arith.constant 0 : index
    %12 = vector.load %arg1[%c1, %c0_8, %c0_9] : memref<3x1x32xf32, #tpu.memory_space<vmem>>, vector<1x1x32xf32>
    %13 = vector.shape_cast %12 : vector<1x1x32xf32> to vector<1x32xf32>
    %14 = vector.broadcast %0 : vector<256x1xf32> to vector<256x32xf32>
    %15 = vector.broadcast %13 : vector<1x32xf32> to vector<256x32xf32>
    %16 = arith.mulf %14, %15 : vector<256x32xf32>
    %17 = arith.addf %11, %16 : vector<256x32xf32>
    %c2 = arith.constant 2 : index
    %c0_10 = arith.constant 0 : index
    %c0_11 = arith.constant 0 : index
    %18 = vector.load %arg1[%c2, %c0_10, %c0_11] : memref<3x1x32xf32, #tpu.memory_space<vmem>>, vector<1x1x32xf32>
    %19 = vector.shape_cast %18 : vector<1x1x32xf32> to vector<1x32xf32>
    %20 = vector.broadcast %6 : vector<256x1xf32> to vector<256x32xf32>
    %21 = vector.broadcast %19 : vector<1x32xf32> to vector<256x32xf32>
    %22 = arith.mulf %20, %21 : vector<256x32xf32>
    %23 = arith.addf %17, %22 : vector<256x32xf32>
    %c0_12 = arith.constant 0 : index
    %c0_13 = arith.constant 0 : index
    %24 = vector.load %arg2[%c0_12, %c0_13] : memref<1x32xf32, #tpu.memory_space<vmem>>, vector<1x32xf32>
    %25 = vector.broadcast %24 : vector<1x32xf32> to vector<256x32xf32>
    %26 = arith.mulf %23, %25 : vector<256x32xf32>
    %c0_14 = arith.constant 0 : index
    %c0_15 = arith.constant 0 : index
    %27 = vector.load %arg3[%c0_14, %c0_15] : memref<1x32xf32, #tpu.memory_space<vmem>>, vector<1x32xf32>
    %28 = vector.broadcast %27 : vector<1x32xf32> to vector<256x32xf32>
    %29 = arith.addf %26, %28 : vector<256x32xf32>
    %cst = arith.constant 0.000000e+00 : f32
    %30 = vector.broadcast %cst : f32 to vector<256x32xf32>
    %31 = arith.maximumf %29, %30 : vector<256x32xf32>
    %c0_16 = arith.constant 0 : index
    %c0_17 = arith.constant 0 : index
    %32 = vector.load %arg22[%c0_16, %c0_17] : memref<256x32xf32, #tpu.memory_space<vmem>>, vector<256x32xf32>
    tpu.vector_store %arg22[%c0_16, %c0_17], %31 {strides = array<i32>} : memref<256x32xf32, #tpu.memory_space<vmem>>, vector<256x32xf32>,
    %c0_18 = arith.constant 0 : index
    %c0_19 = arith.constant 0 : index
    %33 = tpu.strided_load %arg22[%c0_18, %c0_19] {strides = array<i32: 2, 1>} : memref<256x32xf32, #tpu.memory_space<vmem>>, vector<128x32xf32>
    %c1_20 = arith.constant 1 : index
    %c0_21 = arith.constant 0 : index
    %34 = tpu.strided_load %arg22[%c1_20, %c0_21] {strides = array<i32: 2, 1>} : memref<256x32xf32, #tpu.memory_space<vmem>>, vector<128x32xf32>
    %35 = arith.maximumf %33, %34 : vector<128x32xf32>
    %c1_i32_22 = arith.constant 1 : i32
    %36 = tpu.dynamic_rotate %35 by %c1_i32_22 dim 0 : vector<128x32xf32>, i32 -> vector<128x32xf32>
    %c0_23 = arith.constant 0 : index
    %c0_24 = arith.constant 0 : index
    %37 = vector.load %arg9[%c0_23, %c0_24] : memref<128x1xf32, #tpu.memory_space<vmem>>, vector<128x1xf32>
    %38 = vector.broadcast %37 : vector<128x1xf32> to vector<128x32xf32>
    %39 = arith.mulf %36, %38 : vector<128x32xf32>
    %c127_i32 = arith.constant 127 : i32
    %40 = tpu.dynamic_rotate %35 by %c127_i32 dim 0 : vector<128x32xf32>, i32 -> vector<128x32xf32>
    %c0_25 = arith.constant 0 : index
    %c0_26 = arith.constant 0 : index
    %41 = vector.load %arg10[%c0_25, %c0_26] : memref<128x1xf32, #tpu.memory_space<vmem>>, vector<128x1xf32>
    %42 = vector.broadcast %41 : vector<128x1xf32> to vector<128x32xf32>
    %43 = arith.mulf %40, %42 : vector<128x32xf32>
    %c0_27 = arith.constant 0 : index
    %c0_28 = arith.constant 0 : index
    %c0_29 = arith.constant 0 : index
    %44 = vector.load %arg6[%c0_27, %c0_28, %c0_29] : memref<3x32x64xf32, #tpu.memory_space<vmem>>, vector<1x32x64xf32>
    %45 = vector.shape_cast %44 : vector<1x32x64xf32> to vector<32x64xf32>
    %cst_30 = arith.constant dense<0.000000e+00> : vector<128x64xf32>
    %46 = tpu.matmul %39, %45, %cst_30 {dimension_numbers = #tpu.dot_dimension_numbers<[1], [0], [0], [1], [0, 0, 1, 1], [], []>} : vector<128x32xf32>, vector<32x64xf32>, vector<128x64xf32> -> vector<128x64xf32>
    %c1_31 = arith.constant 1 : index
    %c0_32 = arith.constant 0 : index
    %c0_33 = arith.constant 0 : index
    %47 = vector.load %arg6[%c1_31, %c0_32, %c0_33] : memref<3x32x64xf32, #tpu.memory_space<vmem>>, vector<1x32x64xf32>
    %48 = vector.shape_cast %47 : vector<1x32x64xf32> to vector<32x64xf32>
    %cst_34 = arith.constant dense<0.000000e+00> : vector<128x64xf32>
    %49 = tpu.matmul %35, %48, %cst_34 {dimension_numbers = #tpu.dot_dimension_numbers<[1], [0], [0], [1], [0, 0, 1, 1], [], []>} : vector<128x32xf32>, vector<32x64xf32>, vector<128x64xf32> -> vector<128x64xf32>
    %50 = arith.addf %46, %49 : vector<128x64xf32>
    %c2_35 = arith.constant 2 : index
    %c0_36 = arith.constant 0 : index
    %c0_37 = arith.constant 0 : index
    %51 = vector.load %arg6[%c2_35, %c0_36, %c0_37] : memref<3x32x64xf32, #tpu.memory_space<vmem>>, vector<1x32x64xf32>
    %52 = vector.shape_cast %51 : vector<1x32x64xf32> to vector<32x64xf32>
    %cst_38 = arith.constant dense<0.000000e+00> : vector<128x64xf32>
    %53 = tpu.matmul %43, %52, %cst_38 {dimension_numbers = #tpu.dot_dimension_numbers<[1], [0], [0], [1], [0, 0, 1, 1], [], []>} : vector<128x32xf32>, vector<32x64xf32>, vector<128x64xf32> -> vector<128x64xf32>
    %54 = arith.addf %50, %53 : vector<128x64xf32>
    %c0_39 = arith.constant 0 : index
    %c0_40 = arith.constant 0 : index
    %55 = vector.load %arg7[%c0_39, %c0_40] : memref<1x64xf32, #tpu.memory_space<vmem>>, vector<1x64xf32>
    %56 = vector.broadcast %55 : vector<1x64xf32> to vector<128x64xf32>
    %57 = arith.mulf %54, %56 : vector<128x64xf32>
    %c0_41 = arith.constant 0 : index
    %c0_42 = arith.constant 0 : index
    %58 = vector.load %arg8[%c0_41, %c0_42] : memref<1x64xf32, #tpu.memory_space<vmem>>, vector<1x64xf32>
    %59 = vector.broadcast %58 : vector<1x64xf32> to vector<128x64xf32>
    %60 = arith.addf %57, %59 : vector<128x64xf32>
    %cst_43 = arith.constant 0.000000e+00 : f32
    %61 = vector.broadcast %cst_43 : f32 to vector<128x64xf32>
    %62 = arith.maximumf %60, %61 : vector<128x64xf32>
    %c0_44 = arith.constant 0 : index
    %c0_45 = arith.constant 0 : index
    %63 = vector.load %arg23[%c0_44, %c0_45] : memref<128x64xf32, #tpu.memory_space<vmem>>, vector<128x64xf32>
    tpu.vector_store %arg23[%c0_44, %c0_45], %62 {strides = array<i32>} : memref<128x64xf32, #tpu.memory_space<vmem>>, vector<128x64xf32>,
    %c0_46 = arith.constant 0 : index
    %c0_47 = arith.constant 0 : index
    %64 = tpu.strided_load %arg23[%c0_46, %c0_47] {strides = array<i32: 2, 1>} : memref<128x64xf32, #tpu.memory_space<vmem>>, vector<64x64xf32>
    %c1_48 = arith.constant 1 : index
    %c0_49 = arith.constant 0 : index
    %65 = tpu.strided_load %arg23[%c1_48, %c0_49] {strides = array<i32: 2, 1>} : memref<128x64xf32, #tpu.memory_space<vmem>>, vector<64x64xf32>
    %66 = arith.maximumf %64, %65 : vector<64x64xf32>
    %c1_i32_50 = arith.constant 1 : i32
    %67 = tpu.dynamic_rotate %66 by %c1_i32_50 dim 0 : vector<64x64xf32>, i32 -> vector<64x64xf32>
    %c0_51 = arith.constant 0 : index
    %c0_52 = arith.constant 0 : index
    %68 = vector.load %arg14[%c0_51, %c0_52] : memref<64x1xf32, #tpu.memory_space<vmem>>, vector<64x1xf32>
    %69 = vector.broadcast %68 : vector<64x1xf32> to vector<64x64xf32>
    %70 = arith.mulf %67, %69 : vector<64x64xf32>
    %c63_i32 = arith.constant 63 : i32
    %71 = tpu.dynamic_rotate %66 by %c63_i32 dim 0 : vector<64x64xf32>, i32 -> vector<64x64xf32>
    %c0_53 = arith.constant 0 : index
    %c0_54 = arith.constant 0 : index
    %72 = vector.load %arg15[%c0_53, %c0_54] : memref<64x1xf32, #tpu.memory_space<vmem>>, vector<64x1xf32>
    %73 = vector.broadcast %72 : vector<64x1xf32> to vector<64x64xf32>
    %74 = arith.mulf %71, %73 : vector<64x64xf32>
    %c0_55 = arith.constant 0 : index
    %c0_56 = arith.constant 0 : index
    %c0_57 = arith.constant 0 : index
    %75 = vector.load %arg11[%c0_55, %c0_56, %c0_57] : memref<3x64x128xf32, #tpu.memory_space<vmem>>, vector<1x64x128xf32>
    %76 = vector.shape_cast %75 : vector<1x64x128xf32> to vector<64x128xf32>
    %cst_58 = arith.constant dense<0.000000e+00> : vector<64x128xf32>
    %77 = tpu.matmul %70, %76, %cst_58 {dimension_numbers = #tpu.dot_dimension_numbers<[1], [0], [0], [1], [0, 0, 1, 1], [], []>} : vector<64x64xf32>, vector<64x128xf32>, vector<64x128xf32> -> vector<64x128xf32>
    %c1_59 = arith.constant 1 : index
    %c0_60 = arith.constant 0 : index
    %c0_61 = arith.constant 0 : index
    %78 = vector.load %arg11[%c1_59, %c0_60, %c0_61] : memref<3x64x128xf32, #tpu.memory_space<vmem>>, vector<1x64x128xf32>
    %79 = vector.shape_cast %78 : vector<1x64x128xf32> to vector<64x128xf32>
    %cst_62 = arith.constant dense<0.000000e+00> : vector<64x128xf32>
    %80 = tpu.matmul %66, %79, %cst_62 {dimension_numbers = #tpu.dot_dimension_numbers<[1], [0], [0], [1], [0, 0, 1, 1], [], []>} : vector<64x64xf32>, vector<64x128xf32>, vector<64x128xf32> -> vector<64x128xf32>
    %81 = arith.addf %77, %80 : vector<64x128xf32>
    %c2_63 = arith.constant 2 : index
    %c0_64 = arith.constant 0 : index
    %c0_65 = arith.constant 0 : index
    %82 = vector.load %arg11[%c2_63, %c0_64, %c0_65] : memref<3x64x128xf32, #tpu.memory_space<vmem>>, vector<1x64x128xf32>
    %83 = vector.shape_cast %82 : vector<1x64x128xf32> to vector<64x128xf32>
    %cst_66 = arith.constant dense<0.000000e+00> : vector<64x128xf32>
    %84 = tpu.matmul %74, %83, %cst_66 {dimension_numbers = #tpu.dot_dimension_numbers<[1], [0], [0], [1], [0, 0, 1, 1], [], []>} : vector<64x64xf32>, vector<64x128xf32>, vector<64x128xf32> -> vector<64x128xf32>
    %85 = arith.addf %81, %84 : vector<64x128xf32>
    %c0_67 = arith.constant 0 : index
    %c0_68 = arith.constant 0 : index
    %86 = vector.load %arg12[%c0_67, %c0_68] : memref<1x128xf32, #tpu.memory_space<vmem>>, vector<1x128xf32>
    %87 = vector.broadcast %86 : vector<1x128xf32> to vector<64x128xf32>
    %88 = arith.mulf %85, %87 : vector<64x128xf32>
    %c0_69 = arith.constant 0 : index
    %c0_70 = arith.constant 0 : index
    %89 = vector.load %arg13[%c0_69, %c0_70] : memref<1x128xf32, #tpu.memory_space<vmem>>, vector<1x128xf32>
    %90 = vector.broadcast %89 : vector<1x128xf32> to vector<64x128xf32>
    %91 = arith.addf %88, %90 : vector<64x128xf32>
    %cst_71 = arith.constant 0.000000e+00 : f32
    %92 = vector.broadcast %cst_71 : f32 to vector<64x128xf32>
    %93 = arith.maximumf %91, %92 : vector<64x128xf32>
    %c0_72 = arith.constant 0 : index
    %c0_73 = arith.constant 0 : index
    %94 = vector.load %arg24[%c0_72, %c0_73] : memref<64x128xf32, #tpu.memory_space<vmem>>, vector<64x128xf32>
    tpu.vector_store %arg24[%c0_72, %c0_73], %93 {strides = array<i32>} : memref<64x128xf32, #tpu.memory_space<vmem>>, vector<64x128xf32>,
    %c0_74 = arith.constant 0 : index
    %c0_75 = arith.constant 0 : index
    %95 = tpu.strided_load %arg24[%c0_74, %c0_75] {strides = array<i32: 2, 1>} : memref<64x128xf32, #tpu.memory_space<vmem>>, vector<32x128xf32>
    %c1_76 = arith.constant 1 : index
    %c0_77 = arith.constant 0 : index
    %96 = tpu.strided_load %arg24[%c1_76, %c0_77] {strides = array<i32: 2, 1>} : memref<64x128xf32, #tpu.memory_space<vmem>>, vector<32x128xf32>
    %97 = arith.maximumf %95, %96 : vector<32x128xf32>
    %c0_78 = arith.constant 0 : index
    %c0_79 = arith.constant 0 : index
    %98 = vector.load %arg25[%c0_78, %c0_79] : memref<32x128xf32, #tpu.memory_space<vmem>>, vector<32x128xf32>
    tpu.vector_store %arg25[%c0_78, %c0_79], %97 {strides = array<i32>} : memref<32x128xf32, #tpu.memory_space<vmem>>, vector<32x128xf32>,
    %c0_80 = arith.constant 0 : index
    %c0_81 = arith.constant 0 : index
    %99 = tpu.strided_load %arg25[%c0_80, %c0_81] {strides = array<i32: 8, 1>} : memref<32x128xf32, #tpu.memory_space<vmem>>, vector<4x128xf32>
    %c0_82 = arith.constant 0 : index
    %c0_83 = arith.constant 0 : index
    %c0_84 = arith.constant 0 : index
    %100 = vector.load %arg16[%c0_82, %c0_83, %c0_84] : memref<8x128x64xf32, #tpu.memory_space<vmem>>, vector<1x128x64xf32>
    %101 = vector.shape_cast %100 : vector<1x128x64xf32> to vector<128x64xf32>
    %cst_85 = arith.constant dense<0.000000e+00> : vector<4x64xf32>
    %102 = tpu.matmul %99, %101, %cst_85 {dimension_numbers = #tpu.dot_dimension_numbers<[1], [0], [0], [1], [0, 0, 1, 1], [], []>} : vector<4x128xf32>, vector<128x64xf32>, vector<4x64xf32> -> vector<4x64xf32>
    %c1_86 = arith.constant 1 : index
    %c0_87 = arith.constant 0 : index
    %103 = tpu.strided_load %arg25[%c1_86, %c0_87] {strides = array<i32: 8, 1>} : memref<32x128xf32, #tpu.memory_space<vmem>>, vector<4x128xf32>
    %c1_88 = arith.constant 1 : index
    %c0_89 = arith.constant 0 : index
    %c0_90 = arith.constant 0 : index
    %104 = vector.load %arg16[%c1_88, %c0_89, %c0_90] : memref<8x128x64xf32, #tpu.memory_space<vmem>>, vector<1x128x64xf32>
    %105 = vector.shape_cast %104 : vector<1x128x64xf32> to vector<128x64xf32>
    %cst_91 = arith.constant dense<0.000000e+00> : vector<4x64xf32>
    %106 = tpu.matmul %103, %105, %cst_91 {dimension_numbers = #tpu.dot_dimension_numbers<[1], [0], [0], [1], [0, 0, 1, 1], [], []>} : vector<4x128xf32>, vector<128x64xf32>, vector<4x64xf32> -> vector<4x64xf32>
    %107 = arith.addf %102, %106 : vector<4x64xf32>
    %c2_92 = arith.constant 2 : index
    %c0_93 = arith.constant 0 : index
    %108 = tpu.strided_load %arg25[%c2_92, %c0_93] {strides = array<i32: 8, 1>} : memref<32x128xf32, #tpu.memory_space<vmem>>, vector<4x128xf32>
    %c2_94 = arith.constant 2 : index
    %c0_95 = arith.constant 0 : index
    %c0_96 = arith.constant 0 : index
    %109 = vector.load %arg16[%c2_94, %c0_95, %c0_96] : memref<8x128x64xf32, #tpu.memory_space<vmem>>, vector<1x128x64xf32>
    %110 = vector.shape_cast %109 : vector<1x128x64xf32> to vector<128x64xf32>
    %cst_97 = arith.constant dense<0.000000e+00> : vector<4x64xf32>
    %111 = tpu.matmul %108, %110, %cst_97 {dimension_numbers = #tpu.dot_dimension_numbers<[1], [0], [0], [1], [0, 0, 1, 1], [], []>} : vector<4x128xf32>, vector<128x64xf32>, vector<4x64xf32> -> vector<4x64xf32>
    %112 = arith.addf %107, %111 : vector<4x64xf32>
    %c3 = arith.constant 3 : index
    %c0_98 = arith.constant 0 : index
    %113 = tpu.strided_load %arg25[%c3, %c0_98] {strides = array<i32: 8, 1>} : memref<32x128xf32, #tpu.memory_space<vmem>>, vector<4x128xf32>
    %c3_99 = arith.constant 3 : index
    %c0_100 = arith.constant 0 : index
    %c0_101 = arith.constant 0 : index
    %114 = vector.load %arg16[%c3_99, %c0_100, %c0_101] : memref<8x128x64xf32, #tpu.memory_space<vmem>>, vector<1x128x64xf32>
    %115 = vector.shape_cast %114 : vector<1x128x64xf32> to vector<128x64xf32>
    %cst_102 = arith.constant dense<0.000000e+00> : vector<4x64xf32>
    %116 = tpu.matmul %113, %115, %cst_102 {dimension_numbers = #tpu.dot_dimension_numbers<[1], [0], [0], [1], [0, 0, 1, 1], [], []>} : vector<4x128xf32>, vector<128x64xf32>, vector<4x64xf32> -> vector<4x64xf32>
    %117 = arith.addf %112, %116 : vector<4x64xf32>
    %c4 = arith.constant 4 : index
    %c0_103 = arith.constant 0 : index
    %118 = tpu.strided_load %arg25[%c4, %c0_103] {strides = array<i32: 8, 1>} : memref<32x128xf32, #tpu.memory_space<vmem>>, vector<4x128xf32>
    %c4_104 = arith.constant 4 : index
    %c0_105 = arith.constant 0 : index
    %c0_106 = arith.constant 0 : index
    %119 = vector.load %arg16[%c4_104, %c0_105, %c0_106] : memref<8x128x64xf32, #tpu.memory_space<vmem>>, vector<1x128x64xf32>
    %120 = vector.shape_cast %119 : vector<1x128x64xf32> to vector<128x64xf32>
    %cst_107 = arith.constant dense<0.000000e+00> : vector<4x64xf32>
    %121 = tpu.matmul %118, %120, %cst_107 {dimension_numbers = #tpu.dot_dimension_numbers<[1], [0], [0], [1], [0, 0, 1, 1], [], []>} : vector<4x128xf32>, vector<128x64xf32>, vector<4x64xf32> -> vector<4x64xf32>
    %122 = arith.addf %117, %121 : vector<4x64xf32>
    %c5 = arith.constant 5 : index
    %c0_108 = arith.constant 0 : index
    %123 = tpu.strided_load %arg25[%c5, %c0_108] {strides = array<i32: 8, 1>} : memref<32x128xf32, #tpu.memory_space<vmem>>, vector<4x128xf32>
    %c5_109 = arith.constant 5 : index
    %c0_110 = arith.constant 0 : index
    %c0_111 = arith.constant 0 : index
    %124 = vector.load %arg16[%c5_109, %c0_110, %c0_111] : memref<8x128x64xf32, #tpu.memory_space<vmem>>, vector<1x128x64xf32>
    %125 = vector.shape_cast %124 : vector<1x128x64xf32> to vector<128x64xf32>
    %cst_112 = arith.constant dense<0.000000e+00> : vector<4x64xf32>
    %126 = tpu.matmul %123, %125, %cst_112 {dimension_numbers = #tpu.dot_dimension_numbers<[1], [0], [0], [1], [0, 0, 1, 1], [], []>} : vector<4x128xf32>, vector<128x64xf32>, vector<4x64xf32> -> vector<4x64xf32>
    %127 = arith.addf %122, %126 : vector<4x64xf32>
    %c6 = arith.constant 6 : index
    %c0_113 = arith.constant 0 : index
    %128 = tpu.strided_load %arg25[%c6, %c0_113] {strides = array<i32: 8, 1>} : memref<32x128xf32, #tpu.memory_space<vmem>>, vector<4x128xf32>
    %c6_114 = arith.constant 6 : index
    %c0_115 = arith.constant 0 : index
    %c0_116 = arith.constant 0 : index
    %129 = vector.load %arg16[%c6_114, %c0_115, %c0_116] : memref<8x128x64xf32, #tpu.memory_space<vmem>>, vector<1x128x64xf32>
    %130 = vector.shape_cast %129 : vector<1x128x64xf32> to vector<128x64xf32>
    %cst_117 = arith.constant dense<0.000000e+00> : vector<4x64xf32>
    %131 = tpu.matmul %128, %130, %cst_117 {dimension_numbers = #tpu.dot_dimension_numbers<[1], [0], [0], [1], [0, 0, 1, 1], [], []>} : vector<4x128xf32>, vector<128x64xf32>, vector<4x64xf32> -> vector<4x64xf32>
    %132 = arith.addf %127, %131 : vector<4x64xf32>
    %c7 = arith.constant 7 : index
    %c0_118 = arith.constant 0 : index
    %133 = tpu.strided_load %arg25[%c7, %c0_118] {strides = array<i32: 8, 1>} : memref<32x128xf32, #tpu.memory_space<vmem>>, vector<4x128xf32>
    %c7_119 = arith.constant 7 : index
    %c0_120 = arith.constant 0 : index
    %c0_121 = arith.constant 0 : index
    %134 = vector.load %arg16[%c7_119, %c0_120, %c0_121] : memref<8x128x64xf32, #tpu.memory_space<vmem>>, vector<1x128x64xf32>
    %135 = vector.shape_cast %134 : vector<1x128x64xf32> to vector<128x64xf32>
    %cst_122 = arith.constant dense<0.000000e+00> : vector<4x64xf32>
    %136 = tpu.matmul %133, %135, %cst_122 {dimension_numbers = #tpu.dot_dimension_numbers<[1], [0], [0], [1], [0, 0, 1, 1], [], []>} : vector<4x128xf32>, vector<128x64xf32>, vector<4x64xf32> -> vector<4x64xf32>
    %137 = arith.addf %132, %136 : vector<4x64xf32>
    %c0_123 = arith.constant 0 : index
    %c0_124 = arith.constant 0 : index
    %138 = vector.load %arg17[%c0_123, %c0_124] : memref<1x64xf32, #tpu.memory_space<vmem>>, vector<1x64xf32>
    %139 = vector.broadcast %138 : vector<1x64xf32> to vector<4x64xf32>
    %140 = arith.mulf %137, %139 : vector<4x64xf32>
    %c0_125 = arith.constant 0 : index
    %c0_126 = arith.constant 0 : index
    %141 = vector.load %arg18[%c0_125, %c0_126] : memref<1x64xf32, #tpu.memory_space<vmem>>, vector<1x64xf32>
    %142 = vector.broadcast %141 : vector<1x64xf32> to vector<4x64xf32>
    %143 = arith.addf %140, %142 : vector<4x64xf32>
    %cst_127 = arith.constant 0.000000e+00 : f32
    %144 = vector.broadcast %cst_127 : f32 to vector<4x64xf32>
    %145 = arith.maximumf %143, %144 : vector<4x64xf32>
    %c0_128 = arith.constant 0 : index
    %c0_129 = arith.constant 0 : index
    %146 = vector.load %arg19[%c0_128, %c0_129] : memref<1x64xf32, #tpu.memory_space<vmem>>, vector<1x64xf32>
    %147 = vector.broadcast %146 : vector<1x64xf32> to vector<4x64xf32>
    %148 = arith.mulf %145, %147 : vector<4x64xf32>
    %cst_130 = arith.constant dense<0.000000e+00> : vector<4xf32>
    %149 = vector.multi_reduction <add>, %148, %cst_130 [1] : vector<4x64xf32> to vector<4xf32>
    %150 = vector.shape_cast %149 : vector<4xf32> to vector<4x1xf32>
    %c0_131 = arith.constant 0 : index
    %c0_132 = arith.constant 0 : index
    %151 = vector.load %arg20[%c0_131, %c0_132] : memref<1x1xf32, #tpu.memory_space<vmem>>, vector<1x1xf32>
    %152 = vector.broadcast %151 : vector<1x1xf32> to vector<4x1xf32>
    %153 = arith.addf %150, %152 : vector<4x1xf32>
    %c0_133 = arith.constant 0 : index
    %c0_134 = arith.constant 0 : index
    %154 = vector.load %arg21[%c0_133, %c0_134] : memref<4x1xf32, #tpu.memory_space<vmem>>, vector<4x1xf32>
    tpu.vector_store %arg21[%c0_133, %c0_134], %153 {strides = array<i32>} : memref<4x1xf32, #tpu.memory_space<vmem>>, vector<4x1xf32>,
    return
  }
}

</mosaic_0001>

<llo_original>
// kernel: baseline_cnn_forward.1
$region0: #{baseline_cnn_forward.1}
  #allocation0 [shape = 'u32[]', space=smem, size = 0x4, offset = 0x4, fixed_abs, tag = 'smem constant byte address 0x4 - core index']
  #allocation1 [shape = 'u32[144,128]{1,0:T(1,128)}', space=vmem, size = 0x12000, scoped, tag = 'internal scratch']
  #allocation2 [shape = 'f32[256,32]{1,0:T(8,128)}', space=vmem, size = 0x20000, scoped, tag = 'scratch operand']
  #allocation3 [shape = 'f32[128,64]{1,0:T(8,128)}', space=vmem, size = 0x10000, scoped, tag = 'scratch operand']
  #allocation4 [shape = 'f32[64,128]{1,0:T(8,128)}', space=vmem, size = 0x8000, scoped, tag = 'scratch operand']
  #allocation5 [shape = 'f32[32,128]{1,0:T(8,128)}', space=vmem, size = 0x4000, scoped, tag = 'scratch operand']
  #allocation6 [shape = 'f32[1,1]{1,0:T(1,128)S(1)}', space=vmem, size = 0x200, scoped, tag = 'scoped memory for baseline_cnn_forward.1']
  %s0 = inlined_call_operand.vmem [shape: f32[256,1], index: 0, kind: input, shape index: {}]
  %s1 = inlined_call_operand.vmem [shape: f32[3,1,32], index: 1, kind: input, shape index: {}]
  %s2 = inlined_call_operand.vmem [shape: f32[1,32], index: 2, kind: input, shape index: {}]
  %s3 = inlined_call_operand.vmem [shape: f32[1,32], index: 3, kind: input, shape index: {}]
  %s4 = inlined_call_operand.vmem [shape: f32[256,1], index: 4, kind: input, shape index: {}]
  %s5 = inlined_call_operand.vmem [shape: f32[256,1], index: 5, kind: input, shape index: {}]
  %s6 = inlined_call_operand.vmem [shape: f32[3,32,64], index: 6, kind: input, shape index: {}]
  %s7 = inlined_call_operand.vmem [shape: f32[1,64], index: 7, kind: input, shape index: {}]
  %s8 = inlined_call_operand.vmem [shape: f32[1,64], index: 8, kind: input, shape index: {}]
  %s9 = inlined_call_operand.vmem [shape: f32[128,1], index: 9, kind: input, shape index: {}]
  %s10 = inlined_call_operand.vmem [shape: f32[128,1], index: 10, kind: input, shape index: {}]
  %s11 = inlined_call_operand.vmem [shape: f32[3,64,128], index: 11, kind: input, shape index: {}]
  %s12 = inlined_call_operand.vmem [shape: f32[1,128], index: 12, kind: input, shape index: {}]
  %s13 = inlined_call_operand.vmem [shape: f32[1,128], index: 13, kind: input, shape index: {}]
  %s14 = inlined_call_operand.vmem [shape: f32[64,1], index: 14, kind: input, shape index: {}]
  %s15 = inlined_call_operand.vmem [shape: f32[64,1], index: 15, kind: input, shape index: {}]
  %s16 = inlined_call_operand.vmem [shape: f32[8,128,64], index: 16, kind: input, shape index: {}]
  %s17 = inlined_call_operand.vmem [shape: f32[1,64], index: 17, kind: input, shape index: {}]
  %s18 = inlined_call_operand.vmem [shape: f32[1,64], index: 18, kind: input, shape index: {}]
  %s19 = inlined_call_operand.vmem [shape: f32[1,64], index: 19, kind: input, shape index: {}]
  %s20 = inlined_call_operand.<no memory space> [shape: f32[1,1], index: 20, kind: input, shape index: {}]
  %s21 = inlined_call_operand.vmem [shape: f32[4,1], index: 21, kind: output, shape index: {}]
  %s22 = sld [smem:[#allocation0]]
  $region94: #{baseline_cnn_forward.1} parent=0
    _
  %s24 = ssub.s32 1, %s22
  %s25 = scalar_select 0, %s24, %s22
  %v26 = vstv %s20
  %27 = vst [vmem:[#allocation6] sm:$0x1] %v26
  // Predicated region
  $region2: #{baseline_cnn_forward.1} parent=0 // pred_check
    _
  $region3: #{baseline_cnn_forward.1} parent=0 // pred_check_branch
    %29 = sbr.rel (0) target = $region5
  $region4: #{baseline_cnn_forward.1} parent=0 // pred_region
    _
  $region5: #{baseline_cnn_forward.1} parent=0 // pred_fallthru
    _
  // Predicated region
  $region6: #{baseline_cnn_forward.1} parent=0 // pred_check
    _
  $region7: #{baseline_cnn_forward.1} parent=0 // pred_check_branch
    %31 = sbr.rel (0) target = $region9
  $region8: #{baseline_cnn_forward.1} parent=0 // pred_region
    _
  $region9: #{baseline_cnn_forward.1} parent=0 // pred_fallthru
    _
  // Predicated region
  $region10: #{baseline_cnn_forward.1} parent=0 // pred_check
    _
  $region11: #{baseline_cnn_forward.1} parent=0 // pred_check_branch
    %33 = sbr.rel (0) target = $region13
  $region12: #{baseline_cnn_forward.1} parent=0 // pred_region
    _
  $region13: #{baseline_cnn_forward.1} parent=0 // pred_fallthru
    _
  // Predicated region
  $region14: #{baseline_cnn_forward.1} parent=0 // pred_check
    _
  $region15: #{baseline_cnn_forward.1} parent=0 // pred_check_branch
    %35 = sbr.rel (0) target = $region17
  $region16: #{baseline_cnn_forward.1} parent=0 // pred_region
    _
  $region17: #{baseline_cnn_forward.1} parent=0 // pred_fallthru
    _
  // Predicated region
  $region18: #{baseline_cnn_forward.1} parent=0 // pred_check
    _
  $region19: #{baseline_cnn_forward.1} parent=0 // pred_check_branch
    %37 = sbr.rel (0) target = $region21
  $region20: #{baseline_cnn_forward.1} parent=0 // pred_region
    _
  $region21: #{baseline_cnn_forward.1} parent=0 // pred_fallthru
    _
  // Predicated region
  $region22: #{baseline_cnn_forward.1} parent=0 // pred_check
    _
  $region23: #{baseline_cnn_forward.1} parent=0 // pred_check_branch
    %39 = sbr.rel (0) target = $region25
  $region24: #{baseline_cnn_forward.1} parent=0 // pred_region
    _
  $region25: #{baseline_cnn_forward.1} parent=0 // pred_fallthru
    _
  // Predicated region
  $region26: #{baseline_cnn_forward.1} parent=0 // pred_check
    _
  $region27: #{baseline_cnn_forward.1} parent=0 // pred_check_branch
    %41 = sbr.rel (0) target = $region29
  $region28: #{baseline_cnn_forward.1} parent=0 // pred_region
    _
  $region29: #{baseline_cnn_forward.1} parent=0 // pred_fallthru
    _
  // Predicated region
  $region30: #{baseline_cnn_forward.1} parent=0 // pred_check
    _
  $region31: #{baseline_cnn_forward.1} parent=0 // pred_check_branch
    %43 = sbr.rel (0) target = $region33
  $region32: #{baseline_cnn_forward.1} parent=0 // pred_region
    _
  $region33: #{baseline_cnn_forward.1} parent=0 // pred_fallthru
    _
  // Predicated region
  $region34: #{baseline_cnn_forward.1} parent=0 // pred_check
    _
  $region35: #{baseline_cnn_forward.1} parent=0 // pred_check_branch
    %45 = sbr.rel (0) target = $region37
  $region36: #{baseline_cnn_forward.1} parent=0 // pred_region
    _
  $region37: #{baseline_cnn_forward.1} parent=0 // pred_fallthru
    _
  // Predicated region
  $region38: #{baseline_cnn_forward.1} parent=0 // pred_check
    _
  $region39: #{baseline_cnn_forward.1} parent=0 // pred_check_branch
    %47 = sbr.rel (0) target = $region41
  $region40: #{baseline_cnn_forward.1} parent=0 // pred_region
    _
  $region41: #{baseline_cnn_forward.1} parent=0 // pred_fallthru
    _
  // Predicated region
  $region42: #{baseline_cnn_forward.1} parent=0 // pred_check
    _
  $region43: #{baseline_cnn_forward.1} parent=0 // pred_check_branch
    %49 = sbr.rel (0) target = $region45
  $region44: #{baseline_cnn_forward.1} parent=0 // pred_region
    _
  $region45: #{baseline_cnn_forward.1} parent=0 // pred_fallthru
    _
  // Predicated region
  $region46: #{baseline_cnn_forward.1} parent=0 // pred_check
    _
  $region47: #{baseline_cnn_forward.1} parent=0 // pred_check_branch
    %51 = sbr.rel (0) target = $region49
  $region48: #{baseline_cnn_forward.1} parent=0 // pred_region
    _
  $region49: #{baseline_cnn_forward.1} parent=0 // pred_fallthru
    _
  // Predicated region
  $region50: #{baseline_cnn_forward.1} parent=0 // pred_check
    _
  $region51: #{baseline_cnn_forward.1} parent=0 // pred_check_branch
    %53 = sbr.rel (0) target = $region53
  $region52: #{baseline_cnn_forward.1} parent=0 // pred_region
    _
  $region53: #{baseline_cnn_forward.1} parent=0 // pred_fallthru
    _
  // Predicated region
  $region54: #{baseline_cnn_forward.1} parent=0 // pred_check
    _
  $region55: #{baseline_cnn_forward.1} parent=0 // pred_check_branch
    %55 = sbr.rel (0) target = $region57
  $region56: #{baseline_cnn_forward.1} parent=0 // pred_region
    _
  $region57: #{baseline_cnn_forward.1} parent=0 // pred_fallthru
    _
  // Predicated region
  $region58: #{baseline_cnn_forward.1} parent=0 // pred_check
    _
  $region59: #{baseline_cnn_forward.1} parent=0 // pred_check_branch
    %57 = sbr.rel (0) target = $region61
  $region60: #{baseline_cnn_forward.1} parent=0 // pred_region
    _
  $region61: #{baseline_cnn_forward.1} parent=0 // pred_fallthru
    _
  // Predicated region
  $region62: #{baseline_cnn_forward.1} parent=0 // pred_check
    _
  $region63: #{baseline_cnn_forward.1} parent=0 // pred_check_branch
    %59 = sbr.rel (0) target = $region65
  $region64: #{baseline_cnn_forward.1} parent=0 // pred_region
    _
  $region65: #{baseline_cnn_forward.1} parent=0 // pred_fallthru
    _
  // Predicated region
  $region66: #{baseline_cnn_forward.1} parent=0 // pred_check
    _
  $region67: #{baseline_cnn_forward.1} parent=0 // pred_check_branch
    %61 = sbr.rel (0) target = $region69
  $region68: #{baseline_cnn_forward.1} parent=0 // pred_region
    _
  $region69: #{baseline_cnn_forward.1} parent=0 // pred_fallthru
    _
  // Predicated region
  $region70: #{baseline_cnn_forward.1} parent=0 // pred_check
    _
  $region71: #{baseline_cnn_forward.1} parent=0 // pred_check_branch
    %63 = sbr.rel (0) target = $region73
  $region72: #{baseline_cnn_forward.1} parent=0 // pred_region
    _
  $region73: #{baseline_cnn_forward.1} parent=0 // pred_fallthru
    _
  // Predicated region
  $region74: #{baseline_cnn_forward.1} parent=0 // pred_check
    _
  $region75: #{baseline_cnn_forward.1} parent=0 // pred_check_branch
    %65 = sbr.rel (0) target = $region77
  $region76: #{baseline_cnn_forward.1} parent=0 // pred_region
    _
  $region77: #{baseline_cnn_forward.1} parent=0 // pred_fallthru
    _
  // Predicated region
  $region78: #{baseline_cnn_forward.1} parent=0 // pred_check
    _
  $region79: #{baseline_cnn_forward.1} parent=0 // pred_check_branch
    %67 = sbr.rel (0) target = $region81
  $region80: #{baseline_cnn_forward.1} parent=0 // pred_region
    _
  $region81: #{baseline_cnn_forward.1} parent=0 // pred_fallthru
    _
  // Predicated region
  $region82: #{baseline_cnn_forward.1} parent=0 // pred_check
    _
  $region83: #{baseline_cnn_forward.1} parent=0 // pred_check_branch
    %69 = sbr.rel (0) target = $region85
  $region84: #{baseline_cnn_forward.1} parent=0 // pred_region
    _
  $region85: #{baseline_cnn_forward.1} parent=0 // pred_fallthru
    _
  %v70 = vld [vmem:[%s0] sm:$0xff]
  %v71 = vld [vmem:[%s0 + $0x8] sm:$0xff]
  %v72 = vld [vmem:[%s0 + $0x10] sm:$0xff]
  %v73 = vld [vmem:[%s0 + $0x18] sm:$0xff]
  %v74 = vld [vmem:[%s0 + $0x20] sm:$0xff]
  %v75 = vld [vmem:[%s0 + $0x28] sm:$0xff]
  %v76 = vld [vmem:[%s0 + $0x30] sm:$0xff]
  %v77 = vld [vmem:[%s0 + $0x38] sm:$0xff]
  %v78 = vld [vmem:[%s0 + $0x40] sm:$0xff]
  %v79 = vld [vmem:[%s0 + $0x48] sm:$0xff]
  %v80 = vld [vmem:[%s0 + $0x50] sm:$0xff]
  %v81 = vld [vmem:[%s0 + $0x58] sm:$0xff]
  %v82 = vld [vmem:[%s0 + $0x60] sm:$0xff]
  %v83 = vld [vmem:[%s0 + $0x68] sm:$0xff]
  %v84 = vld [vmem:[%s0 + $0x70] sm:$0xff]
  %v85 = vld [vmem:[%s0 + $0x78] sm:$0xff]
  %v86 = vld [vmem:[%s0 + $0x80] sm:$0xff]
  %v87 = vld [vmem:[%s0 + $0x88] sm:$0xff]
  %v88 = vld [vmem:[%s0 + $0x90] sm:$0xff]
  %v89 = vld [vmem:[%s0 + $0x98] sm:$0xff]
  %v90 = vld [vmem:[%s0 + $0xa0] sm:$0xff]
  %v91 = vld [vmem:[%s0 + $0xa8] sm:$0xff]
  %v92 = vld [vmem:[%s0 + $0xb0] sm:$0xff]
  %v93 = vld [vmem:[%s0 + $0xb8] sm:$0xff]
  %v94 = vld [vmem:[%s0 + $0xc0] sm:$0xff]
  %v95 = vld [vmem:[%s0 + $0xc8] sm:$0xff]
  %v96 = vld [vmem:[%s0 + $0xd0] sm:$0xff]
  %v97 = vld [vmem:[%s0 + $0xd8] sm:$0xff]
  %v98 = vld [vmem:[%s0 + $0xe0] sm:$0xff]
  %v99 = vld [vmem:[%s0 + $0xe8] sm:$0xff]
  %v100 = vld [vmem:[%s0 + $0xf0] sm:$0xff]
  %v101 = vld [vmem:[%s0 + $0xf8] sm:$0xff]
  %v102 = vrot.slane %v70, 7
  %v103 = vrot.slane %v71, 7
  %v104 = vrot.slane %v72, 7
  %v105 = vrot.slane %v73, 7
  %v106 = vrot.slane %v74, 7
  %v107 = vrot.slane %v75, 7
  %v108 = vrot.slane %v76, 7
  %v109 = vrot.slane %v77, 7
  %v110 = vrot.slane %v78, 7
  %v111 = vrot.slane %v79, 7
  %v112 = vrot.slane %v80, 7
  %v113 = vrot.slane %v81, 7
  %v114 = vrot.slane %v82, 7
  %v115 = vrot.slane %v83, 7
  %v116 = vrot.slane %v84, 7
  %v117 = vrot.slane %v85, 7
  %v118 = vrot.slane %v86, 7
  %v119 = vrot.slane %v87, 7
  %v120 = vrot.slane %v88, 7
  %v121 = vrot.slane %v89, 7
  %v122 = vrot.slane %v90, 7
  %v123 = vrot.slane %v91, 7
  %v124 = vrot.slane %v92, 7
  %v125 = vrot.slane %v93, 7
  %v126 = vrot.slane %v94, 7
  %v127 = vrot.slane %v95, 7
  %v128 = vrot.slane %v96, 7
  %v129 = vrot.slane %v97, 7
  %v130 = vrot.slane %v98, 7
  %v131 = vrot.slane %v99, 7
  %v132 = vrot.slane %v100, 7
  %v133 = vrot.slane %v101, 7
  %v134 = vlaneseq
  %v135 = vshrl.u32 %v134, 7
  %vm136 = vcmp.lt.s32.totalorder %v135, 1
  %v137 = vsel %vm136, %v132, %v133
  %v138 = vsel %vm136, %v131, %v132
  %v139 = vsel %vm136, %v130, %v131
  %v140 = vsel %vm136, %v129, %v130
  %v141 = vsel %vm136, %v128, %v129
  %v142 = vsel %vm136, %v127, %v128
  %v143 = vsel %vm136, %v126, %v127
  %v144 = vsel %vm136, %v125, %v126
  %v145 = vsel %vm136, %v124, %v125
  %v146 = vsel %vm136, %v123, %v124
  %v147 = vsel %vm136, %v122, %v123
  %v148 = vsel %vm136, %v121, %v122
  %v149 = vsel %vm136, %v120, %v121
  %v150 = vsel %vm136, %v119, %v120
  %v151 = vsel %vm136, %v118, %v119
  %v152 = vsel %vm136, %v117, %v118
  %v153 = vsel %vm136, %v116, %v117
  %v154 = vsel %vm136, %v115, %v116
  %v155 = vsel %vm136, %v114, %v115
  %v156 = vsel %vm136, %v113, %v114
  %v157 = vsel %vm136, %v112, %v113
  %v158 = vsel %vm136, %v111, %v112
  %v159 = vsel %vm136, %v110, %v111
  %v160 = vsel %vm136, %v109, %v110
  %v161 = vsel %vm136, %v108, %v109
  %v162 = vsel %vm136, %v107, %v108
  %v163 = vsel %vm136, %v106, %v107
  %v164 = vsel %vm136, %v105, %v106
  %v165 = vsel %vm136, %v104, %v105
  %v166 = vsel %vm136, %v103, %v104
  %v167 = vsel %vm136, %v102, %v103
  %v168 = vsel %vm136, %v133, %v102
  %v169 = vld [vmem:[%s4] sm:$0xff]
  %v170 = vld [vmem:[%s4 + $0x8] sm:$0xff]
  %v171 = vld [vmem:[%s4 + $0x10] sm:$0xff]
  %v172 = vld [vmem:[%s4 + $0x18] sm:$0xff]
  %v173 = vld [vmem:[%s4 + $0x20] sm:$0xff]
  %v174 = vld [vmem:[%s4 + $0x28] sm:$0xff]
  %v175 = vld [vmem:[%s4 + $0x30] sm:$0xff]
  %v176 = vld [vmem:[%s4 + $0x38] sm:$0xff]
  %v177 = vld [vmem:[%s4 + $0x40] sm:$0xff]
  %v178 = vld [vmem:[%s4 + $0x48] sm:$0xff]
  %v179 = vld [vmem:[%s4 + $0x50] sm:$0xff]
  %v180 = vld [vmem:[%s4 + $0x58] sm:$0xff]
  %v181 = vld [vmem:[%s4 + $0x60] sm:$0xff]
  %v182 = vld [vmem:[%s4 + $0x68] sm:$0xff]
  %v183 = vld [vmem:[%s4 + $0x70] sm:$0xff]
  %v184 = vld [vmem:[%s4 + $0x78] sm:$0xff]
  %v185 = vld [vmem:[%s4 + $0x80] sm:$0xff]
  %v186 = vld [vmem:[%s4 + $0x88] sm:$0xff]
  %v187 = vld [vmem:[%s4 + $0x90] sm:$0xff]
  %v188 = vld [vmem:[%s4 + $0x98] sm:$0xff]
  %v189 = vld [vmem:[%s4 + $0xa0] sm:$0xff]
  %v190 = vld [vmem:[%s4 + $0xa8] sm:$0xff]
  %v191 = vld [vmem:[%s4 + $0xb0] sm:$0xff]
  %v192 = vld [vmem:[%s4 + $0xb8] sm:$0xff]
  %v193 = vld [vmem:[%s4 + $0xc0] sm:$0xff]
  %v194 = vld [vmem:[%s4 + $0xc8] sm:$0xff]
  %v195 = vld [vmem:[%s4 + $0xd0] sm:$0xff]
  %v196 = vld [vmem:[%s4 + $0xd8] sm:$0xff]
  %v197 = vld [vmem:[%s4 + $0xe0] sm:$0xff]
  %v198 = vld [vmem:[%s4 + $0xe8] sm:$0xff]
  %v199 = vld [vmem:[%s4 + $0xf0] sm:$0xff]
  %v200 = vld [vmem:[%s4 + $0xf8] sm:$0xff]
  %v201 = vmul.f32 %v168, %v169
  %v202 = vmul.f32 %v167, %v170
  %v203 = vmul.f32 %v166, %v171
  %v204 = vmul.f32 %v165, %v172
  %v205 = vmul.f32 %v164, %v173
  %v206 = vmul.f32 %v163, %v174
  %v207 = vmul.f32 %v162, %v175
  %v208 = vmul.f32 %v161, %v176
  %v209 = vmul.f32 %v160, %v177
  %v210 = vmul.f32 %v159, %v178
  %v211 = vmul.f32 %v158, %v179
  %v212 = vmul.f32 %v157, %v180
  %v213 = vmul.f32 %v156, %v181
  %v214 = vmul.f32 %v155, %v182
  %v215 = vmul.f32 %v154, %v183
  %v216 = vmul.f32 %v153, %v184
  %v217 = vmul.f32 %v152, %v185
  %v218 = vmul.f32 %v151, %v186
  %v219 = vmul.f32 %v150, %v187
  %v220 = vmul.f32 %v149, %v188
  %v221 = vmul.f32 %v148, %v189
  %v222 = vmul.f32 %v147, %v190
  %v223 = vmul.f32 %v146, %v191
  %v224 = vmul.f32 %v145, %v192
  %v225 = vmul.f32 %v144, %v193
  %v226 = vmul.f32 %v143, %v194
  %v227 = vmul.f32 %v142, %v195
  %v228 = vmul.f32 %v141, %v196
  %v229 = vmul.f32 %v140, %v197
  %v230 = vmul.f32 %v139, %v198
  %v231 = vmul.f32 %v138, %v199
  %v232 = vmul.f32 %v137, %v200
  %v233 = vrot.slane %v70, 1
  %v234 = vrot.slane %v71, 1
  %v235 = vrot.slane %v72, 1
  %v236 = vrot.slane %v73, 1
  %v237 = vrot.slane %v74, 1
  %v238 = vrot.slane %v75, 1
  %v239 = vrot.slane %v76, 1
  %v240 = vrot.slane %v77, 1
  %v241 = vrot.slane %v78, 1
  %v242 = vrot.slane %v79, 1
  %v243 = vrot.slane %v80, 1
  %v244 = vrot.slane %v81, 1
  %v245 = vrot.slane %v82, 1
  %v246 = vrot.slane %v83, 1
  %v247 = vrot.slane %v84, 1
  %v248 = vrot.slane %v85, 1
  %v249 = vrot.slane %v86, 1
  %v250 = vrot.slane %v87, 1
  %v251 = vrot.slane %v88, 1
  %v252 = vrot.slane %v89, 1
  %v253 = vrot.slane %v90, 1
  %v254 = vrot.slane %v91, 1
  %v255 = vrot.slane %v92, 1
  %v256 = vrot.slane %v93, 1
  %v257 = vrot.slane %v94, 1
  %v258 = vrot.slane %v95, 1
  %v259 = vrot.slane %v96, 1
  %v260 = vrot.slane %v97, 1
  %v261 = vrot.slane %v98, 1
  %v262 = vrot.slane %v99, 1
  %v263 = vrot.slane %v100, 1
  %v264 = vrot.slane %v101, 1
  %vm265 = vcmp.lt.s32.totalorder %v135, 7
  %v266 = vsel %vm265, %v263, %v264
  %v267 = vsel %vm265, %v262, %v263
  %v268 = vsel %vm265, %v261, %v262
  %v269 = vsel %vm265, %v260, %v261
  %v270 = vsel %vm265, %v259, %v260
  %v271 = vsel %vm265, %v258, %v259
  %v272 = vsel %vm265, %v257, %v258
  %v273 = vsel %vm265, %v256, %v257
  %v274 = vsel %vm265, %v255, %v256
  %v275 = vsel %vm265, %v254, %v255
  %v276 = vsel %vm265, %v253, %v254
  %v277 = vsel %vm265, %v252, %v253
  %v278 = vsel %vm265, %v251, %v252
  %v279 = vsel %vm265, %v250, %v251
  %v280 = vsel %vm265, %v249, %v250
  %v281 = vsel %vm265, %v248, %v249
  %v282 = vsel %vm265, %v247, %v248
  %v283 = vsel %vm265, %v246, %v247
  %v284 = vsel %vm265, %v245, %v246
  %v285 = vsel %vm265, %v244, %v245
  %v286 = vsel %vm265, %v243, %v244
  %v287 = vsel %vm265, %v242, %v243
  %v288 = vsel %vm265, %v241, %v242
  %v289 = vsel %vm265, %v240, %v241
  %v290 = vsel %vm265, %v239, %v240
  %v291 = vsel %vm265, %v238, %v239
  %v292 = vsel %vm265, %v237, %v238
  %v293 = vsel %vm265, %v236, %v237
  %v294 = vsel %vm265, %v235, %v236
  %v295 = vsel %vm265, %v234, %v235
  %v296 = vsel %vm265, %v233, %v234
  %v297 = vsel %vm265, %v264, %v233
  %v298 = vld [vmem:[%s5] sm:$0xff]
  %v299 = vld [vmem:[%s5 + $0x8] sm:$0xff]
  %v300 = vld [vmem:[%s5 + $0x10] sm:$0xff]
  %v301 = vld [vmem:[%s5 + $0x18] sm:$0xff]
  %v302 = vld [vmem:[%s5 + $0x20] sm:$0xff]
  %v303 = vld [vmem:[%s5 + $0x28] sm:$0xff]
  %v304 = vld [vmem:[%s5 + $0x30] sm:$0xff]
  %v305 = vld [vmem:[%s5 + $0x38] sm:$0xff]
  %v306 = vld [vmem:[%s5 + $0x40] sm:$0xff]
  %v307 = vld [vmem:[%s5 + $0x48] sm:$0xff]
  %v308 = vld [vmem:[%s5 + $0x50] sm:$0xff]
  %v309 = vld [vmem:[%s5 + $0x58] sm:$0xff]
  %v310 = vld [vmem:[%s5 + $0x60] sm:$0xff]
  %v311 = vld [vmem:[%s5 + $0x68] sm:$0xff]
  %v312 = vld [vmem:[%s5 + $0x70] sm:$0xff]
  %v313 = vld [vmem:[%s5 + $0x78] sm:$0xff]
  %v314 = vld [vmem:[%s5 + $0x80] sm:$0xff]
  %v315 = vld [vmem:[%s5 + $0x88] sm:$0xff]
  %v316 = vld [vmem:[%s5 + $0x90] sm:$0xff]
  %v317 = vld [vmem:[%s5 + $0x98] sm:$0xff]
  %v318 = vld [vmem:[%s5 + $0xa0] sm:$0xff]
  %v319 = vld [vmem:[%s5 + $0xa8] sm:$0xff]
  %v320 = vld [vmem:[%s5 + $0xb0] sm:$0xff]
  %v321 = vld [vmem:[%s5 + $0xb8] sm:$0xff]
  %v322 = vld [vmem:[%s5 + $0xc0] sm:$0xff]
  %v323 = vld [vmem:[%s5 + $0xc8] sm:$0xff]
  %v324 = vld [vmem:[%s5 + $0xd0] sm:$0xff]
  %v325 = vld [vmem:[%s5 + $0xd8] sm:$0xff]
  %v326 = vld [vmem:[%s5 + $0xe0] sm:$0xff]
  %v327 = vld [vmem:[%s5 + $0xe8] sm:$0xff]
  %v328 = vld [vmem:[%s5 + $0xf0] sm:$0xff]
  %v329 = vld [vmem:[%s5 + $0xf8] sm:$0xff]
  %v330 = vmul.f32 %v296, %v298
  %v331 = vmul.f32 %v295, %v299
  %v332 = vmul.f32 %v294, %v300
  %v333 = vmul.f32 %v293, %v301
  %v334 = vmul.f32 %v292, %v302
  %v335 = vmul.f32 %v291, %v303
  %v336 = vmul.f32 %v290, %v304
  %v337 = vmul.f32 %v289, %v305
  %v338 = vmul.f32 %v288, %v306
  %v339 = vmul.f32 %v287, %v307
  %v340 = vmul.f32 %v286, %v308
  %v341 = vmul.f32 %v285, %v309
  %v342 = vmul.f32 %v284, %v310
  %v343 = vmul.f32 %v283, %v311
  %v344 = vmul.f32 %v282, %v312
  %v345 = vmul.f32 %v281, %v313
  %v346 = vmul.f32 %v280, %v314
  %v347 = vmul.f32 %v279, %v315
  %v348 = vmul.f32 %v278, %v316
  %v349 = vmul.f32 %v277, %v317
  %v350 = vmul.f32 %v276, %v318
  %v351 = vmul.f32 %v275, %v319
  %v352 = vmul.f32 %v274, %v320
  %v353 = vmul.f32 %v273, %v321
  %v354 = vmul.f32 %v272, %v322
  %v355 = vmul.f32 %v271, %v323
  %v356 = vmul.f32 %v270, %v324
  %v357 = vmul.f32 %v269, %v325
  %v358 = vmul.f32 %v268, %v326
  %v359 = vmul.f32 %v267, %v327
  %v360 = vmul.f32 %v266, %v328
  %v361 = vmul.f32 %v297, %v329
  %v362 = vld [vmem:[%s1] sm:$0x1]
  %364 = vset.pattern.permute.xlu0 0
  %365 = vperm.xlu0 %364, %v201
  %v366 = vpop.permute.xlu0 %365
  %369 = vset.pattern.permute.xlu0 0
  %370 = vperm.xlu0 %369, %v202
  %v371 = vpop.permute.xlu0 %370
  %374 = vset.pattern.permute.xlu0 0
  %375 = vperm.xlu0 %374, %v203
  %v376 = vpop.permute.xlu0 %375
  %379 = vset.pattern.permute.xlu0 0
  %380 = vperm.xlu0 %379, %v204
  %v381 = vpop.permute.xlu0 %380
  %384 = vset.pattern.permute.xlu0 0
  %385 = vperm.xlu0 %384, %v205
  %v386 = vpop.permute.xlu0 %385
  %389 = vset.pattern.permute.xlu0 0
  %390 = vperm.xlu0 %389, %v206
  %v391 = vpop.permute.xlu0 %390
  %394 = vset.pattern.permute.xlu0 0
  %395 = vperm.xlu0 %394, %v207
  %v396 = vpop.permute.xlu0 %395
  %399 = vset.pattern.permute.xlu0 0
  %400 = vperm.xlu0 %399, %v208
  %v401 = vpop.permute.xlu0 %400
  %404 = vset.pattern.permute.xlu0 0
  %405 = vperm.xlu0 %404, %v209
  %v406 = vpop.permute.xlu0 %405
  %409 = vset.pattern.permute.xlu0 0
  %410 = vperm.xlu0 %409, %v210
  %v411 = vpop.permute.xlu0 %410
  %414 = vset.pattern.permute.xlu0 0
  %415 = vperm.xlu0 %414, %v211
  %v416 = vpop.permute.xlu0 %415
  %419 = vset.pattern.permute.xlu0 0
  %420 = vperm.xlu0 %419, %v212
  %v421 = vpop.permute.xlu0 %420
  %424 = vset.pattern.permute.xlu0 0
  %425 = vperm.xlu0 %424, %v213
  %v426 = vpop.permute.xlu0 %425
  %429 = vset.pattern.permute.xlu0 0
  %430 = vperm.xlu0 %429, %v214
  %v431 = vpop.permute.xlu0 %430
  %434 = vset.pattern.permute.xlu0 0
  %435 = vperm.xlu0 %434, %v215
  %v436 = vpop.permute.xlu0 %435
  %439 = vset.pattern.permute.xlu0 0
  %440 = vperm.xlu0 %439, %v216
  %v441 = vpop.permute.xlu0 %440
  %444 = vset.pattern.permute.xlu0 0
  %445 = vperm.xlu0 %444, %v217
  %v446 = vpop.permute.xlu0 %445
  %449 = vset.pattern.permute.xlu0 0
  %450 = vperm.xlu0 %449, %v218
  %v451 = vpop.permute.xlu0 %450
  %454 = vset.pattern.permute.xlu0 0
  %455 = vperm.xlu0 %454, %v219
  %v456 = vpop.permute.xlu0 %455
  %459 = vset.pattern.permute.xlu0 0
  %460 = vperm.xlu0 %459, %v220
  %v461 = vpop.permute.xlu0 %460
  %464 = vset.pattern.permute.xlu0 0
  %465 = vperm.xlu0 %464, %v221
  %v466 = vpop.permute.xlu0 %465
  %469 = vset.pattern.permute.xlu0 0
  %470 = vperm.xlu0 %469, %v222
  %v471 = vpop.permute.xlu0 %470
  %474 = vset.pattern.permute.xlu0 0
  %475 = vperm.xlu0 %474, %v223
  %v476 = vpop.permute.xlu0 %475
  %479 = vset.pattern.permute.xlu0 0
  %480 = vperm.xlu0 %479, %v224
  %v481 = vpop.permute.xlu0 %480
  %484 = vset.pattern.permute.xlu0 0
  %485 = vperm.xlu0 %484, %v225
  %v486 = vpop.permute.xlu0 %485
  %489 = vset.pattern.permute.xlu0 0
  %490 = vperm.xlu0 %489, %v226
  %v491 = vpop.permute.xlu0 %490
  %494 = vset.pattern.permute.xlu0 0
  %495 = vperm.xlu0 %494, %v227
  %v496 = vpop.permute.xlu0 %495
  %499 = vset.pattern.permute.xlu0 0
  %500 = vperm.xlu0 %499, %v228
  %v501 = vpop.permute.xlu0 %500
  %504 = vset.pattern.permute.xlu0 0
  %505 = vperm.xlu0 %504, %v229
  %v506 = vpop.permute.xlu0 %505
  %509 = vset.pattern.permute.xlu0 0
  %510 = vperm.xlu0 %509, %v230
  %v511 = vpop.permute.xlu0 %510
  %514 = vset.pattern.permute.xlu0 0
  %515 = vperm.xlu0 %514, %v231
  %v516 = vpop.permute.xlu0 %515
  %519 = vset.pattern.permute.xlu0 0
  %520 = vperm.xlu0 %519, %v232
  %v521 = vpop.permute.xlu0 %520
  %v524 = vlaneseq
  %v525 = vshrl.u32 %v524, 7
  %v526 = vsub.s32 0, %v525
  %v527 = vrot.slane %v362, %v526
  %v529 = vmul.f32 %v366, %v527
  %v530 = vmul.f32 %v371, %v527
  %v531 = vmul.f32 %v376, %v527
  %v532 = vmul.f32 %v381, %v527
  %v533 = vmul.f32 %v386, %v527
  %v534 = vmul.f32 %v391, %v527
  %v535 = vmul.f32 %v396, %v527
  %v536 = vmul.f32 %v401, %v527
  %v537 = vmul.f32 %v406, %v527
  %v538 = vmul.f32 %v411, %v527
  %v539 = vmul.f32 %v416, %v527
  %v540 = vmul.f32 %v421, %v527
  %v541 = vmul.f32 %v426, %v527
  %v542 = vmul.f32 %v431, %v527
  %v543 = vmul.f32 %v436, %v527
  %v544 = vmul.f32 %v441, %v527
  %v545 = vmul.f32 %v446, %v527
  %v546 = vmul.f32 %v451, %v527
  %v547 = vmul.f32 %v456, %v527
  %v548 = vmul.f32 %v461, %v527
  %v549 = vmul.f32 %v466, %v527
  %v550 = vmul.f32 %v471, %v527
  %v551 = vmul.f32 %v476, %v527
  %v552 = vmul.f32 %v481, %v527
  %v553 = vmul.f32 %v486, %v527
  %v554 = vmul.f32 %v491, %v527
  %v555 = vmul.f32 %v496, %v527
  %v556 = vmul.f32 %v501, %v527
  %v557 = vmul.f32 %v506, %v527
  %v558 = vmul.f32 %v511, %v527
  %v559 = vmul.f32 %v516, %v527
  %v560 = vmul.f32 %v521, %v527
  %s561 = scalar_lea.vmem %s1, 1
  %v562 = vld [vmem:[%s561] sm:$0x1]
  %564 = vset.pattern.permute.xlu0 0
  %565 = vperm.xlu0 %564, %v70
  %v566 = vpop.permute.xlu0 %565
  %569 = vset.pattern.permute.xlu0 0
  %570 = vperm.xlu0 %569, %v71
  %v571 = vpop.permute.xlu0 %570
  %574 = vset.pattern.permute.xlu0 0
  %575 = vperm.xlu0 %574, %v72
  %v576 = vpop.permute.xlu0 %575
  %579 = vset.pattern.permute.xlu0 0
  %580 = vperm.xlu0 %579, %v73
  %v581 = vpop.permute.xlu0 %580
  %584 = vset.pattern.permute.xlu0 0
  %585 = vperm.xlu0 %584, %v74
  %v586 = vpop.permute.xlu0 %585
  %589 = vset.pattern.permute.xlu0 0
  %590 = vperm.xlu0 %589, %v75
  %v591 = vpop.permute.xlu0 %590
  %594 = vset.pattern.permute.xlu0 0
  %595 = vperm.xlu0 %594, %v76
  %v596 = vpop.permute.xlu0 %595
  %599 = vset.pattern.permute.xlu0 0
  %600 = vperm.xlu0 %599, %v77
  %v601 = vpop.permute.xlu0 %600
  %604 = vset.pattern.permute.xlu0 0
  %605 = vperm.xlu0 %604, %v78
  %v606 = vpop.permute.xlu0 %605
  %609 = vset.pattern.permute.xlu0 0
  %610 = vperm.xlu0 %609, %v79
  %v611 = vpop.permute.xlu0 %610
  %614 = vset.pattern.permute.xlu0 0
  %615 = vperm.xlu0 %614, %v80
  %v616 = vpop.permute.xlu0 %615
  %619 = vset.pattern.permute.xlu0 0
  %620 = vperm.xlu0 %619, %v81
  %v621 = vpop.permute.xlu0 %620
  %624 = vset.pattern.permute.xlu0 0
  %625 = vperm.xlu0 %624, %v82
  %v626 = vpop.permute.xlu0 %625
  %629 = vset.pattern.permute.xlu0 0
  %630 = vperm.xlu0 %629, %v83
  %v631 = vpop.permute.xlu0 %630
  %634 = vset.pattern.permute.xlu0 0
  %635 = vperm.xlu0 %634, %v84
  %v636 = vpop.permute.xlu0 %635
  %639 = vset.pattern.permute.xlu0 0
  %640 = vperm.xlu0 %639, %v85
  %v641 = vpop.permute.xlu0 %640
  %644 = vset.pattern.permute.xlu0 0
  %645 = vperm.xlu0 %644, %v86
  %v646 = vpop.permute.xlu0 %645
  %649 = vset.pattern.permute.xlu0 0
  %650 = vperm.xlu0 %649, %v87
  %v651 = vpop.permute.xlu0 %650
  %654 = vset.pattern.permute.xlu0 0
  %655 = vperm.xlu0 %654, %v88
  %v656 = vpop.permute.xlu0 %655
  %659 = vset.pattern.permute.xlu0 0
  %660 = vperm.xlu0 %659, %v89
  %v661 = vpop.permute.xlu0 %660
  %664 = vset.pattern.permute.xlu0 0
  %665 = vperm.xlu0 %664, %v90
  %v666 = vpop.permute.xlu0 %665
  %669 = vset.pattern.permute.xlu0 0
  %670 = vperm.xlu0 %669, %v91
  %v671 = vpop.permute.xlu0 %670
  %674 = vset.pattern.permute.xlu0 0
  %675 = vperm.xlu0 %674, %v92
  %v676 = vpop.permute.xlu0 %675
  %679 = vset.pattern.permute.xlu0 0
  %680 = vperm.xlu0 %679, %v93
  %v681 = vpop.permute.xlu0 %680
  %684 = vset.pattern.permute.xlu0 0
  %685 = vperm.xlu0 %684, %v94
  %v686 = vpop.permute.xlu0 %685
  %689 = vset.pattern.permute.xlu0 0
  %690 = vperm.xlu0 %689, %v95
  %v691 = vpop.permute.xlu0 %690
  %694 = vset.pattern.permute.xlu0 0
  %695 = vperm.xlu0 %694, %v96
  %v696 = vpop.permute.xlu0 %695
  %699 = vset.pattern.permute.xlu0 0
  %700 = vperm.xlu0 %699, %v97
  %v701 = vpop.permute.xlu0 %700
  %704 = vset.pattern.permute.xlu0 0
  %705 = vperm.xlu0 %704, %v98
  %v706 = vpop.permute.xlu0 %705
  %709 = vset.pattern.permute.xlu0 0
  %710 = vperm.xlu0 %709, %v99
  %v711 = vpop.permute.xlu0 %710
  %714 = vset.pattern.permute.xlu0 0
  %715 = vperm.xlu0 %714, %v100
  %v716 = vpop.permute.xlu0 %715
  %719 = vset.pattern.permute.xlu0 0
  %720 = vperm.xlu0 %719, %v101
  %v721 = vpop.permute.xlu0 %720
  %v724 = vlaneseq
  %v725 = vshrl.u32 %v724, 7
  %v726 = vsub.s32 0, %v725
  %v727 = vrot.slane %v562, %v726
  %v729 = vmul.f32 %v566, %v727
  %v730 = vmul.f32 %v571, %v727
  %v731 = vmul.f32 %v576, %v727
  %v732 = vmul.f32 %v581, %v727
  %v733 = vmul.f32 %v586, %v727
  %v734 = vmul.f32 %v591, %v727
  %v735 = vmul.f32 %v596, %v727
  %v736 = vmul.f32 %v601, %v727
  %v737 = vmul.f32 %v606, %v727
  %v738 = vmul.f32 %v611, %v727
  %v739 = vmul.f32 %v616, %v727
  %v740 = vmul.f32 %v621, %v727
  %v741 = vmul.f32 %v626, %v727
  %v742 = vmul.f32 %v631, %v727
  %v743 = vmul.f32 %v636, %v727
  %v744 = vmul.f32 %v641, %v727
  %v745 = vmul.f32 %v646, %v727
  %v746 = vmul.f32 %v651, %v727
  %v747 = vmul.f32 %v656, %v727
  %v748 = vmul.f32 %v661, %v727
  %v749 = vmul.f32 %v666, %v727
  %v750 = vmul.f32 %v671, %v727
  %v751 = vmul.f32 %v676, %v727
  %v752 = vmul.f32 %v681, %v727
  %v753 = vmul.f32 %v686, %v727
  %v754 = vmul.f32 %v691, %v727
  %v755 = vmul.f32 %v696, %v727
  %v756 = vmul.f32 %v701, %v727
  %v757 = vmul.f32 %v706, %v727
  %v758 = vmul.f32 %v711, %v727
  %v759 = vmul.f32 %v716, %v727
  %v760 = vmul.f32 %v721, %v727
  %v761 = vadd.f32 %v529, %v729
  %v762 = vadd.f32 %v530, %v730
  %v763 = vadd.f32 %v531, %v731
  %v764 = vadd.f32 %v532, %v732
  %v765 = vadd.f32 %v533, %v733
  %v766 = vadd.f32 %v534, %v734
  %v767 = vadd.f32 %v535, %v735
  %v768 = vadd.f32 %v536, %v736
  %v769 = vadd.f32 %v537, %v737
  %v770 = vadd.f32 %v538, %v738
  %v771 = vadd.f32 %v539, %v739
  %v772 = vadd.f32 %v540, %v740
  %v773 = vadd.f32 %v541, %v741
  %v774 = vadd.f32 %v542, %v742
  %v775 = vadd.f32 %v543, %v743
  %v776 = vadd.f32 %v544, %v744
  %v777 = vadd.f32 %v545, %v745
  %v778 = vadd.f32 %v546, %v746
  %v779 = vadd.f32 %v547, %v747
  %v780 = vadd.f32 %v548, %v748
  %v781 = vadd.f32 %v549, %v749
  %v782 = vadd.f32 %v550, %v750
  %v783 = vadd.f32 %v551, %v751
  %v784 = vadd.f32 %v552, %v752
  %v785 = vadd.f32 %v553, %v753
  %v786 = vadd.f32 %v554, %v754
  %v787 = vadd.f32 %v555, %v755
  %v788 = vadd.f32 %v556, %v756
  %v789 = vadd.f32 %v557, %v757
  %v790 = vadd.f32 %v558, %v758
  %v791 = vadd.f32 %v559, %v759
  %v792 = vadd.f32 %v560, %v760
  %s793 = scalar_lea.vmem %s1, 2
  %v794 = vld [vmem:[%s793] sm:$0x1]
  %796 = vset.pattern.permute.xlu0 0
  %797 = vperm.xlu0 %796, %v330
  %v798 = vpop.permute.xlu0 %797
  %801 = vset.pattern.permute.xlu0 0
  %802 = vperm.xlu0 %801, %v331
  %v803 = vpop.permute.xlu0 %802
  %806 = vset.pattern.permute.xlu0 0
  %807 = vperm.xlu0 %806, %v332
  %v808 = vpop.permute.xlu0 %807
  %811 = vset.pattern.permute.xlu0 0
  %812 = vperm.xlu0 %811, %v333
  %v813 = vpop.permute.xlu0 %812
  %816 = vset.pattern.permute.xlu0 0
  %817 = vperm.xlu0 %816, %v334
  %v818 = vpop.permute.xlu0 %817
  %821 = vset.pattern.permute.xlu0 0
  %822 = vperm.xlu0 %821, %v335
  %v823 = vpop.permute.xlu0 %822
  %826 = vset.pattern.permute.xlu0 0
  %827 = vperm.xlu0 %826, %v336
  %v828 = vpop.permute.xlu0 %827
  %831 = vset.pattern.permute.xlu0 0
  %832 = vperm.xlu0 %831, %v337
  %v833 = vpop.permute.xlu0 %832
  %836 = vset.pattern.permute.xlu0 0
  %837 = vperm.xlu0 %836, %v338
  %v838 = vpop.permute.xlu0 %837
  %841 = vset.pattern.permute.xlu0 0
  %842 = vperm.xlu0 %841, %v339
  %v843 = vpop.permute.xlu0 %842
  %846 = vset.pattern.permute.xlu0 0
  %847 = vperm.xlu0 %846, %v340
  %v848 = vpop.permute.xlu0 %847
  %851 = vset.pattern.permute.xlu0 0
  %852 = vperm.xlu0 %851, %v341
  %v853 = vpop.permute.xlu0 %852
  %856 = vset.pattern.permute.xlu0 0
  %857 = vperm.xlu0 %856, %v342
  %v858 = vpop.permute.xlu0 %857
  %861 = vset.pattern.permute.xlu0 0
  %862 = vperm.xlu0 %861, %v343
  %v863 = vpop.permute.xlu0 %862
  %866 = vset.pattern.permute.xlu0 0
  %867 = vperm.xlu0 %866, %v344
  %v868 = vpop.permute.xlu0 %867
  %871 = vset.pattern.permute.xlu0 0
  %872 = vperm.xlu0 %871, %v345
  %v873 = vpop.permute.xlu0 %872
  %876 = vset.pattern.permute.xlu0 0
  %877 = vperm.xlu0 %876, %v346
  %v878 = vpop.permute.xlu0 %877
  %881 = vset.pattern.permute.xlu0 0
  %882 = vperm.xlu0 %881, %v347
  %v883 = vpop.permute.xlu0 %882
  %886 = vset.pattern.permute.xlu0 0
  %887 = vperm.xlu0 %886, %v348
  %v888 = vpop.permute.xlu0 %887
  %891 = vset.pattern.permute.xlu0 0
  %892 = vperm.xlu0 %891, %v349
  %v893 = vpop.permute.xlu0 %892
  %896 = vset.pattern.permute.xlu0 0
  %897 = vperm.xlu0 %896, %v350
  %v898 = vpop.permute.xlu0 %897
  %901 = vset.pattern.permute.xlu0 0
  %902 = vperm.xlu0 %901, %v351
  %v903 = vpop.permute.xlu0 %902
  %906 = vset.pattern.permute.xlu0 0
  %907 = vperm.xlu0 %906, %v352
  %v908 = vpop.permute.xlu0 %907
  %911 = vset.pattern.permute.xlu0 0
  %912 = vperm.xlu0 %911, %v353
  %v913 = vpop.permute.xlu0 %912
  %916 = vset.pattern.permute.xlu0 0
  %917 = vperm.xlu0 %916, %v354
  %v918 = vpop.permute.xlu0 %917
  %921 = vset.pattern.permute.xlu0 0
  %922 = vperm.xlu0 %921, %v355
  %v923 = vpop.permute.xlu0 %922
  %926 = vset.pattern.permute.xlu0 0
  %927 = vperm.xlu0 %926, %v356
  %v928 = vpop.permute.xlu0 %927
  %931 = vset.pattern.permute.xlu0 0
  %932 = vperm.xlu0 %931, %v357
  %v933 = vpop.permute.xlu0 %932
  %936 = vset.pattern.permute.xlu0 0
  %937 = vperm.xlu0 %936, %v358
  %v938 = vpop.permute.xlu0 %937
  %941 = vset.pattern.permute.xlu0 0
  %942 = vperm.xlu0 %941, %v359
  %v943 = vpop.permute.xlu0 %942
  %946 = vset.pattern.permute.xlu0 0
  %947 = vperm.xlu0 %946, %v360
  %v948 = vpop.permute.xlu0 %947
  %951 = vset.pattern.permute.xlu0 0
  %952 = vperm.xlu0 %951, %v361
  %v953 = vpop.permute.xlu0 %952
  %v956 = vlaneseq
  %v957 = vshrl.u32 %v956, 7
  %v958 = vsub.s32 0, %v957
  %v959 = vrot.slane %v794, %v958
  %v961 = vmul.f32 %v798, %v959
  %v962 = vmul.f32 %v803, %v959
  %v963 = vmul.f32 %v808, %v959
  %v964 = vmul.f32 %v813, %v959
  %v965 = vmul.f32 %v818, %v959
  %v966 = vmul.f32 %v823, %v959
  %v967 = vmul.f32 %v828, %v959
  %v968 = vmul.f32 %v833, %v959
  %v969 = vmul.f32 %v838, %v959
  %v970 = vmul.f32 %v843, %v959
  %v971 = vmul.f32 %v848, %v959
  %v972 = vmul.f32 %v853, %v959
  %v973 = vmul.f32 %v858, %v959
  %v974 = vmul.f32 %v863, %v959
  %v975 = vmul.f32 %v868, %v959
  %v976 = vmul.f32 %v873, %v959
  %v977 = vmul.f32 %v878, %v959
  %v978 = vmul.f32 %v883, %v959
  %v979 = vmul.f32 %v888, %v959
  %v980 = vmul.f32 %v893, %v959
  %v981 = vmul.f32 %v898, %v959
  %v982 = vmul.f32 %v903, %v959
  %v983 = vmul.f32 %v908, %v959
  %v984 = vmul.f32 %v913, %v959
  %v985 = vmul.f32 %v918, %v959
  %v986 = vmul.f32 %v923, %v959
  %v987 = vmul.f32 %v928, %v959
  %v988 = vmul.f32 %v933, %v959
  %v989 = vmul.f32 %v938, %v959
  %v990 = vmul.f32 %v943, %v959
  %v991 = vmul.f32 %v948, %v959
  %v992 = vmul.f32 %v953, %v959
  %v993 = vadd.f32 %v761, %v961
  %v994 = vadd.f32 %v762, %v962
  %v995 = vadd.f32 %v763, %v963
  %v996 = vadd.f32 %v764, %v964
  %v997 = vadd.f32 %v765, %v965
  %v998 = vadd.f32 %v766, %v966
  %v999 = vadd.f32 %v767, %v967
  %v1000 = vadd.f32 %v768, %v968
  %v1001 = vadd.f32 %v769, %v969
  %v1002 = vadd.f32 %v770, %v970
  %v1003 = vadd.f32 %v771, %v971
  %v1004 = vadd.f32 %v772, %v972
  %v1005 = vadd.f32 %v773, %v973
  %v1006 = vadd.f32 %v774, %v974
  %v1007 = vadd.f32 %v775, %v975
  %v1008 = vadd.f32 %v776, %v976
  %v1009 = vadd.f32 %v777, %v977
  %v1010 = vadd.f32 %v778, %v978
  %v1011 = vadd.f32 %v779, %v979
  %v1012 = vadd.f32 %v780, %v980
  %v1013 = vadd.f32 %v781, %v981
  %v1014 = vadd.f32 %v782, %v982
  %v1015 = vadd.f32 %v783, %v983
  %v1016 = vadd.f32 %v784, %v984
  %v1017 = vadd.f32 %v785, %v985
  %v1018 = vadd.f32 %v786, %v986
  %v1019 = vadd.f32 %v787, %v987
  %v1020 = vadd.f32 %v788, %v988
  %v1021 = vadd.f32 %v789, %v989
  %v1022 = vadd.f32 %v790, %v990
  %v1023 = vadd.f32 %v791, %v991
  %v1024 = vadd.f32 %v792, %v992
  %v1025 = vld [vmem:[%s2] sm:$0x1]
  %v1027 = vlaneseq
  %v1028 = vshrl.u32 %v1027, 7
  %v1029 = vsub.s32 0, %v1028
  %v1030 = vrot.slane %v1025, %v1029
  %v1032 = vmul.f32 %v993, %v1030
  %v1033 = vmul.f32 %v994, %v1030
  %v1034 = vmul.f32 %v995, %v1030
  %v1035 = vmul.f32 %v996, %v1030
  %v1036 = vmul.f32 %v997, %v1030
  %v1037 = vmul.f32 %v998, %v1030
  %v1038 = vmul.f32 %v999, %v1030
  %v1039 = vmul.f32 %v1000, %v1030
  %v1040 = vmul.f32 %v1001, %v1030
  %v1041 = vmul.f32 %v1002, %v1030
  %v1042 = vmul.f32 %v1003, %v1030
  %v1043 = vmul.f32 %v1004, %v1030
  %v1044 = vmul.f32 %v1005, %v1030
  %v1045 = vmul.f32 %v1006, %v1030
  %v1046 = vmul.f32 %v1007, %v1030
  %v1047 = vmul.f32 %v1008, %v1030
  %v1048 = vmul.f32 %v1009, %v1030
  %v1049 = vmul.f32 %v1010, %v1030
  %v1050 = vmul.f32 %v1011, %v1030
  %v1051 = vmul.f32 %v1012, %v1030
  %v1052 = vmul.f32 %v1013, %v1030
  %v1053 = vmul.f32 %v1014, %v1030
  %v1054 = vmul.f32 %v1015, %v1030
  %v1055 = vmul.f32 %v1016, %v1030
  %v1056 = vmul.f32 %v1017, %v1030
  %v1057 = vmul.f32 %v1018, %v1030
  %v1058 = vmul.f32 %v1019, %v1030
  %v1059 = vmul.f32 %v1020, %v1030
  %v1060 = vmul.f32 %v1021, %v1030
  %v1061 = vmul.f32 %v1022, %v1030
  %v1062 = vmul.f32 %v1023, %v1030
  %v1063 = vmul.f32 %v1024, %v1030
  %v1064 = vld [vmem:[%s3] sm:$0x1]
  %v1066 = vlaneseq
  %v1067 = vshrl.u32 %v1066, 7
  %v1068 = vsub.s32 0, %v1067
  %v1069 = vrot.slane %v1064, %v1068
  %v1071 = vadd.f32 %v1032, %v1069
  %v1072 = vadd.f32 %v1033, %v1069
  %v1073 = vadd.f32 %v1034, %v1069
  %v1074 = vadd.f32 %v1035, %v1069
  %v1075 = vadd.f32 %v1036, %v1069
  %v1076 = vadd.f32 %v1037, %v1069
  %v1077 = vadd.f32 %v1038, %v1069
  %v1078 = vadd.f32 %v1039, %v1069
  %v1079 = vadd.f32 %v1040, %v1069
  %v1080 = vadd.f32 %v1041, %v1069
  %v1081 = vadd.f32 %v1042, %v1069
  %v1082 = vadd.f32 %v1043, %v1069
  %v1083 = vadd.f32 %v1044, %v1069
  %v1084 = vadd.f32 %v1045, %v1069
  %v1085 = vadd.f32 %v1046, %v1069
  %v1086 = vadd.f32 %v1047, %v1069
  %v1087 = vadd.f32 %v1048, %v1069
  %v1088 = vadd.f32 %v1049, %v1069
  %v1089 = vadd.f32 %v1050, %v1069
  %v1090 = vadd.f32 %v1051, %v1069
  %v1091 = vadd.f32 %v1052, %v1069
  %v1092 = vadd.f32 %v1053, %v1069
  %v1093 = vadd.f32 %v1054, %v1069
  %v1094 = vadd.f32 %v1055, %v1069
  %v1095 = vadd.f32 %v1056, %v1069
  %v1096 = vadd.f32 %v1057, %v1069
  %v1097 = vadd.f32 %v1058, %v1069
  %v1098 = vadd.f32 %v1059, %v1069
  %v1099 = vadd.f32 %v1060, %v1069
  %v1100 = vadd.f32 %v1061, %v1069
  %v1101 = vadd.f32 %v1062, %v1069
  %v1102 = vadd.f32 %v1063, %v1069
  %v1103 = vmax.f32 %v1071, 0.0
  %v1104 = vmax.f32 %v1072, 0.0
  %v1105 = vmax.f32 %v1073, 0.0
  %v1106 = vmax.f32 %v1074, 0.0
  %v1107 = vmax.f32 %v1075, 0.0
  %v1108 = vmax.f32 %v1076, 0.0
  %v1109 = vmax.f32 %v1077, 0.0
  %v1110 = vmax.f32 %v1078, 0.0
  %v1111 = vmax.f32 %v1079, 0.0
  %v1112 = vmax.f32 %v1080, 0.0
  %v1113 = vmax.f32 %v1081, 0.0
  %v1114 = vmax.f32 %v1082, 0.0
  %v1115 = vmax.f32 %v1083, 0.0
  %v1116 = vmax.f32 %v1084, 0.0
  %v1117 = vmax.f32 %v1085, 0.0
  %v1118 = vmax.f32 %v1086, 0.0
  %v1119 = vmax.f32 %v1087, 0.0
  %v1120 = vmax.f32 %v1088, 0.0
  %v1121 = vmax.f32 %v1089, 0.0
  %v1122 = vmax.f32 %v1090, 0.0
  %v1123 = vmax.f32 %v1091, 0.0
  %v1124 = vmax.f32 %v1092, 0.0
  %v1125 = vmax.f32 %v1093, 0.0
  %v1126 = vmax.f32 %v1094, 0.0
  %v1127 = vmax.f32 %v1095, 0.0
  %v1128 = vmax.f32 %v1096, 0.0
  %v1129 = vmax.f32 %v1097, 0.0
  %v1130 = vmax.f32 %v1098, 0.0
  %v1131 = vmax.f32 %v1099, 0.0
  %v1132 = vmax.f32 %v1100, 0.0
  %v1133 = vmax.f32 %v1101, 0.0
  %v1134 = vmax.f32 %v1102, 0.0
  %vm1135 = vcmask 261120
  %1136 = vst.msk [vmem:[#allocation2] sm:$0xff] %vm1135, %v1103
  %1137 = vst.msk [vmem:[#allocation2 + $0x8] sm:$0xff] %vm1135, %v1104
  %1138 = vst.msk [vmem:[#allocation2 + $0x10] sm:$0xff] %vm1135, %v1105
  %1139 = vst.msk [vmem:[#allocation2 + $0x18] sm:$0xff] %vm1135, %v1106
  %1140 = vst.msk [vmem:[#allocation2 + $0x20] sm:$0xff] %vm1135, %v1107
  %1141 = vst.msk [vmem:[#allocation2 + $0x28] sm:$0xff] %vm1135, %v1108
  %1142 = vst.msk [vmem:[#allocation2 + $0x30] sm:$0xff] %vm1135, %v1109
  %1143 = vst.msk [vmem:[#allocation2 + $0x38] sm:$0xff] %vm1135, %v1110
  %1144 = vst.msk [vmem:[#allocation2 + $0x40] sm:$0xff] %vm1135, %v1111
  %1145 = vst.msk [vmem:[#allocation2 + $0x48] sm:$0xff] %vm1135, %v1112
  %1146 = vst.msk [vmem:[#allocation2 + $0x50] sm:$0xff] %vm1135, %v1113
  %1147 = vst.msk [vmem:[#allocation2 + $0x58] sm:$0xff] %vm1135, %v1114
  %1148 = vst.msk [vmem:[#allocation2 + $0x60] sm:$0xff] %vm1135, %v1115
  %1149 = vst.msk [vmem:[#allocation2 + $0x68] sm:$0xff] %vm1135, %v1116
  %1150 = vst.msk [vmem:[#allocation2 + $0x70] sm:$0xff] %vm1135, %v1117
  %1151 = vst.msk [vmem:[#allocation2 + $0x78] sm:$0xff] %vm1135, %v1118
  %1152 = vst.msk [vmem:[#allocation2 + $0x80] sm:$0xff] %vm1135, %v1119
  %1153 = vst.msk [vmem:[#allocation2 + $0x88] sm:$0xff] %vm1135, %v1120
  %1154 = vst.msk [vmem:[#allocation2 + $0x90] sm:$0xff] %vm1135, %v1121
  %1155 = vst.msk [vmem:[#allocation2 + $0x98] sm:$0xff] %vm1135, %v1122
  %1156 = vst.msk [vmem:[#allocation2 + $0xa0] sm:$0xff] %vm1135, %v1123
  %1157 = vst.msk [vmem:[#allocation2 + $0xa8] sm:$0xff] %vm1135, %v1124
  %1158 = vst.msk [vmem:[#allocation2 + $0xb0] sm:$0xff] %vm1135, %v1125
  %1159 = vst.msk [vmem:[#allocation2 + $0xb8] sm:$0xff] %vm1135, %v1126
  %1160 = vst.msk [vmem:[#allocation2 + $0xc0] sm:$0xff] %vm1135, %v1127
  %1161 = vst.msk [vmem:[#allocation2 + $0xc8] sm:$0xff] %vm1135, %v1128
  %1162 = vst.msk [vmem:[#allocation2 + $0xd0] sm:$0xff] %vm1135, %v1129
  %1163 = vst.msk [vmem:[#allocation2 + $0xd8] sm:$0xff] %vm1135, %v1130
  %1164 = vst.msk [vmem:[#allocation2 + $0xe0] sm:$0xff] %vm1135, %v1131
  %1165 = vst.msk [vmem:[#allocation2 + $0xe8] sm:$0xff] %vm1135, %v1132
  %1166 = vst.msk [vmem:[#allocation2 + $0xf0] sm:$0xff] %vm1135, %v1133
  %1167 = vst.msk [vmem:[#allocation2 + $0xf8] sm:$0xff] %vm1135, %v1134
  %v1168 = vld [vmem:[#allocation2] ss:$2 sm:$0xff]
  %s1169 = scalar_lea.vmem [#allocation2], 16
  %v1170 = vld [vmem:[%s1169] ss:$2 sm:$0xff]
  %s1171 = scalar_lea.vmem [#allocation2], 32
  %v1172 = vld [vmem:[%s1171] ss:$2 sm:$0xff]
  %s1173 = scalar_lea.vmem [#allocation2], 48
  %v1174 = vld [vmem:[%s1173] ss:$2 sm:$0xff]
  %s1175 = scalar_lea.vmem [#allocation2], 64
  %v1176 = vld [vmem:[%s1175] ss:$2 sm:$0xff]
  %s1177 = scalar_lea.vmem [#allocation2], 80
  %v1178 = vld [vmem:[%s1177] ss:$2 sm:$0xff]
  %s1179 = scalar_lea.vmem [#allocation2], 96
  %v1180 = vld [vmem:[%s1179] ss:$2 sm:$0xff]
  %s1181 = scalar_lea.vmem [#allocation2], 112
  %v1182 = vld [vmem:[%s1181] ss:$2 sm:$0xff]
  %s1183 = scalar_lea.vmem [#allocation2], 128
  %v1184 = vld [vmem:[%s1183] ss:$2 sm:$0xff]
  %s1185 = scalar_lea.vmem [#allocation2], 144
  %v1186 = vld [vmem:[%s1185] ss:$2 sm:$0xff]
  %s1187 = scalar_lea.vmem [#allocation2], 160
  %v1188 = vld [vmem:[%s1187] ss:$2 sm:$0xff]
  %s1189 = scalar_lea.vmem [#allocation2], 176
  %v1190 = vld [vmem:[%s1189] ss:$2 sm:$0xff]
  %s1191 = scalar_lea.vmem [#allocation2], 192
  %v1192 = vld [vmem:[%s1191] ss:$2 sm:$0xff]
  %s1193 = scalar_lea.vmem [#allocation2], 208
  %v1194 = vld [vmem:[%s1193] ss:$2 sm:$0xff]
  %s1195 = scalar_lea.vmem [#allocation2], 224
  %v1196 = vld [vmem:[%s1195] ss:$2 sm:$0xff]
  %s1197 = scalar_lea.vmem [#allocation2], 240
  %v1198 = vld [vmem:[%s1197] ss:$2 sm:$0xff]
  %s1199 = scalar_lea.vmem [#allocation2], 1
  %v1200 = vld [vmem:[%s1199] ss:$2 sm:$0xff]
  %s1201 = scalar_lea.vmem [#allocation2], 17
  %v1202 = vld [vmem:[%s1201] ss:$2 sm:$0xff]
  %s1203 = scalar_lea.vmem [#allocation2], 33
  %v1204 = vld [vmem:[%s1203] ss:$2 sm:$0xff]
  %s1205 = scalar_lea.vmem [#allocation2], 49
  %v1206 = vld [vmem:[%s1205] ss:$2 sm:$0xff]
  %s1207 = scalar_lea.vmem [#allocation2], 65
  %v1208 = vld [vmem:[%s1207] ss:$2 sm:$0xff]
  %s1209 = scalar_lea.vmem [#allocation2], 81
  %v1210 = vld [vmem:[%s1209] ss:$2 sm:$0xff]
  %s1211 = scalar_lea.vmem [#allocation2], 97
  %v1212 = vld [vmem:[%s1211] ss:$2 sm:$0xff]
  %s1213 = scalar_lea.vmem [#allocation2], 113
  %v1214 = vld [vmem:[%s1213] ss:$2 sm:$0xff]
  %s1215 = scalar_lea.vmem [#allocation2], 129
  %v1216 = vld [vmem:[%s1215] ss:$2 sm:$0xff]
  %s1217 = scalar_lea.vmem [#allocation2], 145
  %v1218 = vld [vmem:[%s1217] ss:$2 sm:$0xff]
  %s1219 = scalar_lea.vmem [#allocation2], 161
  %v1220 = vld [vmem:[%s1219] ss:$2 sm:$0xff]
  %s1221 = scalar_lea.vmem [#allocation2], 177
  %v1222 = vld [vmem:[%s1221] ss:$2 sm:$0xff]
  %s1223 = scalar_lea.vmem [#allocation2], 193
  %v1224 = vld [vmem:[%s1223] ss:$2 sm:$0xff]
  %s1225 = scalar_lea.vmem [#allocation2], 209
  %v1226 = vld [vmem:[%s1225] ss:$2 sm:$0xff]
  %s1227 = scalar_lea.vmem [#allocation2], 225
  %v1228 = vld [vmem:[%s1227] ss:$2 sm:$0xff]
  %s1229 = scalar_lea.vmem [#allocation2], 241
  %v1230 = vld [vmem:[%s1229] ss:$2 sm:$0xff]
  %v1231 = vmax.f32 %v1168, %v1200
  %v1232 = vmax.f32 %v1170, %v1202
  %v1233 = vmax.f32 %v1172, %v1204
  %v1234 = vmax.f32 %v1174, %v1206
  %v1235 = vmax.f32 %v1176, %v1208
  %v1236 = vmax.f32 %v1178, %v1210
  %v1237 = vmax.f32 %v1180, %v1212
  %v1238 = vmax.f32 %v1182, %v1214
  %v1239 = vmax.f32 %v1184, %v1216
  %v1240 = vmax.f32 %v1186, %v1218
  %v1241 = vmax.f32 %v1188, %v1220
  %v1242 = vmax.f32 %v1190, %v1222
  %v1243 = vmax.f32 %v1192, %v1224
  %v1244 = vmax.f32 %v1194, %v1226
  %v1245 = vmax.f32 %v1196, %v1228
  %v1246 = vmax.f32 %v1198, %v1230
  %v1247 = vrot.slane %v1231, 7
  %v1248 = vrot.slane %v1232, 7
  %v1249 = vrot.slane %v1233, 7
  %v1250 = vrot.slane %v1234, 7
  %v1251 = vrot.slane %v1235, 7
  %v1252 = vrot.slane %v1236, 7
  %v1253 = vrot.slane %v1237, 7
  %v1254 = vrot.slane %v1238, 7
  %v1255 = vrot.slane %v1239, 7
  %v1256 = vrot.slane %v1240, 7
  %v1257 = vrot.slane %v1241, 7
  %v1258 = vrot.slane %v1242, 7
  %v1259 = vrot.slane %v1243, 7
  %v1260 = vrot.slane %v1244, 7
  %v1261 = vrot.slane %v1245, 7
  %v1262 = vrot.slane %v1246, 7
  %v1263 = vsel %vm136, %v1261, %v1262
  %v1264 = vsel %vm136, %v1260, %v1261
  %v1265 = vsel %vm136, %v1259, %v1260
  %v1266 = vsel %vm136, %v1258, %v1259
  %v1267 = vsel %vm136, %v1257, %v1258
  %v1268 = vsel %vm136, %v1256, %v1257
  %v1269 = vsel %vm136, %v1255, %v1256
  %v1270 = vsel %vm136, %v1254, %v1255
  %v1271 = vsel %vm136, %v1253, %v1254
  %v1272 = vsel %vm136, %v1252, %v1253
  %v1273 = vsel %vm136, %v1251, %v1252
  %v1274 = vsel %vm136, %v1250, %v1251
  %v1275 = vsel %vm136, %v1249, %v1250
  %v1276 = vsel %vm136, %v1248, %v1249
  %v1277 = vsel %vm136, %v1247, %v1248
  %v1278 = vsel %vm136, %v1262, %v1247
  %v1279 = vld [vmem:[%s9] sm:$0xff]
  %v1280 = vld [vmem:[%s9 + $0x8] sm:$0xff]
  %v1281 = vld [vmem:[%s9 + $0x10] sm:$0xff]
  %v1282 = vld [vmem:[%s9 + $0x18] sm:$0xff]
  %v1283 = vld [vmem:[%s9 + $0x20] sm:$0xff]
  %v1284 = vld [vmem:[%s9 + $0x28] sm:$0xff]
  %v1285 = vld [vmem:[%s9 + $0x30] sm:$0xff]
  %v1286 = vld [vmem:[%s9 + $0x38] sm:$0xff]
  %v1287 = vld [vmem:[%s9 + $0x40] sm:$0xff]
  %v1288 = vld [vmem:[%s9 + $0x48] sm:$0xff]
  %v1289 = vld [vmem:[%s9 + $0x50] sm:$0xff]
  %v1290 = vld [vmem:[%s9 + $0x58] sm:$0xff]
  %v1291 = vld [vmem:[%s9 + $0x60] sm:$0xff]
  %v1292 = vld [vmem:[%s9 + $0x68] sm:$0xff]
  %v1293 = vld [vmem:[%s9 + $0x70] sm:$0xff]
  %v1294 = vld [vmem:[%s9 + $0x78] sm:$0xff]
  %1296 = vset.pattern.permute.xlu0 0
  %1297 = vperm.xlu0 %1296, %v1279
  %v1298 = vpop.permute.xlu0 %1297
  %1301 = vset.pattern.permute.xlu0 0
  %1302 = vperm.xlu0 %1301, %v1280
  %v1303 = vpop.permute.xlu0 %1302
  %1306 = vset.pattern.permute.xlu0 0
  %1307 = vperm.xlu0 %1306, %v1281
  %v1308 = vpop.permute.xlu0 %1307
  %1311 = vset.pattern.permute.xlu0 0
  %1312 = vperm.xlu0 %1311, %v1282
  %v1313 = vpop.permute.xlu0 %1312
  %1316 = vset.pattern.permute.xlu0 0
  %1317 = vperm.xlu0 %1316, %v1283
  %v1318 = vpop.permute.xlu0 %1317
  %1321 = vset.pattern.permute.xlu0 0
  %1322 = vperm.xlu0 %1321, %v1284
  %v1323 = vpop.permute.xlu0 %1322
  %1326 = vset.pattern.permute.xlu0 0
  %1327 = vperm.xlu0 %1326, %v1285
  %v1328 = vpop.permute.xlu0 %1327
  %1331 = vset.pattern.permute.xlu0 0
  %1332 = vperm.xlu0 %1331, %v1286
  %v1333 = vpop.permute.xlu0 %1332
  %1336 = vset.pattern.permute.xlu0 0
  %1337 = vperm.xlu0 %1336, %v1287
  %v1338 = vpop.permute.xlu0 %1337
  %1341 = vset.pattern.permute.xlu0 0
  %1342 = vperm.xlu0 %1341, %v1288
  %v1343 = vpop.permute.xlu0 %1342
  %1346 = vset.pattern.permute.xlu0 0
  %1347 = vperm.xlu0 %1346, %v1289
  %v1348 = vpop.permute.xlu0 %1347
  %1351 = vset.pattern.permute.xlu0 0
  %1352 = vperm.xlu0 %1351, %v1290
  %v1353 = vpop.permute.xlu0 %1352
  %1356 = vset.pattern.permute.xlu0 0
  %1357 = vperm.xlu0 %1356, %v1291
  %v1358 = vpop.permute.xlu0 %1357
  %1361 = vset.pattern.permute.xlu0 0
  %1362 = vperm.xlu0 %1361, %v1292
  %v1363 = vpop.permute.xlu0 %1362
  %1366 = vset.pattern.permute.xlu0 0
  %1367 = vperm.xlu0 %1366, %v1293
  %v1368 = vpop.permute.xlu0 %1367
  %1371 = vset.pattern.permute.xlu0 0
  %1372 = vperm.xlu0 %1371, %v1294
  %v1373 = vpop.permute.xlu0 %1372
  %v1375 = vmul.f32 %v1278, %v1298
  %v1376 = vmul.f32 %v1277, %v1303
  %v1377 = vmul.f32 %v1276, %v1308
  %v1378 = vmul.f32 %v1275, %v1313
  %v1379 = vmul.f32 %v1274, %v1318
  %v1380 = vmul.f32 %v1273, %v1323
  %v1381 = vmul.f32 %v1272, %v1328
  %v1382 = vmul.f32 %v1271, %v1333
  %v1383 = vmul.f32 %v1270, %v1338
  %v1384 = vmul.f32 %v1269, %v1343
  %v1385 = vmul.f32 %v1268, %v1348
  %v1386 = vmul.f32 %v1267, %v1353
  %v1387 = vmul.f32 %v1266, %v1358
  %v1388 = vmul.f32 %v1265, %v1363
  %v1389 = vmul.f32 %v1264, %v1368
  %v1390 = vmul.f32 %v1263, %v1373
  %v1391 = vrot.slane %v1231, 1
  %v1392 = vrot.slane %v1232, 1
  %v1393 = vrot.slane %v1233, 1
  %v1394 = vrot.slane %v1234, 1
  %v1395 = vrot.slane %v1235, 1
  %v1396 = vrot.slane %v1236, 1
  %v1397 = vrot.slane %v1237, 1
  %v1398 = vrot.slane %v1238, 1
  %v1399 = vrot.slane %v1239, 1
  %v1400 = vrot.slane %v1240, 1
  %v1401 = vrot.slane %v1241, 1
  %v1402 = vrot.slane %v1242, 1
  %v1403 = vrot.slane %v1243, 1
  %v1404 = vrot.slane %v1244, 1
  %v1405 = vrot.slane %v1245, 1
  %v1406 = vrot.slane %v1246, 1
  %v1407 = vsel %vm265, %v1405, %v1406
  %v1408 = vsel %vm265, %v1404, %v1405
  %v1409 = vsel %vm265, %v1403, %v1404
  %v1410 = vsel %vm265, %v1402, %v1403
  %v1411 = vsel %vm265, %v1401, %v1402
  %v1412 = vsel %vm265, %v1400, %v1401
  %v1413 = vsel %vm265, %v1399, %v1400
  %v1414 = vsel %vm265, %v1398, %v1399
  %v1415 = vsel %vm265, %v1397, %v1398
  %v1416 = vsel %vm265, %v1396, %v1397
  %v1417 = vsel %vm265, %v1395, %v1396
  %v1418 = vsel %vm265, %v1394, %v1395
  %v1419 = vsel %vm265, %v1393, %v1394
  %v1420 = vsel %vm265, %v1392, %v1393
  %v1421 = vsel %vm265, %v1391, %v1392
  %v1422 = vsel %vm265, %v1406, %v1391
  %v1423 = vld [vmem:[%s10] sm:$0xff]
  %v1424 = vld [vmem:[%s10 + $0x8] sm:$0xff]
  %v1425 = vld [vmem:[%s10 + $0x10] sm:$0xff]
  %v1426 = vld [vmem:[%s10 + $0x18] sm:$0xff]
  %v1427 = vld [vmem:[%s10 + $0x20] sm:$0xff]
  %v1428 = vld [vmem:[%s10 + $0x28] sm:$0xff]
  %v1429 = vld [vmem:[%s10 + $0x30] sm:$0xff]
  %v1430 = vld [vmem:[%s10 + $0x38] sm:$0xff]
  %v1431 = vld [vmem:[%s10 + $0x40] sm:$0xff]
  %v1432 = vld [vmem:[%s10 + $0x48] sm:$0xff]
  %v1433 = vld [vmem:[%s10 + $0x50] sm:$0xff]
  %v1434 = vld [vmem:[%s10 + $0x58] sm:$0xff]
  %v1435 = vld [vmem:[%s10 + $0x60] sm:$0xff]
  %v1436 = vld [vmem:[%s10 + $0x68] sm:$0xff]
  %v1437 = vld [vmem:[%s10 + $0x70] sm:$0xff]
  %v1438 = vld [vmem:[%s10 + $0x78] sm:$0xff]
  %1440 = vset.pattern.permute.xlu0 0
  %1441 = vperm.xlu0 %1440, %v1423
  %v1442 = vpop.permute.xlu0 %1441
  %1445 = vset.pattern.permute.xlu0 0
  %1446 = vperm.xlu0 %1445, %v1424
  %v1447 = vpop.permute.xlu0 %1446
  %1450 = vset.pattern.permute.xlu0 0
  %1451 = vperm.xlu0 %1450, %v1425
  %v1452 = vpop.permute.xlu0 %1451
  %1455 = vset.pattern.permute.xlu0 0
  %1456 = vperm.xlu0 %1455, %v1426
  %v1457 = vpop.permute.xlu0 %1456
  %1460 = vset.pattern.permute.xlu0 0
  %1461 = vperm.xlu0 %1460, %v1427
  %v1462 = vpop.permute.xlu0 %1461
  %1465 = vset.pattern.permute.xlu0 0
  %1466 = vperm.xlu0 %1465, %v1428
  %v1467 = vpop.permute.xlu0 %1466
  %1470 = vset.pattern.permute.xlu0 0
  %1471 = vperm.xlu0 %1470, %v1429
  %v1472 = vpop.permute.xlu0 %1471
  %1475 = vset.pattern.permute.xlu0 0
  %1476 = vperm.xlu0 %1475, %v1430
  %v1477 = vpop.permute.xlu0 %1476
  %1480 = vset.pattern.permute.xlu0 0
  %1481 = vperm.xlu0 %1480, %v1431
  %v1482 = vpop.permute.xlu0 %1481
  %1485 = vset.pattern.permute.xlu0 0
  %1486 = vperm.xlu0 %1485, %v1432
  %v1487 = vpop.permute.xlu0 %1486
  %1490 = vset.pattern.permute.xlu0 0
  %1491 = vperm.xlu0 %1490, %v1433
  %v1492 = vpop.permute.xlu0 %1491
  %1495 = vset.pattern.permute.xlu0 0
  %1496 = vperm.xlu0 %1495, %v1434
  %v1497 = vpop.permute.xlu0 %1496
  %1500 = vset.pattern.permute.xlu0 0
  %1501 = vperm.xlu0 %1500, %v1435
  %v1502 = vpop.permute.xlu0 %1501
  %1505 = vset.pattern.permute.xlu0 0
  %1506 = vperm.xlu0 %1505, %v1436
  %v1507 = vpop.permute.xlu0 %1506
  %1510 = vset.pattern.permute.xlu0 0
  %1511 = vperm.xlu0 %1510, %v1437
  %v1512 = vpop.permute.xlu0 %1511
  %1515 = vset.pattern.permute.xlu0 0
  %1516 = vperm.xlu0 %1515, %v1438
  %v1517 = vpop.permute.xlu0 %1516
  %v1519 = vmul.f32 %v1421, %v1442
  %v1520 = vmul.f32 %v1420, %v1447
  %v1521 = vmul.f32 %v1419, %v1452
  %v1522 = vmul.f32 %v1418, %v1457
  %v1523 = vmul.f32 %v1417, %v1462
  %v1524 = vmul.f32 %v1416, %v1467
  %v1525 = vmul.f32 %v1415, %v1472
  %v1526 = vmul.f32 %v1414, %v1477
  %v1527 = vmul.f32 %v1413, %v1482
  %v1528 = vmul.f32 %v1412, %v1487
  %v1529 = vmul.f32 %v1411, %v1492
  %v1530 = vmul.f32 %v1410, %v1497
  %v1531 = vmul.f32 %v1409, %v1502
  %v1532 = vmul.f32 %v1408, %v1507
  %v1533 = vmul.f32 %v1407, %v1512
  %v1534 = vmul.f32 %v1422, %v1517
  %v1535 = vld [vmem:[%s6] sm:$0xff]
  %v1536 = vld [vmem:[%s6 + $0x8] sm:$0xff]
  %v1537 = vld [vmem:[%s6 + $0x10] sm:$0xff]
  %v1538 = vld [vmem:[%s6 + $0x18] sm:$0xff]
  %s1539 = scalar_lea.vmem %s6, 32
  %v1540 = vld [vmem:[%s1539] sm:$0xff]
  %v1541 = vld [vmem:[%s1539 + $0x8] sm:$0xff]
  %v1542 = vld [vmem:[%s1539 + $0x10] sm:$0xff]
  %v1543 = vld [vmem:[%s1539 + $0x18] sm:$0xff]
  %v1545 = vsel %vm1135, %v1231, 0
  %v1548 = vsel %vm1135, %v1232, 0
  %v1551 = vsel %vm1135, %v1233, 0
  %v1554 = vsel %vm1135, %v1234, 0
  %v1557 = vsel %vm1135, %v1235, 0
  %v1560 = vsel %vm1135, %v1236, 0
  %v1563 = vsel %vm1135, %v1237, 0
  %v1566 = vsel %vm1135, %v1238, 0
  %v1569 = vsel %vm1135, %v1239, 0
  %v1572 = vsel %vm1135, %v1240, 0
  %v1575 = vsel %vm1135, %v1241, 0
  %v1578 = vsel %vm1135, %v1242, 0
  %v1581 = vsel %vm1135, %v1243, 0
  %v1584 = vsel %vm1135, %v1244, 0
  %v1587 = vsel %vm1135, %v1245, 0
  %v1590 = vsel %vm1135, %v1246, 0
  %1592 = vmatprep.subr.mxu0 0.0
  %1593 = vmatpush1.msra.mxu0 %v1540
  %1594 = vmatprep.subr.mxu0 0.0
  %1595 = vmatpush1.msra.mxu0 %v1541
  %1596 = vmatprep.subr.mxu0 0.0
  %1597 = vmatpush1.msra.mxu0 %v1542
  %1598 = vmatprep.subr.mxu0 0.0
  %1599 = vmatpush1.msra.mxu0 %v1543
  %1600 = vmatprep.subr.mxu0 0.0
  %1601 = vmatpush1.msra.mxu0 0.0
  %1602 = vmatprep.subr.mxu0 0.0
  %1603 = vmatpush1.msra.mxu0 0.0
  %1604 = vmatprep.subr.mxu0 0.0
  %1605 = vmatpush1.msra.mxu0 0.0
  %1606 = vmatprep.subr.mxu0 0.0
  %1607 = vmatpush1.msra.mxu0 0.0
  %1608 = vmatprep.subr.mxu0 0.0
  %1609 = vmatpush1.msra.mxu0 0.0
  %1610 = vmatprep.subr.mxu0 0.0
  %1611 = vmatpush1.msra.mxu0 0.0
  %1612 = vmatprep.subr.mxu0 0.0
  %1613 = vmatpush1.msra.mxu0 0.0
  %1614 = vmatprep.subr.mxu0 0.0
  %1615 = vmatpush1.msra.mxu0 0.0
  %1616 = vmatprep.subr.mxu0 0.0
  %1617 = vmatpush1.msra.mxu0 0.0
  %1618 = vmatprep.subr.mxu0 0.0
  %1619 = vmatpush1.msra.mxu0 0.0
  %1620 = vmatprep.subr.mxu0 0.0
  %1621 = vmatpush1.msra.mxu0 0.0
  %1622 = vmatprep.subr.mxu0 0.0
  %1623 = vmatpush1.msra.mxu0 0.0
  %1624 = vmatprep.subr.mxu0 0.0
  %1625 = vmatpush1.msra.mxu0 0.0
  %1626 = vmatprep.subr.mxu0 0.0
  %1627 = vmatpush1.msra.mxu0 0.0
  %1628 = vmatprep.subr.mxu0 0.0
  %1629 = vmatpush1.msra.mxu0 0.0
  %1630 = vmatprep.subr.mxu0 0.0
  %1631 = vmatpush1.msra.mxu0 0.0
  %1632 = vmatprep.subr.mxu0 0.0
  %1633 = vmatpush1.msra.mxu0 0.0
  %1634 = vmatprep.subr.mxu0 0.0
  %1635 = vmatpush1.msra.mxu0 0.0
  %1636 = vmatprep.subr.mxu0 0.0
  %1637 = vmatpush1.msra.mxu0 0.0
  %1638 = vmatprep.subr.mxu0 0.0
  %1639 = vmatpush1.msra.mxu0 0.0
  %1640 = vmatprep.subr.mxu0 0.0
  %1641 = vmatpush1.msra.mxu0 0.0
  %1642 = vmatprep.subr.mxu0 0.0
  %1643 = vmatpush1.msra.mxu0 0.0
  %1644 = vmatprep.subr.mxu0 0.0
  %1645 = vmatpush1.msra.mxu0 0.0
  %1646 = vmatprep.subr.mxu0 0.0
  %1647 = vmatpush1.msra.mxu0 0.0
  %1648 = vmatprep.subr.mxu0 0.0
  %1649 = vmatpush1.msra.mxu0 0.0
  %1650 = vmatprep.subr.mxu0 0.0
  %1651 = vmatpush1.msra.mxu0 0.0
  %1652 = vmatprep.subr.mxu0 0.0
  %1653 = vmatpush1.msra.mxu0 0.0
  %1654 = vmatprep.subr.mxu0 0.0
  %1655 = vmatpush1.msra.mxu0 0.0
  %1656 = vmatprep.mubr.f32.mxu0 0.0
  %1657 = vmatmul.mubr.f32.gmra.mrb[0].mxu0 %v1545
  %v1658 = vpop.f32.mrb[0].mxu0
  %v1659 = vadd.f32 0.0, %v1658
  %v1660 = vpop.f32.mrb[0].mxu0
  %1661 = vmatprep.mubr.f32.mxu0 0.0
  %1662 = vmatmul.mubr.f32.gmra.mrb[0].mxu0 %v1548
  %v1663 = vpop.f32.mrb[0].mxu0
  %v1664 = vadd.f32 0.0, %v1663
  %v1665 = vpop.f32.mrb[0].mxu0
  %1666 = vmatprep.mubr.f32.mxu0 0.0
  %1667 = vmatmul.mubr.f32.gmra.mrb[0].mxu0 %v1551
  %v1668 = vpop.f32.mrb[0].mxu0
  %v1669 = vadd.f32 0.0, %v1668
  %v1670 = vpop.f32.mrb[0].mxu0
  %1671 = vmatprep.mubr.f32.mxu0 0.0
  %1672 = vmatmul.mubr.f32.gmra.mrb[0].mxu0 %v1554
  %v1673 = vpop.f32.mrb[0].mxu0
  %v1674 = vadd.f32 0.0, %v1673
  %v1675 = vpop.f32.mrb[0].mxu0
  %1676 = vmatprep.mubr.f32.mxu0 0.0
  %1677 = vmatmul.mubr.f32.gmra.mrb[0].mxu0 %v1557
  %v1678 = vpop.f32.mrb[0].mxu0
  %v1679 = vadd.f32 0.0, %v1678
  %v1680 = vpop.f32.mrb[0].mxu0
  %1681 = vmatprep.mubr.f32.mxu0 0.0
  %1682 = vmatmul.mubr.f32.gmra.mrb[0].mxu0 %v1560
  %v1683 = vpop.f32.mrb[0].mxu0
  %v1684 = vadd.f32 0.0, %v1683
  %v1685 = vpop.f32.mrb[0].mxu0
  %1686 = vmatprep.mubr.f32.mxu0 0.0
  %1687 = vmatmul.mubr.f32.gmra.mrb[0].mxu0 %v1563
  %v1688 = vpop.f32.mrb[0].mxu0
  %v1689 = vadd.f32 0.0, %v1688
  %v1690 = vpop.f32.mrb[0].mxu0
  %1691 = vmatprep.mubr.f32.mxu0 0.0
  %1692 = vmatmul.mubr.f32.gmra.mrb[0].mxu0 %v1566
  %v1693 = vpop.f32.mrb[0].mxu0
  %v1694 = vadd.f32 0.0, %v1693
  %v1695 = vpop.f32.mrb[0].mxu0
  %1696 = vmatprep.mubr.f32.mxu0 0.0
  %1697 = vmatmul.mubr.f32.gmra.mrb[0].mxu0 %v1569
  %v1698 = vpop.f32.mrb[0].mxu0
  %v1699 = vadd.f32 0.0, %v1698
  %v1700 = vpop.f32.mrb[0].mxu0
  %1701 = vmatprep.mubr.f32.mxu0 0.0
  %1702 = vmatmul.mubr.f32.gmra.mrb[0].mxu0 %v1572
  %v1703 = vpop.f32.mrb[0].mxu0
  %v1704 = vadd.f32 0.0, %v1703
  %v1705 = vpop.f32.mrb[0].mxu0
  %1706 = vmatprep.mubr.f32.mxu0 0.0
  %1707 = vmatmul.mubr.f32.gmra.mrb[0].mxu0 %v1575
  %v1708 = vpop.f32.mrb[0].mxu0
  %v1709 = vadd.f32 0.0, %v1708
  %v1710 = vpop.f32.mrb[0].mxu0
  %1711 = vmatprep.mubr.f32.mxu0 0.0
  %1712 = vmatmul.mubr.f32.gmra.mrb[0].mxu0 %v1578
  %v1713 = vpop.f32.mrb[0].mxu0
  %v1714 = vadd.f32 0.0, %v1713
  %v1715 = vpop.f32.mrb[0].mxu0
  %1716 = vmatprep.mubr.f32.mxu0 0.0
  %1717 = vmatmul.mubr.f32.gmra.mrb[0].mxu0 %v1581
  %v1718 = vpop.f32.mrb[0].mxu0
  %v1719 = vadd.f32 0.0, %v1718
  %v1720 = vpop.f32.mrb[0].mxu0
  %1721 = vmatprep.mubr.f32.mxu0 0.0
  %1722 = vmatmul.mubr.f32.gmra.mrb[0].mxu0 %v1584
  %v1723 = vpop.f32.mrb[0].mxu0
  %v1724 = vadd.f32 0.0, %v1723
  %v1725 = vpop.f32.mrb[0].mxu0
  %1726 = vmatprep.mubr.f32.mxu0 0.0
  %1727 = vmatmul.mubr.f32.gmra.mrb[0].mxu0 %v1587
  %v1728 = vpop.f32.mrb[0].mxu0
  %v1729 = vadd.f32 0.0, %v1728
  %v1730 = vpop.f32.mrb[0].mxu0
  %1731 = vmatprep.mubr.f32.mxu0 0.0
  %1732 = vmatmul.mubr.f32.gmra.mrb[0].mxu0 %v1590
  %v1733 = vpop.f32.mrb[0].mxu0
  %v1734 = vadd.f32 0.0, %v1733
  %v1735 = vpop.f32.mrb[0].mxu0
  %1736 = vdwg.mxu0
  %v1738 = vsel %vm1135, %v1375, 0
  %v1741 = vsel %vm1135, %v1376, 0
  %v1744 = vsel %vm1135, %v1377, 0
  %v1747 = vsel %vm1135, %v1378, 0
  %v1750 = vsel %vm1135, %v1379, 0
  %v1753 = vsel %vm1135, %v1380, 0
  %v1756 = vsel %vm1135, %v1381, 0
  %v1759 = vsel %vm1135, %v1382, 0
  %v1762 = vsel %vm1135, %v1383, 0
  %v1765 = vsel %vm1135, %v1384, 0
  %v1768 = vsel %vm1135, %v1385, 0
  %v1771 = vsel %vm1135, %v1386, 0
  %v1774 = vsel %vm1135, %v1387, 0
  %v1777 = vsel %vm1135, %v1388, 0
  %v1780 = vsel %vm1135, %v1389, 0
  %v1783 = vsel %vm1135, %v1390, 0
  %1785 = vmatprep.subr.mxu0 0.0
  %1786 = vmatpush1.msra.mxu0 %v1535
  %1787 = vmatprep.subr.mxu0 0.0
  %1788 = vmatpush1.msra.mxu0 %v1536
  %1789 = vmatprep.subr.mxu0 0.0
  %1790 = vmatpush1.msra.mxu0 %v1537
  %1791 = vmatprep.subr.mxu0 0.0
  %1792 = vmatpush1.msra.mxu0 %v1538
  %1793 = vmatprep.subr.mxu0 0.0
  %1794 = vmatpush1.msra.mxu0 0.0
  %1795 = vmatprep.subr.mxu0 0.0
  %1796 = vmatpush1.msra.mxu0 0.0
  %1797 = vmatprep.subr.mxu0 0.0
  %1798 = vmatpush1.msra.mxu0 0.0
  %1799 = vmatprep.subr.mxu0 0.0
  %1800 = vmatpush1.msra.mxu0 0.0
  %1801 = vmatprep.subr.mxu0 0.0
  %1802 = vmatpush1.msra.mxu0 0.0
  %1803 = vmatprep.subr.mxu0 0.0
  %1804 = vmatpush1.msra.mxu0 0.0
  %1805 = vmatprep.subr.mxu0 0.0
  %1806 = vmatpush1.msra.mxu0 0.0
  %1807 = vmatprep.subr.mxu0 0.0
  %1808 = vmatpush1.msra.mxu0 0.0
  %1809 = vmatprep.subr.mxu0 0.0
  %1810 = vmatpush1.msra.mxu0 0.0
  %1811 = vmatprep.subr.mxu0 0.0
  %1812 = vmatpush1.msra.mxu0 0.0
  %1813 = vmatprep.subr.mxu0 0.0
  %1814 = vmatpush1.msra.mxu0 0.0
  %1815 = vmatprep.subr.mxu0 0.0
  %1816 = vmatpush1.msra.mxu0 0.0
  %1817 = vmatprep.subr.mxu0 0.0
  %1818 = vmatpush1.msra.mxu0 0.0
  %1819 = vmatprep.subr.mxu0 0.0
  %1820 = vmatpush1.msra.mxu0 0.0
  %1821 = vmatprep.subr.mxu0 0.0
  %1822 = vmatpush1.msra.mxu0 0.0
  %1823 = vmatprep.subr.mxu0 0.0
  %1824 = vmatpush1.msra.mxu0 0.0
  %1825 = vmatprep.subr.mxu0 0.0
  %1826 = vmatpush1.msra.mxu0 0.0
  %1827 = vmatprep.subr.mxu0 0.0
  %1828 = vmatpush1.msra.mxu0 0.0
  %1829 = vmatprep.subr.mxu0 0.0
  %1830 = vmatpush1.msra.mxu0 0.0
  %1831 = vmatprep.subr.mxu0 0.0
  %1832 = vmatpush1.msra.mxu0 0.0
  %1833 = vmatprep.subr.mxu0 0.0
  %1834 = vmatpush1.msra.mxu0 0.0
  %1835 = vmatprep.subr.mxu0 0.0
  %1836 = vmatpush1.msra.mxu0 0.0
  %1837 = vmatprep.subr.mxu0 0.0
  %1838 = vmatpush1.msra.mxu0 0.0
  %1839 = vmatprep.subr.mxu0 0.0
  %1840 = vmatpush1.msra.mxu0 0.0
  %1841 = vmatprep.subr.mxu0 0.0
  %1842 = vmatpush1.msra.mxu0 0.0
  %1843 = vmatprep.subr.mxu0 0.0
  %1844 = vmatpush1.msra.mxu0 0.0
  %1845 = vmatprep.subr.mxu0 0.0
  %1846 = vmatpush1.msra.mxu0 0.0
  %1847 = vmatprep.subr.mxu0 0.0
  %1848 = vmatpush1.msra.mxu0 0.0
  %1849 = vmatprep.mubr.f32.mxu0 0.0
  %1850 = vmatmul.mubr.f32.gmra.mrb[0].mxu0 %v1738
  %v1851 = vpop.f32.mrb[0].mxu0
  %v1852 = vadd.f32 %v1659, %v1851
  %v1853 = vpop.f32.mrb[0].mxu0
  %1854 = vmatprep.mubr.f32.mxu0 0.0
  %1855 = vmatmul.mubr.f32.gmra.mrb[0].mxu0 %v1741
  %v1856 = vpop.f32.mrb[0].mxu0
  %v1857 = vadd.f32 %v1664, %v1856
  %v1858 = vpop.f32.mrb[0].mxu0
  %1859 = vmatprep.mubr.f32.mxu0 0.0
  %1860 = vmatmul.mubr.f32.gmra.mrb[0].mxu0 %v1744
  %v1861 = vpop.f32.mrb[0].mxu0
  %v1862 = vadd.f32 %v1669, %v1861
  %v1863 = vpop.f32.mrb[0].mxu0
  %1864 = vmatprep.mubr.f32.mxu0 0.0
  %1865 = vmatmul.mubr.f32.gmra.mrb[0].mxu0 %v1747
  %v1866 = vpop.f32.mrb[0].mxu0
  %v1867 = vadd.f32 %v1674, %v1866
  %v1868 = vpop.f32.mrb[0].mxu0
  %1869 = vmatprep.mubr.f32.mxu0 0.0
  %1870 = vmatmul.mubr.f32.gmra.mrb[0].mxu0 %v1750
  %v1871 = vpop.f32.mrb[0].mxu0
  %v1872 = vadd.f32 %v1679, %v1871
  %v1873 = vpop.f32.mrb[0].mxu0
  %1874 = vmatprep.mubr.f32.mxu0 0.0
  %1875 = vmatmul.mubr.f32.gmra.mrb[0].mxu0 %v1753
  %v1876 = vpop.f32.mrb[0].mxu0
  %v1877 = vadd.f32 %v1684, %v1876
  %v1878 = vpop.f32.mrb[0].mxu0
  %1879 = vmatprep.mubr.f32.mxu0 0.0
  %1880 = vmatmul.mubr.f32.gmra.mrb[0].mxu0 %v1756
  %v1881 = vpop.f32.mrb[0].mxu0
  %v1882 = vadd.f32 %v1689, %v1881
  %v1883 = vpop.f32.mrb[0].mxu0
  %1884 = vmatprep.mubr.f32.mxu0 0.0
  %1885 = vmatmul.mubr.f32.gmra.mrb[0].mxu0 %v1759
  %v1886 = vpop.f32.mrb[0].mxu0
  %v1887 = vadd.f32 %v1694, %v1886
  %v1888 = vpop.f32.mrb[0].mxu0
  %1889 = vmatprep.mubr.f32.mxu0 0.0
  %1890 = vmatmul.mubr.f32.gmra.mrb[0].mxu0 %v1762
  %v1891 = vpop.f32.mrb[0].mxu0
  %v1892 = vadd.f32 %v1699, %v1891
  %v1893 = vpop.f32.mrb[0].mxu0
  %1894 = vmatprep.mubr.f32.mxu0 0.0
  %1895 = vmatmul.mubr.f32.gmra.mrb[0].mxu0 %v1765
  %v1896 = vpop.f32.mrb[0].mxu0
  %v1897 = vadd.f32 %v1704, %v1896
  %v1898 = vpop.f32.mrb[0].mxu0
  %1899 = vmatprep.mubr.f32.mxu0 0.0
  %1900 = vmatmul.mubr.f32.gmra.mrb[0].mxu0 %v1768
  %v1901 = vpop.f32.mrb[0].mxu0
  %v1902 = vadd.f32 %v1709, %v1901
  %v1903 = vpop.f32.mrb[0].mxu0
  %1904 = vmatprep.mubr.f32.mxu0 0.0
  %1905 = vmatmul.mubr.f32.gmra.mrb[0].mxu0 %v1771
  %v1906 = vpop.f32.mrb[0].mxu0
  %v1907 = vadd.f32 %v1714, %v1906
  %v1908 = vpop.f32.mrb[0].mxu0
  %1909 = vmatprep.mubr.f32.mxu0 0.0
  %1910 = vmatmul.mubr.f32.gmra.mrb[0].mxu0 %v1774
  %v1911 = vpop.f32.mrb[0].mxu0
  %v1912 = vadd.f32 %v1719, %v1911
  %v1913 = vpop.f32.mrb[0].mxu0
  %1914 = vmatprep.mubr.f32.mxu0 0.0
  %1915 = vmatmul.mubr.f32.gmra.mrb[0].mxu0 %v1777
  %v1916 = vpop.f32.mrb[0].mxu0
  %v1917 = vadd.f32 %v1724, %v1916
  %v1918 = vpop.f32.mrb[0].mxu0
  %1919 = vmatprep.mubr.f32.mxu0 0.0
  %1920 = vmatmul.mubr.f32.gmra.mrb[0].mxu0 %v1780
  %v1921 = vpop.f32.mrb[0].mxu0
  %v1922 = vadd.f32 %v1729, %v1921
  %v1923 = vpop.f32.mrb[0].mxu0
  %1924 = vmatprep.mubr.f32.mxu0 0.0
  %1925 = vmatmul.mubr.f32.gmra.mrb[0].mxu0 %v1783
  %v1926 = vpop.f32.mrb[0].mxu0
  %v1927 = vadd.f32 %v1734, %v1926
  %v1928 = vpop.f32.mrb[0].mxu0
  %1929 = vdwg.mxu0
  %s1930 = scalar_lea.vmem %s6, 64
  %v1931 = vld [vmem:[%s1930] sm:$0xff]
  %v1932 = vld [vmem:[%s1930 + $0x8] sm:$0xff]
  %v1933 = vld [vmem:[%s1930 + $0x10] sm:$0xff]
  %v1934 = vld [vmem:[%s1930 + $0x18] sm:$0xff]
  %v1936 = vsel %vm1135, %v1519, 0
  %v1939 = vsel %vm1135, %v1520, 0
  %v1942 = vsel %vm1135, %v1521, 0
  %v1945 = vsel %vm1135, %v1522, 0
  %v1948 = vsel %vm1135, %v1523, 0
  %v1951 = vsel %vm1135, %v1524, 0
  %v1954 = vsel %vm1135, %v1525, 0
  %v1957 = vsel %vm1135, %v1526, 0
  %v1960 = vsel %vm1135, %v1527, 0
  %v1963 = vsel %vm1135, %v1528, 0
  %v1966 = vsel %vm1135, %v1529, 0
  %v1969 = vsel %vm1135, %v1530, 0
  %v1972 = vsel %vm1135, %v1531, 0
  %v1975 = vsel %vm1135, %v1532, 0
  %v1978 = vsel %vm1135, %v1533, 0
  %v1981 = vsel %vm1135, %v1534, 0
  %1983 = vmatprep.subr.mxu0 0.0
  %1984 = vmatpush1.msra.mxu0 %v1931
  %1985 = vmatprep.subr.mxu0 0.0
  %1986 = vmatpush1.msra.mxu0 %v1932
  %1987 = vmatprep.subr.mxu0 0.0
  %1988 = vmatpush1.msra.mxu0 %v1933
  %1989 = vmatprep.subr.mxu0 0.0
  %1990 = vmatpush1.msra.mxu0 %v1934
  %1991 = vmatprep.subr.mxu0 0.0
  %1992 = vmatpush1.msra.mxu0 0.0
  %1993 = vmatprep.subr.mxu0 0.0
  %1994 = vmatpush1.msra.mxu0 0.0
  %1995 = vmatprep.subr.mxu0 0.0
  %1996 = vmatpush1.msra.mxu0 0.0
  %1997 = vmatprep.subr.mxu0 0.0
  %1998 = vmatpush1.msra.mxu0 0.0
  %1999 = vmatprep.subr.mxu0 0.0
  %2000 = vmatpush1.msra.mxu0 0.0
  %2001 = vmatprep.subr.mxu0 0.0
  %2002 = vmatpush1.msra.mxu0 0.0
  %2003 = vmatprep.subr.mxu0 0.0
  %2004 = vmatpush1.msra.mxu0 0.0
  %2005 = vmatprep.subr.mxu0 0.0
  %2006 = vmatpush1.msra.mxu0 0.0
  %2007 = vmatprep.subr.mxu0 0.0
  %2008 = vmatpush1.msra.mxu0 0.0
  %2009 = vmatprep.subr.mxu0 0.0
  %2010 = vmatpush1.msra.mxu0 0.0
  %2011 = vmatprep.subr.mxu0 0.0
  %2012 = vmatpush1.msra.mxu0 0.0
  %2013 = vmatprep.subr.mxu0 0.0
  %2014 = vmatpush1.msra.mxu0 0.0
  %2015 = vmatprep.subr.mxu0 0.0
  %2016 = vmatpush1.msra.mxu0 0.0
  %2017 = vmatprep.subr.mxu0 0.0
  %2018 = vmatpush1.msra.mxu0 0.0
  %2019 = vmatprep.subr.mxu0 0.0
  %2020 = vmatpush1.msra.mxu0 0.0
  %2021 = vmatprep.subr.mxu0 0.0
  %2022 = vmatpush1.msra.mxu0 0.0
  %2023 = vmatprep.subr.mxu0 0.0
  %2024 = vmatpush1.msra.mxu0 0.0
  %2025 = vmatprep.subr.mxu0 0.0
  %2026 = vmatpush1.msra.mxu0 0.0
  %2027 = vmatprep.subr.mxu0 0.0
  %2028 = vmatpush1.msra.mxu0 0.0
  %2029 = vmatprep.subr.mxu0 0.0
  %2030 = vmatpush1.msra.mxu0 0.0
  %2031 = vmatprep.subr.mxu0 0.0
  %2032 = vmatpush1.msra.mxu0 0.0
  %2033 = vmatprep.subr.mxu0 0.0
  %2034 = vmatpush1.msra.mxu0 0.0
  %2035 = vmatprep.subr.mxu0 0.0
  %2036 = vmatpush1.msra.mxu0 0.0
  %2037 = vmatprep.subr.mxu0 0.0
  %2038 = vmatpush1.msra.mxu0 0.0
  %2039 = vmatprep.subr.mxu0 0.0
  %2040 = vmatpush1.msra.mxu0 0.0
  %2041 = vmatprep.subr.mxu0 0.0
  %2042 = vmatpush1.msra.mxu0 0.0
  %2043 = vmatprep.subr.mxu0 0.0
  %2044 = vmatpush1.msra.mxu0 0.0
  %2045 = vmatprep.subr.mxu0 0.0
  %2046 = vmatpush1.msra.mxu0 0.0
  %2047 = vmatprep.mubr.f32.mxu0 0.0
  %2048 = vmatmul.mubr.f32.gmra.mrb[0].mxu0 %v1936
  %v2049 = vpop.f32.mrb[0].mxu0
  %v2050 = vadd.f32 0.0, %v2049
  %v2051 = vpop.f32.mrb[0].mxu0
  %2052 = vmatprep.mubr.f32.mxu0 0.0
  %2053 = vmatmul.mubr.f32.gmra.mrb[0].mxu0 %v1939
  %v2054 = vpop.f32.mrb[0].mxu0
  %v2055 = vadd.f32 0.0, %v2054
  %v2056 = vpop.f32.mrb[0].mxu0
  %2057 = vmatprep.mubr.f32.mxu0 0.0
  %2058 = vmatmul.mubr.f32.gmra.mrb[0].mxu0 %v1942
  %v2059 = vpop.f32.mrb[0].mxu0
  %v2060 = vadd.f32 0.0, %v2059
  %v2061 = vpop.f32.mrb[0].mxu0
  %2062 = vmatprep.mubr.f32.mxu0 0.0
  %2063 = vmatmul.mubr.f32.gmra.mrb[0].mxu0 %v1945
  %v2064 = vpop.f32.mrb[0].mxu0
  %v2065 = vadd.f32 0.0, %v2064
  %v2066 = vpop.f32.mrb[0].mxu0
  %2067 = vmatprep.mubr.f32.mxu0 0.0
  %2068 = vmatmul.mubr.f32.gmra.mrb[0].mxu0 %v1948
  %v2069 = vpop.f32.mrb[0].mxu0
  %v2070 = vadd.f32 0.0, %v2069
  %v2071 = vpop.f32.mrb[0].mxu0
  %2072 = vmatprep.mubr.f32.mxu0 0.0
  %2073 = vmatmul.mubr.f32.gmra.mrb[0].mxu0 %v1951
  %v2074 = vpop.f32.mrb[0].mxu0
  %v2075 = vadd.f32 0.0, %v2074
  %v2076 = vpop.f32.mrb[0].mxu0
  %2077 = vmatprep.mubr.f32.mxu0 0.0
  %2078 = vmatmul.mubr.f32.gmra.mrb[0].mxu0 %v1954
  %v2079 = vpop.f32.mrb[0].mxu0
  %v2080 = vadd.f32 0.0, %v2079
  %v2081 = vpop.f32.mrb[0].mxu0
  %2082 = vmatprep.mubr.f32.mxu0 0.0
  %2083 = vmatmul.mubr.f32.gmra.mrb[0].mxu0 %v1957
  %v2084 = vpop.f32.mrb[0].mxu0
  %v2085 = vadd.f32 0.0, %v2084
  %v2086 = vpop.f32.mrb[0].mxu0
  %2087 = vmatprep.mubr.f32.mxu0 0.0
  %2088 = vmatmul.mubr.f32.gmra.mrb[0].mxu0 %v1960
  %v2089 = vpop.f32.mrb[0].mxu0
  %v2090 = vadd.f32 0.0, %v2089
  %v2091 = vpop.f32.mrb[0].mxu0
  %2092 = vmatprep.mubr.f32.mxu0 0.0
  %2093 = vmatmul.mubr.f32.gmra.mrb[0].mxu0 %v1963
  %v2094 = vpop.f32.mrb[0].mxu0
  %v2095 = vadd.f32 0.0, %v2094
  %v2096 = vpop.f32.mrb[0].mxu0
  %2097 = vmatprep.mubr.f32.mxu0 0.0
  %2098 = vmatmul.mubr.f32.gmra.mrb[0].mxu0 %v1966
  %v2099 = vpop.f32.mrb[0].mxu0
  %v2100 = vadd.f32 0.0, %v2099
  %v2101 = vpop.f32.mrb[0].mxu0
  %2102 = vmatprep.mubr.f32.mxu0 0.0
  %2103 = vmatmul.mubr.f32.gmra.mrb[0].mxu0 %v1969
  %v2104 = vpop.f32.mrb[0].mxu0
  %v2105 = vadd.f32 0.0, %v2104
  %v2106 = vpop.f32.mrb[0].mxu0
  %2107 = vmatprep.mubr.f32.mxu0 0.0
  %2108 = vmatmul.mubr.f32.gmra.mrb[0].mxu0 %v1972
  %v2109 = vpop.f32.mrb[0].mxu0
  %v2110 = vadd.f32 0.0, %v2109
  %v2111 = vpop.f32.mrb[0].mxu0
  %2112 = vmatprep.mubr.f32.mxu0 0.0
  %2113 = vmatmul.mubr.f32.gmra.mrb[0].mxu0 %v1975
  %v2114 = vpop.f32.mrb[0].mxu0
  %v2115 = vadd.f32 0.0, %v2114
  %v2116 = vpop.f32.mrb[0].mxu0
  %2117 = vmatprep.mubr.f32.mxu0 0.0
  %2118 = vmatmul.mubr.f32.gmra.mrb[0].mxu0 %v1978
  %v2119 = vpop.f32.mrb[0].mxu0
  %v2120 = vadd.f32 0.0, %v2119
  %v2121 = vpop.f32.mrb[0].mxu0
  %2122 = vmatprep.mubr.f32.mxu0 0.0
  %2123 = vmatmul.mubr.f32.gmra.mrb[0].mxu0 %v1981
  %v2124 = vpop.f32.mrb[0].mxu0
  %v2125 = vadd.f32 0.0, %v2124
  %v2126 = vpop.f32.mrb[0].mxu0
  %2127 = vdwg.mxu0
  %v2128 = vadd.f32 %v1852, %v2050
  %v2129 = vadd.f32 %v1857, %v2055
  %v2130 = vadd.f32 %v1862, %v2060
  %v2131 = vadd.f32 %v1867, %v2065
  %v2132 = vadd.f32 %v1872, %v2070
  %v2133 = vadd.f32 %v1877, %v2075
  %v2134 = vadd.f32 %v1882, %v2080
  %v2135 = vadd.f32 %v1887, %v2085
  %v2136 = vadd.f32 %v1892, %v2090
  %v2137 = vadd.f32 %v1897, %v2095
  %v2138 = vadd.f32 %v1902, %v2100
  %v2139 = vadd.f32 %v1907, %v2105
  %v2140 = vadd.f32 %v1912, %v2110
  %v2141 = vadd.f32 %v1917, %v2115
  %v2142 = vadd.f32 %v1922, %v2120
  %v2143 = vadd.f32 %v1927, %v2125
  %v2144 = vld [vmem:[%s7] sm:$0x1]
  %v2146 = vlaneseq
  %v2147 = vshrl.u32 %v2146, 7
  %v2148 = vsub.s32 0, %v2147
  %v2149 = vrot.slane %v2144, %v2148
  %v2151 = vmul.f32 %v2128, %v2149
  %v2152 = vmul.f32 %v2129, %v2149
  %v2153 = vmul.f32 %v2130, %v2149
  %v2154 = vmul.f32 %v2131, %v2149
  %v2155 = vmul.f32 %v2132, %v2149
  %v2156 = vmul.f32 %v2133, %v2149
  %v2157 = vmul.f32 %v2134, %v2149
  %v2158 = vmul.f32 %v2135, %v2149
  %v2159 = vmul.f32 %v2136, %v2149
  %v2160 = vmul.f32 %v2137, %v2149
  %v2161 = vmul.f32 %v2138, %v2149
  %v2162 = vmul.f32 %v2139, %v2149
  %v2163 = vmul.f32 %v2140, %v2149
  %v2164 = vmul.f32 %v2141, %v2149
  %v2165 = vmul.f32 %v2142, %v2149
  %v2166 = vmul.f32 %v2143, %v2149
  %v2167 = vld [vmem:[%s8] sm:$0x1]
  %v2169 = vlaneseq
  %v2170 = vshrl.u32 %v2169, 7
  %v2171 = vsub.s32 0, %v2170
  %v2172 = vrot.slane %v2167, %v2171
  %v2174 = vadd.f32 %v2151, %v2172
  %v2175 = vadd.f32 %v2152, %v2172
  %v2176 = vadd.f32 %v2153, %v2172
  %v2177 = vadd.f32 %v2154, %v2172
  %v2178 = vadd.f32 %v2155, %v2172
  %v2179 = vadd.f32 %v2156, %v2172
  %v2180 = vadd.f32 %v2157, %v2172
  %v2181 = vadd.f32 %v2158, %v2172
  %v2182 = vadd.f32 %v2159, %v2172
  %v2183 = vadd.f32 %v2160, %v2172
  %v2184 = vadd.f32 %v2161, %v2172
  %v2185 = vadd.f32 %v2162, %v2172
  %v2186 = vadd.f32 %v2163, %v2172
  %v2187 = vadd.f32 %v2164, %v2172
  %v2188 = vadd.f32 %v2165, %v2172
  %v2189 = vadd.f32 %v2166, %v2172
  %v2190 = vmax.f32 %v2174, 0.0
  %v2191 = vmax.f32 %v2175, 0.0
  %v2192 = vmax.f32 %v2176, 0.0
  %v2193 = vmax.f32 %v2177, 0.0
  %v2194 = vmax.f32 %v2178, 0.0
  %v2195 = vmax.f32 %v2179, 0.0
  %v2196 = vmax.f32 %v2180, 0.0
  %v2197 = vmax.f32 %v2181, 0.0
  %v2198 = vmax.f32 %v2182, 0.0
  %v2199 = vmax.f32 %v2183, 0.0
  %v2200 = vmax.f32 %v2184, 0.0
  %v2201 = vmax.f32 %v2185, 0.0
  %v2202 = vmax.f32 %v2186, 0.0
  %v2203 = vmax.f32 %v2187, 0.0
  %v2204 = vmax.f32 %v2188, 0.0
  %v2205 = vmax.f32 %v2189, 0.0
  %vm2206 = vcmask 523264
  %2207 = vst.msk [vmem:[#allocation3] sm:$0xff] %vm2206, %v2190
  %2208 = vst.msk [vmem:[#allocation3 + $0x8] sm:$0xff] %vm2206, %v2191
  %2209 = vst.msk [vmem:[#allocation3 + $0x10] sm:$0xff] %vm2206, %v2192
  %2210 = vst.msk [vmem:[#allocation3 + $0x18] sm:$0xff] %vm2206, %v2193
  %2211 = vst.msk [vmem:[#allocation3 + $0x20] sm:$0xff] %vm2206, %v2194
  %2212 = vst.msk [vmem:[#allocation3 + $0x28] sm:$0xff] %vm2206, %v2195
  %2213 = vst.msk [vmem:[#allocation3 + $0x30] sm:$0xff] %vm2206, %v2196
  %2214 = vst.msk [vmem:[#allocation3 + $0x38] sm:$0xff] %vm2206, %v2197
  %2215 = vst.msk [vmem:[#allocation3 + $0x40] sm:$0xff] %vm2206, %v2198
  %2216 = vst.msk [vmem:[#allocation3 + $0x48] sm:$0xff] %vm2206, %v2199
  %2217 = vst.msk [vmem:[#allocation3 + $0x50] sm:$0xff] %vm2206, %v2200
  %2218 = vst.msk [vmem:[#allocation3 + $0x58] sm:$0xff] %vm2206, %v2201
  %2219 = vst.msk [vmem:[#allocation3 + $0x60] sm:$0xff] %vm2206, %v2202
  %2220 = vst.msk [vmem:[#allocation3 + $0x68] sm:$0xff] %vm2206, %v2203
  %2221 = vst.msk [vmem:[#allocation3 + $0x70] sm:$0xff] %vm2206, %v2204
  %2222 = vst.msk [vmem:[#allocation3 + $0x78] sm:$0xff] %vm2206, %v2205
  %v2223 = vld [vmem:[#allocation3] ss:$2 sm:$0xff]
  %s2224 = scalar_lea.vmem [#allocation3], 16
  %v2225 = vld [vmem:[%s2224] ss:$2 sm:$0xff]
  %s2226 = scalar_lea.vmem [#allocation3], 32
  %v2227 = vld [vmem:[%s2226] ss:$2 sm:$0xff]
  %s2228 = scalar_lea.vmem [#allocation3], 48
  %v2229 = vld [vmem:[%s2228] ss:$2 sm:$0xff]
  %s2230 = scalar_lea.vmem [#allocation3], 64
  %v2231 = vld [vmem:[%s2230] ss:$2 sm:$0xff]
  %s2232 = scalar_lea.vmem [#allocation3], 80
  %v2233 = vld [vmem:[%s2232] ss:$2 sm:$0xff]
  %s2234 = scalar_lea.vmem [#allocation3], 96
  %v2235 = vld [vmem:[%s2234] ss:$2 sm:$0xff]
  %s2236 = scalar_lea.vmem [#allocation3], 112
  %v2237 = vld [vmem:[%s2236] ss:$2 sm:$0xff]
  %s2238 = scalar_lea.vmem [#allocation3], 1
  %v2239 = vld [vmem:[%s2238] ss:$2 sm:$0xff]
  %s2240 = scalar_lea.vmem [#allocation3], 17
  %v2241 = vld [vmem:[%s2240] ss:$2 sm:$0xff]
  %s2242 = scalar_lea.vmem [#allocation3], 33
  %v2243 = vld [vmem:[%s2242] ss:$2 sm:$0xff]
  %s2244 = scalar_lea.vmem [#allocation3], 49
  %v2245 = vld [vmem:[%s2244] ss:$2 sm:$0xff]
  %s2246 = scalar_lea.vmem [#allocation3], 65
  %v2247 = vld [vmem:[%s2246] ss:$2 sm:$0xff]
  %s2248 = scalar_lea.vmem [#allocation3], 81
  %v2249 = vld [vmem:[%s2248] ss:$2 sm:$0xff]
  %s2250 = scalar_lea.vmem [#allocation3], 97
  %v2251 = vld [vmem:[%s2250] ss:$2 sm:$0xff]
  %s2252 = scalar_lea.vmem [#allocation3], 113
  %v2253 = vld [vmem:[%s2252] ss:$2 sm:$0xff]
  %v2254 = vmax.f32 %v2223, %v2239
  %v2255 = vmax.f32 %v2225, %v2241
  %v2256 = vmax.f32 %v2227, %v2243
  %v2257 = vmax.f32 %v2229, %v2245
  %v2258 = vmax.f32 %v2231, %v2247
  %v2259 = vmax.f32 %v2233, %v2249
  %v2260 = vmax.f32 %v2235, %v2251
  %v2261 = vmax.f32 %v2237, %v2253
  %v2262 = vrot.slane %v2254, 7
  %v2263 = vrot.slane %v2255, 7
  %v2264 = vrot.slane %v2256, 7
  %v2265 = vrot.slane %v2257, 7
  %v2266 = vrot.slane %v2258, 7
  %v2267 = vrot.slane %v2259, 7
  %v2268 = vrot.slane %v2260, 7
  %v2269 = vrot.slane %v2261, 7
  %v2270 = vsel %vm136, %v2268, %v2269
  %v2271 = vsel %vm136, %v2267, %v2268
  %v2272 = vsel %vm136, %v2266, %v2267
  %v2273 = vsel %vm136, %v2265, %v2266
  %v2274 = vsel %vm136, %v2264, %v2265
  %v2275 = vsel %vm136, %v2263, %v2264
  %v2276 = vsel %vm136, %v2262, %v2263
  %v2277 = vsel %vm136, %v2269, %v2262
  %v2278 = vld [vmem:[%s14] sm:$0xff]
  %v2279 = vld [vmem:[%s14 + $0x8] sm:$0xff]
  %v2280 = vld [vmem:[%s14 + $0x10] sm:$0xff]
  %v2281 = vld [vmem:[%s14 + $0x18] sm:$0xff]
  %v2282 = vld [vmem:[%s14 + $0x20] sm:$0xff]
  %v2283 = vld [vmem:[%s14 + $0x28] sm:$0xff]
  %v2284 = vld [vmem:[%s14 + $0x30] sm:$0xff]
  %v2285 = vld [vmem:[%s14 + $0x38] sm:$0xff]
  %2287 = vset.pattern.permute.xlu0 0
  %2288 = vperm.xlu0 %2287, %v2278
  %v2289 = vpop.permute.xlu0 %2288
  %2292 = vset.pattern.permute.xlu0 0
  %2293 = vperm.xlu0 %2292, %v2279
  %v2294 = vpop.permute.xlu0 %2293
  %2297 = vset.pattern.permute.xlu0 0
  %2298 = vperm.xlu0 %2297, %v2280
  %v2299 = vpop.permute.xlu0 %2298
  %2302 = vset.pattern.permute.xlu0 0
  %2303 = vperm.xlu0 %2302, %v2281
  %v2304 = vpop.permute.xlu0 %2303
  %2307 = vset.pattern.permute.xlu0 0
  %2308 = vperm.xlu0 %2307, %v2282
  %v2309 = vpop.permute.xlu0 %2308
  %2312 = vset.pattern.permute.xlu0 0
  %2313 = vperm.xlu0 %2312, %v2283
  %v2314 = vpop.permute.xlu0 %2313
  %2317 = vset.pattern.permute.xlu0 0
  %2318 = vperm.xlu0 %2317, %v2284
  %v2319 = vpop.permute.xlu0 %2318
  %2322 = vset.pattern.permute.xlu0 0
  %2323 = vperm.xlu0 %2322, %v2285
  %v2324 = vpop.permute.xlu0 %2323
  %v2326 = vmul.f32 %v2277, %v2289
  %v2327 = vmul.f32 %v2276, %v2294
  %v2328 = vmul.f32 %v2275, %v2299
  %v2329 = vmul.f32 %v2274, %v2304
  %v2330 = vmul.f32 %v2273, %v2309
  %v2331 = vmul.f32 %v2272, %v2314
  %v2332 = vmul.f32 %v2271, %v2319
  %v2333 = vmul.f32 %v2270, %v2324
  %v2334 = vrot.slane %v2254, 1
  %v2335 = vrot.slane %v2255, 1
  %v2336 = vrot.slane %v2256, 1
  %v2337 = vrot.slane %v2257, 1
  %v2338 = vrot.slane %v2258, 1
  %v2339 = vrot.slane %v2259, 1
  %v2340 = vrot.slane %v2260, 1
  %v2341 = vrot.slane %v2261, 1
  %v2342 = vsel %vm265, %v2340, %v2341
  %v2343 = vsel %vm265, %v2339, %v2340
  %v2344 = vsel %vm265, %v2338, %v2339
  %v2345 = vsel %vm265, %v2337, %v2338
  %v2346 = vsel %vm265, %v2336, %v2337
  %v2347 = vsel %vm265, %v2335, %v2336
  %v2348 = vsel %vm265, %v2334, %v2335
  %v2349 = vsel %vm265, %v2341, %v2334
  %v2350 = vld [vmem:[%s15] sm:$0xff]
  %v2351 = vld [vmem:[%s15 + $0x8] sm:$0xff]
  %v2352 = vld [vmem:[%s15 + $0x10] sm:$0xff]
  %v2353 = vld [vmem:[%s15 + $0x18] sm:$0xff]
  %v2354 = vld [vmem:[%s15 + $0x20] sm:$0xff]
  %v2355 = vld [vmem:[%s15 + $0x28] sm:$0xff]
  %v2356 = vld [vmem:[%s15 + $0x30] sm:$0xff]
  %v2357 = vld [vmem:[%s15 + $0x38] sm:$0xff]
  %2359 = vset.pattern.permute.xlu0 0
  %2360 = vperm.xlu0 %2359, %v2350
  %v2361 = vpop.permute.xlu0 %2360
  %2364 = vset.pattern.permute.xlu0 0
  %2365 = vperm.xlu0 %2364, %v2351
  %v2366 = vpop.permute.xlu0 %2365
  %2369 = vset.pattern.permute.xlu0 0
  %2370 = vperm.xlu0 %2369, %v2352
  %v2371 = vpop.permute.xlu0 %2370
  %2374 = vset.pattern.permute.xlu0 0
  %2375 = vperm.xlu0 %2374, %v2353
  %v2376 = vpop.permute.xlu0 %2375
  %2379 = vset.pattern.permute.xlu0 0
  %2380 = vperm.xlu0 %2379, %v2354
  %v2381 = vpop.permute.xlu0 %2380
  %2384 = vset.pattern.permute.xlu0 0
  %2385 = vperm.xlu0 %2384, %v2355
  %v2386 = vpop.permute.xlu0 %2385
  %2389 = vset.pattern.permute.xlu0 0
  %2390 = vperm.xlu0 %2389, %v2356
  %v2391 = vpop.permute.xlu0 %2390
  %2394 = vset.pattern.permute.xlu0 0
  %2395 = vperm.xlu0 %2394, %v2357
  %v2396 = vpop.permute.xlu0 %2395
  %v2398 = vmul.f32 %v2348, %v2361
  %v2399 = vmul.f32 %v2347, %v2366
  %v2400 = vmul.f32 %v2346, %v2371
  %v2401 = vmul.f32 %v2345, %v2376
  %v2402 = vmul.f32 %v2344, %v2381
  %v2403 = vmul.f32 %v2343, %v2386
  %v2404 = vmul.f32 %v2342, %v2391
  %v2405 = vmul.f32 %v2349, %v2396
  %v2406 = vld [vmem:[%s11] sm:$0xff]
  %v2407 = vld [vmem:[%s11 + $0x8] sm:$0xff]
  %v2408 = vld [vmem:[%s11 + $0x10] sm:$0xff]
  %v2409 = vld [vmem:[%s11 + $0x18] sm:$0xff]
  %v2410 = vld [vmem:[%s11 + $0x20] sm:$0xff]
  %v2411 = vld [vmem:[%s11 + $0x28] sm:$0xff]
  %v2412 = vld [vmem:[%s11 + $0x30] sm:$0xff]
  %v2413 = vld [vmem:[%s11 + $0x38] sm:$0xff]
  %s2414 = scalar_lea.vmem %s11, 64
  %v2415 = vld [vmem:[%s2414] sm:$0xff]
  %v2416 = vld [vmem:[%s2414 + $0x8] sm:$0xff]
  %v2417 = vld [vmem:[%s2414 + $0x10] sm:$0xff]
  %v2418 = vld [vmem:[%s2414 + $0x18] sm:$0xff]
  %v2419 = vld [vmem:[%s2414 + $0x20] sm:$0xff]
  %v2420 = vld [vmem:[%s2414 + $0x28] sm:$0xff]
  %v2421 = vld [vmem:[%s2414 + $0x30] sm:$0xff]
  %v2422 = vld [vmem:[%s2414 + $0x38] sm:$0xff]
  %v2424 = vsel %vm2206, %v2254, 0
  %v2427 = vsel %vm2206, %v2255, 0
  %v2430 = vsel %vm2206, %v2256, 0
  %v2433 = vsel %vm2206, %v2257, 0
  %v2436 = vsel %vm2206, %v2258, 0
  %v2439 = vsel %vm2206, %v2259, 0
  %v2442 = vsel %vm2206, %v2260, 0
  %v2445 = vsel %vm2206, %v2261, 0
  %2447 = vmatprep.subr.mxu0 0.0
  %2448 = vmatpush1.msra.mxu0 %v2415
  %2449 = vmatprep.subr.mxu0 0.0
  %2450 = vmatpush1.msra.mxu0 %v2416
  %2451 = vmatprep.subr.mxu0 0.0
  %2452 = vmatpush1.msra.mxu0 %v2417
  %2453 = vmatprep.subr.mxu0 0.0
  %2454 = vmatpush1.msra.mxu0 %v2418
  %2455 = vmatprep.subr.mxu0 0.0
  %2456 = vmatpush1.msra.mxu0 %v2419
  %2457 = vmatprep.subr.mxu0 0.0
  %2458 = vmatpush1.msra.mxu0 %v2420
  %2459 = vmatprep.subr.mxu0 0.0
  %2460 = vmatpush1.msra.mxu0 %v2421
  %2461 = vmatprep.subr.mxu0 0.0
  %2462 = vmatpush1.msra.mxu0 %v2422
  %2463 = vmatprep.subr.mxu0 0.0
  %2464 = vmatpush1.msra.mxu0 0.0
  %2465 = vmatprep.subr.mxu0 0.0
  %2466 = vmatpush1.msra.mxu0 0.0
  %2467 = vmatprep.subr.mxu0 0.0
  %2468 = vmatpush1.msra.mxu0 0.0
  %2469 = vmatprep.subr.mxu0 0.0
  %2470 = vmatpush1.msra.mxu0 0.0
  %2471 = vmatprep.subr.mxu0 0.0
  %2472 = vmatpush1.msra.mxu0 0.0
  %2473 = vmatprep.subr.mxu0 0.0
  %2474 = vmatpush1.msra.mxu0 0.0
  %2475 = vmatprep.subr.mxu0 0.0
  %2476 = vmatpush1.msra.mxu0 0.0
  %2477 = vmatprep.subr.mxu0 0.0
  %2478 = vmatpush1.msra.mxu0 0.0
  %2479 = vmatprep.subr.mxu0 0.0
  %2480 = vmatpush1.msra.mxu0 0.0
  %2481 = vmatprep.subr.mxu0 0.0
  %2482 = vmatpush1.msra.mxu0 0.0
  %2483 = vmatprep.subr.mxu0 0.0
  %2484 = vmatpush1.msra.mxu0 0.0
  %2485 = vmatprep.subr.mxu0 0.0
  %2486 = vmatpush1.msra.mxu0 0.0
  %2487 = vmatprep.subr.mxu0 0.0
  %2488 = vmatpush1.msra.mxu0 0.0
  %2489 = vmatprep.subr.mxu0 0.0
  %2490 = vmatpush1.msra.mxu0 0.0
  %2491 = vmatprep.subr.mxu0 0.0
  %2492 = vmatpush1.msra.mxu0 0.0
  %2493 = vmatprep.subr.mxu0 0.0
  %2494 = vmatpush1.msra.mxu0 0.0
  %2495 = vmatprep.subr.mxu0 0.0
  %2496 = vmatpush1.msra.mxu0 0.0
  %2497 = vmatprep.subr.mxu0 0.0
  %2498 = vmatpush1.msra.mxu0 0.0
  %2499 = vmatprep.subr.mxu0 0.0
  %2500 = vmatpush1.msra.mxu0 0.0
  %2501 = vmatprep.subr.mxu0 0.0
  %2502 = vmatpush1.msra.mxu0 0.0
  %2503 = vmatprep.subr.mxu0 0.0
  %2504 = vmatpush1.msra.mxu0 0.0
  %2505 = vmatprep.subr.mxu0 0.0
  %2506 = vmatpush1.msra.mxu0 0.0
  %2507 = vmatprep.subr.mxu0 0.0
  %2508 = vmatpush1.msra.mxu0 0.0
  %2509 = vmatprep.subr.mxu0 0.0
  %2510 = vmatpush1.msra.mxu0 0.0
  %2511 = vmatprep.mubr.f32.mxu0 0.0
  %2512 = vmatmul.mubr.f32.gmra.mrb[0].mxu0 %v2424
  %v2513 = vpop.f32.mrb[0].mxu0
  %v2514 = vadd.f32 0.0, %v2513
  %v2515 = vpop.f32.mrb[0].mxu0
  %2516 = vmatprep.mubr.f32.mxu0 0.0
  %2517 = vmatmul.mubr.f32.gmra.mrb[0].mxu0 %v2427
  %v2518 = vpop.f32.mrb[0].mxu0
  %v2519 = vadd.f32 0.0, %v2518
  %v2520 = vpop.f32.mrb[0].mxu0
  %2521 = vmatprep.mubr.f32.mxu0 0.0
  %2522 = vmatmul.mubr.f32.gmra.mrb[0].mxu0 %v2430
  %v2523 = vpop.f32.mrb[0].mxu0
  %v2524 = vadd.f32 0.0, %v2523
  %v2525 = vpop.f32.mrb[0].mxu0
  %2526 = vmatprep.mubr.f32.mxu0 0.0
  %2527 = vmatmul.mubr.f32.gmra.mrb[0].mxu0 %v2433
  %v2528 = vpop.f32.mrb[0].mxu0
  %v2529 = vadd.f32 0.0, %v2528
  %v2530 = vpop.f32.mrb[0].mxu0
  %2531 = vmatprep.mubr.f32.mxu0 0.0
  %2532 = vmatmul.mubr.f32.gmra.mrb[0].mxu0 %v2436
  %v2533 = vpop.f32.mrb[0].mxu0
  %v2534 = vadd.f32 0.0, %v2533
  %v2535 = vpop.f32.mrb[0].mxu0
  %2536 = vmatprep.mubr.f32.mxu0 0.0
  %2537 = vmatmul.mubr.f32.gmra.mrb[0].mxu0 %v2439
  %v2538 = vpop.f32.mrb[0].mxu0
  %v2539 = vadd.f32 0.0, %v2538
  %v2540 = vpop.f32.mrb[0].mxu0
  %2541 = vmatprep.mubr.f32.mxu0 0.0
  %2542 = vmatmul.mubr.f32.gmra.mrb[0].mxu0 %v2442
  %v2543 = vpop.f32.mrb[0].mxu0
  %v2544 = vadd.f32 0.0, %v2543
  %v2545 = vpop.f32.mrb[0].mxu0
  %2546 = vmatprep.mubr.f32.mxu0 0.0
  %2547 = vmatmul.mubr.f32.gmra.mrb[0].mxu0 %v2445
  %v2548 = vpop.f32.mrb[0].mxu0
  %v2549 = vadd.f32 0.0, %v2548
  %v2550 = vpop.f32.mrb[0].mxu0
  %2551 = vdwg.mxu0
  %v2553 = vsel %vm2206, %v2326, 0
  %v2556 = vsel %vm2206, %v2327, 0
  %v2559 = vsel %vm2206, %v2328, 0
  %v2562 = vsel %vm2206, %v2329, 0
  %v2565 = vsel %vm2206, %v2330, 0
  %v2568 = vsel %vm2206, %v2331, 0
  %v2571 = vsel %vm2206, %v2332, 0
  %v2574 = vsel %vm2206, %v2333, 0
  %2576 = vmatprep.subr.mxu0 0.0
  %2577 = vmatpush1.msra.mxu0 %v2406
  %2578 = vmatprep.subr.mxu0 0.0
  %2579 = vmatpush1.msra.mxu0 %v2407
  %2580 = vmatprep.subr.mxu0 0.0
  %2581 = vmatpush1.msra.mxu0 %v2408
  %2582 = vmatprep.subr.mxu0 0.0
  %2583 = vmatpush1.msra.mxu0 %v2409
  %2584 = vmatprep.subr.mxu0 0.0
  %2585 = vmatpush1.msra.mxu0 %v2410
  %2586 = vmatprep.subr.mxu0 0.0
  %2587 = vmatpush1.msra.mxu0 %v2411
  %2588 = vmatprep.subr.mxu0 0.0
  %2589 = vmatpush1.msra.mxu0 %v2412
  %2590 = vmatprep.subr.mxu0 0.0
  %2591 = vmatpush1.msra.mxu0 %v2413
  %2592 = vmatprep.subr.mxu0 0.0
  %2593 = vmatpush1.msra.mxu0 0.0
  %2594 = vmatprep.subr.mxu0 0.0
  %2595 = vmatpush1.msra.mxu0 0.0
  %2596 = vmatprep.subr.mxu0 0.0
  %2597 = vmatpush1.msra.mxu0 0.0
  %2598 = vmatprep.subr.mxu0 0.0
  %2599 = vmatpush1.msra.mxu0 0.0
  %2600 = vmatprep.subr.mxu0 0.0
  %2601 = vmatpush1.msra.mxu0 0.0
  %2602 = vmatprep.subr.mxu0 0.0
  %2603 = vmatpush1.msra.mxu0 0.0
  %2604 = vmatprep.subr.mxu0 0.0
  %2605 = vmatpush1.msra.mxu0 0.0
  %2606 = vmatprep.subr.mxu0 0.0
  %2607 = vmatpush1.msra.mxu0 0.0
  %2608 = vmatprep.subr.mxu0 0.0
  %2609 = vmatpush1.msra.mxu0 0.0
  %2610 = vmatprep.subr.mxu0 0.0
  %2611 = vmatpush1.msra.mxu0 0.0
  %2612 = vmatprep.subr.mxu0 0.0
  %2613 = vmatpush1.msra.mxu0 0.0
  %2614 = vmatprep.subr.mxu0 0.0
  %2615 = vmatpush1.msra.mxu0 0.0
  %2616 = vmatprep.subr.mxu0 0.0
  %2617 = vmatpush1.msra.mxu0 0.0
  %2618 = vmatprep.subr.mxu0 0.0
  %2619 = vmatpush1.msra.mxu0 0.0
  %2620 = vmatprep.subr.mxu0 0.0
  %2621 = vmatpush1.msra.mxu0 0.0
  %2622 = vmatprep.subr.mxu0 0.0
  %2623 = vmatpush1.msra.mxu0 0.0
  %2624 = vmatprep.subr.mxu0 0.0
  %2625 = vmatpush1.msra.mxu0 0.0
  %2626 = vmatprep.subr.mxu0 0.0
  %2627 = vmatpush1.msra.mxu0 0.0
  %2628 = vmatprep.subr.mxu0 0.0
  %2629 = vmatpush1.msra.mxu0 0.0
  %2630 = vmatprep.subr.mxu0 0.0
  %2631 = vmatpush1.msra.mxu0 0.0
  %2632 = vmatprep.subr.mxu0 0.0
  %2633 = vmatpush1.msra.mxu0 0.0
  %2634 = vmatprep.subr.mxu0 0.0
  %2635 = vmatpush1.msra.mxu0 0.0
  %2636 = vmatprep.subr.mxu0 0.0
  %2637 = vmatpush1.msra.mxu0 0.0
  %2638 = vmatprep.subr.mxu0 0.0
  %2639 = vmatpush1.msra.mxu0 0.0
  %2640 = vmatprep.mubr.f32.mxu0 0.0
  %2641 = vmatmul.mubr.f32.gmra.mrb[0].mxu0 %v2553
  %v2642 = vpop.f32.mrb[0].mxu0
  %v2643 = vadd.f32 %v2514, %v2642
  %v2644 = vpop.f32.mrb[0].mxu0
  %2645 = vmatprep.mubr.f32.mxu0 0.0
  %2646 = vmatmul.mubr.f32.gmra.mrb[0].mxu0 %v2556
  %v2647 = vpop.f32.mrb[0].mxu0
  %v2648 = vadd.f32 %v2519, %v2647
  %v2649 = vpop.f32.mrb[0].mxu0
  %2650 = vmatprep.mubr.f32.mxu0 0.0
  %2651 = vmatmul.mubr.f32.gmra.mrb[0].mxu0 %v2559
  %v2652 = vpop.f32.mrb[0].mxu0
  %v2653 = vadd.f32 %v2524, %v2652
  %v2654 = vpop.f32.mrb[0].mxu0
  %2655 = vmatprep.mubr.f32.mxu0 0.0
  %2656 = vmatmul.mubr.f32.gmra.mrb[0].mxu0 %v2562
  %v2657 = vpop.f32.mrb[0].mxu0
  %v2658 = vadd.f32 %v2529, %v2657
  %v2659 = vpop.f32.mrb[0].mxu0
  %2660 = vmatprep.mubr.f32.mxu0 0.0
  %2661 = vmatmul.mubr.f32.gmra.mrb[0].mxu0 %v2565
  %v2662 = vpop.f32.mrb[0].mxu0
  %v2663 = vadd.f32 %v2534, %v2662
  %v2664 = vpop.f32.mrb[0].mxu0
  %2665 = vmatprep.mubr.f32.mxu0 0.0
  %2666 = vmatmul.mubr.f32.gmra.mrb[0].mxu0 %v2568
  %v2667 = vpop.f32.mrb[0].mxu0
  %v2668 = vadd.f32 %v2539, %v2667
  %v2669 = vpop.f32.mrb[0].mxu0
  %2670 = vmatprep.mubr.f32.mxu0 0.0
  %2671 = vmatmul.mubr.f32.gmra.mrb[0].mxu0 %v2571
  %v2672 = vpop.f32.mrb[0].mxu0
  %v2673 = vadd.f32 %v2544, %v2672
  %v2674 = vpop.f32.mrb[0].mxu0
  %2675 = vmatprep.mubr.f32.mxu0 0.0
  %2676 = vmatmul.mubr.f32.gmra.mrb[0].mxu0 %v2574
  %v2677 = vpop.f32.mrb[0].mxu0
  %v2678 = vadd.f32 %v2549, %v2677
  %v2679 = vpop.f32.mrb[0].mxu0
  %2680 = vdwg.mxu0
  %s2681 = scalar_lea.vmem %s11, 128
  %v2682 = vld [vmem:[%s2681] sm:$0xff]
  %v2683 = vld [vmem:[%s2681 + $0x8] sm:$0xff]
  %v2684 = vld [vmem:[%s2681 + $0x10] sm:$0xff]
  %v2685 = vld [vmem:[%s2681 + $0x18] sm:$0xff]
  %v2686 = vld [vmem:[%s2681 + $0x20] sm:$0xff]
  %v2687 = vld [vmem:[%s2681 + $0x28] sm:$0xff]
  %v2688 = vld [vmem:[%s2681 + $0x30] sm:$0xff]
  %v2689 = vld [vmem:[%s2681 + $0x38] sm:$0xff]
  %v2691 = vsel %vm2206, %v2398, 0
  %v2694 = vsel %vm2206, %v2399, 0
  %v2697 = vsel %vm2206, %v2400, 0
  %v2700 = vsel %vm2206, %v2401, 0
  %v2703 = vsel %vm2206, %v2402, 0
  %v2706 = vsel %vm2206, %v2403, 0
  %v2709 = vsel %vm2206, %v2404, 0
  %v2712 = vsel %vm2206, %v2405, 0
  %2714 = vmatprep.subr.mxu0 0.0
  %2715 = vmatpush1.msra.mxu0 %v2682
  %2716 = vmatprep.subr.mxu0 0.0
  %2717 = vmatpush1.msra.mxu0 %v2683
  %2718 = vmatprep.subr.mxu0 0.0
  %2719 = vmatpush1.msra.mxu0 %v2684
  %2720 = vmatprep.subr.mxu0 0.0
  %2721 = vmatpush1.msra.mxu0 %v2685
  %2722 = vmatprep.subr.mxu0 0.0
  %2723 = vmatpush1.msra.mxu0 %v2686
  %2724 = vmatprep.subr.mxu0 0.0
  %2725 = vmatpush1.msra.mxu0 %v2687
  %2726 = vmatprep.subr.mxu0 0.0
  %2727 = vmatpush1.msra.mxu0 %v2688
  %2728 = vmatprep.subr.mxu0 0.0
  %2729 = vmatpush1.msra.mxu0 %v2689
  %2730 = vmatprep.subr.mxu0 0.0
  %2731 = vmatpush1.msra.mxu0 0.0
  %2732 = vmatprep.subr.mxu0 0.0
  %2733 = vmatpush1.msra.mxu0 0.0
  %2734 = vmatprep.subr.mxu0 0.0
  %2735 = vmatpush1.msra.mxu0 0.0
  %2736 = vmatprep.subr.mxu0 0.0
  %2737 = vmatpush1.msra.mxu0 0.0
  %2738 = vmatprep.subr.mxu0 0.0
  %2739 = vmatpush1.msra.mxu0 0.0
  %2740 = vmatprep.subr.mxu0 0.0
  %2741 = vmatpush1.msra.mxu0 0.0
  %2742 = vmatprep.subr.mxu0 0.0
  %2743 = vmatpush1.msra.mxu0 0.0
  %2744 = vmatprep.subr.mxu0 0.0
  %2745 = vmatpush1.msra.mxu0 0.0
  %2746 = vmatprep.subr.mxu0 0.0
  %2747 = vmatpush1.msra.mxu0 0.0
  %2748 = vmatprep.subr.mxu0 0.0
  %2749 = vmatpush1.msra.mxu0 0.0
  %2750 = vmatprep.subr.mxu0 0.0
  %2751 = vmatpush1.msra.mxu0 0.0
  %2752 = vmatprep.subr.mxu0 0.0
  %2753 = vmatpush1.msra.mxu0 0.0
  %2754 = vmatprep.subr.mxu0 0.0
  %2755 = vmatpush1.msra.mxu0 0.0
  %2756 = vmatprep.subr.mxu0 0.0
  %2757 = vmatpush1.msra.mxu0 0.0
  %2758 = vmatprep.subr.mxu0 0.0
  %2759 = vmatpush1.msra.mxu0 0.0
  %2760 = vmatprep.subr.mxu0 0.0
  %2761 = vmatpush1.msra.mxu0 0.0
  %2762 = vmatprep.subr.mxu0 0.0
  %2763 = vmatpush1.msra.mxu0 0.0
  %2764 = vmatprep.subr.mxu0 0.0
  %2765 = vmatpush1.msra.mxu0 0.0
  %2766 = vmatprep.subr.mxu0 0.0
  %2767 = vmatpush1.msra.mxu0 0.0
  %2768 = vmatprep.subr.mxu0 0.0
  %2769 = vmatpush1.msra.mxu0 0.0
  %2770 = vmatprep.subr.mxu0 0.0
  %2771 = vmatpush1.msra.mxu0 0.0
  %2772 = vmatprep.subr.mxu0 0.0
  %2773 = vmatpush1.msra.mxu0 0.0
  %2774 = vmatprep.subr.mxu0 0.0
  %2775 = vmatpush1.msra.mxu0 0.0
  %2776 = vmatprep.subr.mxu0 0.0
  %2777 = vmatpush1.msra.mxu0 0.0
  %2778 = vmatprep.mubr.f32.mxu0 0.0
  %2779 = vmatmul.mubr.f32.gmra.mrb[0].mxu0 %v2691
  %v2780 = vpop.f32.mrb[0].mxu0
  %v2781 = vadd.f32 0.0, %v2780
  %v2782 = vpop.f32.mrb[0].mxu0
  %2783 = vmatprep.mubr.f32.mxu0 0.0
  %2784 = vmatmul.mubr.f32.gmra.mrb[0].mxu0 %v2694
  %v2785 = vpop.f32.mrb[0].mxu0
  %v2786 = vadd.f32 0.0, %v2785
  %v2787 = vpop.f32.mrb[0].mxu0
  %2788 = vmatprep.mubr.f32.mxu0 0.0
  %2789 = vmatmul.mubr.f32.gmra.mrb[0].mxu0 %v2697
  %v2790 = vpop.f32.mrb[0].mxu0
  %v2791 = vadd.f32 0.0, %v2790
  %v2792 = vpop.f32.mrb[0].mxu0
  %2793 = vmatprep.mubr.f32.mxu0 0.0
  %2794 = vmatmul.mubr.f32.gmra.mrb[0].mxu0 %v2700
  %v2795 = vpop.f32.mrb[0].mxu0
  %v2796 = vadd.f32 0.0, %v2795
  %v2797 = vpop.f32.mrb[0].mxu0
  %2798 = vmatprep.mubr.f32.mxu0 0.0
  %2799 = vmatmul.mubr.f32.gmra.mrb[0].mxu0 %v2703
  %v2800 = vpop.f32.mrb[0].mxu0
  %v2801 = vadd.f32 0.0, %v2800
  %v2802 = vpop.f32.mrb[0].mxu0
  %2803 = vmatprep.mubr.f32.mxu0 0.0
  %2804 = vmatmul.mubr.f32.gmra.mrb[0].mxu0 %v2706
  %v2805 = vpop.f32.mrb[0].mxu0
  %v2806 = vadd.f32 0.0, %v2805
  %v2807 = vpop.f32.mrb[0].mxu0
  %2808 = vmatprep.mubr.f32.mxu0 0.0
  %2809 = vmatmul.mubr.f32.gmra.mrb[0].mxu0 %v2709
  %v2810 = vpop.f32.mrb[0].mxu0
  %v2811 = vadd.f32 0.0, %v2810
  %v2812 = vpop.f32.mrb[0].mxu0
  %2813 = vmatprep.mubr.f32.mxu0 0.0
  %2814 = vmatmul.mubr.f32.gmra.mrb[0].mxu0 %v2712
  %v2815 = vpop.f32.mrb[0].mxu0
  %v2816 = vadd.f32 0.0, %v2815
  %v2817 = vpop.f32.mrb[0].mxu0
  %2818 = vdwg.mxu0
  %v2819 = vadd.f32 %v2643, %v2781
  %v2820 = vadd.f32 %v2648, %v2786
  %v2821 = vadd.f32 %v2653, %v2791
  %v2822 = vadd.f32 %v2658, %v2796
  %v2823 = vadd.f32 %v2663, %v2801
  %v2824 = vadd.f32 %v2668, %v2806
  %v2825 = vadd.f32 %v2673, %v2811
  %v2826 = vadd.f32 %v2678, %v2816
  %v2827 = vld [vmem:[%s12] sm:$0x1]
  %v2829 = vlaneseq
  %v2830 = vshrl.u32 %v2829, 7
  %v2831 = vsub.s32 0, %v2830
  %v2832 = vrot.slane %v2827, %v2831
  %v2834 = vmul.f32 %v2819, %v2832
  %v2835 = vmul.f32 %v2820, %v2832
  %v2836 = vmul.f32 %v2821, %v2832
  %v2837 = vmul.f32 %v2822, %v2832
  %v2838 = vmul.f32 %v2823, %v2832
  %v2839 = vmul.f32 %v2824, %v2832
  %v2840 = vmul.f32 %v2825, %v2832
  %v2841 = vmul.f32 %v2826, %v2832
  %v2842 = vld [vmem:[%s13] sm:$0x1]
  %v2844 = vlaneseq
  %v2845 = vshrl.u32 %v2844, 7
  %v2846 = vsub.s32 0, %v2845
  %v2847 = vrot.slane %v2842, %v2846
  %v2849 = vadd.f32 %v2834, %v2847
  %v2850 = vadd.f32 %v2835, %v2847
  %v2851 = vadd.f32 %v2836, %v2847
  %v2852 = vadd.f32 %v2837, %v2847
  %v2853 = vadd.f32 %v2838, %v2847
  %v2854 = vadd.f32 %v2839, %v2847
  %v2855 = vadd.f32 %v2840, %v2847
  %v2856 = vadd.f32 %v2841, %v2847
  %v2857 = vmax.f32 %v2849, 0.0
  %v2858 = vmax.f32 %v2850, 0.0
  %v2859 = vmax.f32 %v2851, 0.0
  %v2860 = vmax.f32 %v2852, 0.0
  %v2861 = vmax.f32 %v2853, 0.0
  %v2862 = vmax.f32 %v2854, 0.0
  %v2863 = vmax.f32 %v2855, 0.0
  %v2864 = vmax.f32 %v2856, 0.0
  %2865 = vst [vmem:[#allocation4] sm:$0xff] %v2857
  %2866 = vst [vmem:[#allocation4 + $0x8] sm:$0xff] %v2858
  %2867 = vst [vmem:[#allocation4 + $0x10] sm:$0xff] %v2859
  %2868 = vst [vmem:[#allocation4 + $0x18] sm:$0xff] %v2860
  %2869 = vst [vmem:[#allocation4 + $0x20] sm:$0xff] %v2861
  %2870 = vst [vmem:[#allocation4 + $0x28] sm:$0xff] %v2862
  %2871 = vst [vmem:[#allocation4 + $0x30] sm:$0xff] %v2863
  %2872 = vst [vmem:[#allocation4 + $0x38] sm:$0xff] %v2864
  %v2873 = vld [vmem:[#allocation4] ss:$2 sm:$0xff]
  %s2874 = scalar_lea.vmem [#allocation4], 16
  %v2875 = vld [vmem:[%s2874] ss:$2 sm:$0xff]
  %s2876 = scalar_lea.vmem [#allocation4], 32
  %v2877 = vld [vmem:[%s2876] ss:$2 sm:$0xff]
  %s2878 = scalar_lea.vmem [#allocation4], 48
  %v2879 = vld [vmem:[%s2878] ss:$2 sm:$0xff]
  %s2880 = scalar_lea.vmem [#allocation4], 1
  %v2881 = vld [vmem:[%s2880] ss:$2 sm:$0xff]
  %s2882 = scalar_lea.vmem [#allocation4], 17
  %v2883 = vld [vmem:[%s2882] ss:$2 sm:$0xff]
  %s2884 = scalar_lea.vmem [#allocation4], 33
  %v2885 = vld [vmem:[%s2884] ss:$2 sm:$0xff]
  %s2886 = scalar_lea.vmem [#allocation4], 49
  %v2887 = vld [vmem:[%s2886] ss:$2 sm:$0xff]
  %v2888 = vmax.f32 %v2873, %v2881
  %v2889 = vmax.f32 %v2875, %v2883
  %v2890 = vmax.f32 %v2877, %v2885
  %v2891 = vmax.f32 %v2879, %v2887
  %2892 = vst [vmem:[#allocation5] sm:$0xff] %v2888
  %2893 = vst [vmem:[#allocation5 + $0x8] sm:$0xff] %v2889
  %2894 = vst [vmem:[#allocation5 + $0x10] sm:$0xff] %v2890
  %2895 = vst [vmem:[#allocation5 + $0x18] sm:$0xff] %v2891
  %v2896 = vld [vmem:[#allocation5] ss:$8 sm:$0xf]
  %v2897 = vld [vmem:[%s16] sm:$0xff]
  %v2898 = vld [vmem:[%s16 + $0x8] sm:$0xff]
  %v2899 = vld [vmem:[%s16 + $0x10] sm:$0xff]
  %v2900 = vld [vmem:[%s16 + $0x18] sm:$0xff]
  %v2901 = vld [vmem:[%s16 + $0x20] sm:$0xff]
  %v2902 = vld [vmem:[%s16 + $0x28] sm:$0xff]
  %v2903 = vld [vmem:[%s16 + $0x30] sm:$0xff]
  %v2904 = vld [vmem:[%s16 + $0x38] sm:$0xff]
  %v2905 = vld [vmem:[%s16 + $0x40] sm:$0xff]
  %v2906 = vld [vmem:[%s16 + $0x48] sm:$0xff]
  %v2907 = vld [vmem:[%s16 + $0x50] sm:$0xff]
  %v2908 = vld [vmem:[%s16 + $0x58] sm:$0xff]
  %v2909 = vld [vmem:[%s16 + $0x60] sm:$0xff]
  %v2910 = vld [vmem:[%s16 + $0x68] sm:$0xff]
  %v2911 = vld [vmem:[%s16 + $0x70] sm:$0xff]
  %v2912 = vld [vmem:[%s16 + $0x78] sm:$0xff]
  %s2913 = scalar_lea.vmem [#allocation5], 1
  %v2914 = vld [vmem:[%s2913] ss:$8 sm:$0xf]
  %s2915 = scalar_lea.vmem %s16, 128
  %v2916 = vld [vmem:[%s2915] sm:$0xff]
  %v2917 = vld [vmem:[%s2915 + $0x8] sm:$0xff]
  %v2918 = vld [vmem:[%s2915 + $0x10] sm:$0xff]
  %v2919 = vld [vmem:[%s2915 + $0x18] sm:$0xff]
  %v2920 = vld [vmem:[%s2915 + $0x20] sm:$0xff]
  %v2921 = vld [vmem:[%s2915 + $0x28] sm:$0xff]
  %v2922 = vld [vmem:[%s2915 + $0x30] sm:$0xff]
  %v2923 = vld [vmem:[%s2915 + $0x38] sm:$0xff]
  %v2924 = vld [vmem:[%s2915 + $0x40] sm:$0xff]
  %v2925 = vld [vmem:[%s2915 + $0x48] sm:$0xff]
  %v2926 = vld [vmem:[%s2915 + $0x50] sm:$0xff]
  %v2927 = vld [vmem:[%s2915 + $0x58] sm:$0xff]
  %v2928 = vld [vmem:[%s2915 + $0x60] sm:$0xff]
  %v2929 = vld [vmem:[%s2915 + $0x68] sm:$0xff]
  %v2930 = vld [vmem:[%s2915 + $0x70] sm:$0xff]
  %v2931 = vld [vmem:[%s2915 + $0x78] sm:$0xff]
  %2932 = vmatprep.subr.mxu0 0.0
  %2933 = vmatpush1.msra.mxu0 %v2916
  %2934 = vmatprep.subr.mxu0 0.0
  %2935 = vmatpush1.msra.mxu0 %v2917
  %2936 = vmatprep.subr.mxu0 0.0
  %2937 = vmatpush1.msra.mxu0 %v2918
  %2938 = vmatprep.subr.mxu0 0.0
  %2939 = vmatpush1.msra.mxu0 %v2919
  %2940 = vmatprep.subr.mxu0 0.0
  %2941 = vmatpush1.msra.mxu0 %v2920
  %2942 = vmatprep.subr.mxu0 0.0
  %2943 = vmatpush1.msra.mxu0 %v2921
  %2944 = vmatprep.subr.mxu0 0.0
  %2945 = vmatpush1.msra.mxu0 %v2922
  %2946 = vmatprep.subr.mxu0 0.0
  %2947 = vmatpush1.msra.mxu0 %v2923
  %2948 = vmatprep.subr.mxu0 0.0
  %2949 = vmatpush1.msra.mxu0 %v2924
  %2950 = vmatprep.subr.mxu0 0.0
  %2951 = vmatpush1.msra.mxu0 %v2925
  %2952 = vmatprep.subr.mxu0 0.0
  %2953 = vmatpush1.msra.mxu0 %v2926
  %2954 = vmatprep.subr.mxu0 0.0
  %2955 = vmatpush1.msra.mxu0 %v2927
  %2956 = vmatprep.subr.mxu0 0.0
  %2957 = vmatpush1.msra.mxu0 %v2928
  %2958 = vmatprep.subr.mxu0 0.0
  %2959 = vmatpush1.msra.mxu0 %v2929
  %2960 = vmatprep.subr.mxu0 0.0
  %2961 = vmatpush1.msra.mxu0 %v2930
  %2962 = vmatprep.subr.mxu0 0.0
  %2963 = vmatpush1.msra.mxu0 %v2931
  %2964 = vmatprep.subr.mxu0 0.0
  %2965 = vmatpush1.msra.mxu0 0.0
  %2966 = vmatprep.subr.mxu0 0.0
  %2967 = vmatpush1.msra.mxu0 0.0
  %2968 = vmatprep.subr.mxu0 0.0
  %2969 = vmatpush1.msra.mxu0 0.0
  %2970 = vmatprep.subr.mxu0 0.0
  %2971 = vmatpush1.msra.mxu0 0.0
  %2972 = vmatprep.subr.mxu0 0.0
  %2973 = vmatpush1.msra.mxu0 0.0
  %2974 = vmatprep.subr.mxu0 0.0
  %2975 = vmatpush1.msra.mxu0 0.0
  %2976 = vmatprep.subr.mxu0 0.0
  %2977 = vmatpush1.msra.mxu0 0.0
  %2978 = vmatprep.subr.mxu0 0.0
  %2979 = vmatpush1.msra.mxu0 0.0
  %2980 = vmatprep.subr.mxu0 0.0
  %2981 = vmatpush1.msra.mxu0 0.0
  %2982 = vmatprep.subr.mxu0 0.0
  %2983 = vmatpush1.msra.mxu0 0.0
  %2984 = vmatprep.subr.mxu0 0.0
  %2985 = vmatpush1.msra.mxu0 0.0
  %2986 = vmatprep.subr.mxu0 0.0
  %2987 = vmatpush1.msra.mxu0 0.0
  %2988 = vmatprep.subr.mxu0 0.0
  %2989 = vmatpush1.msra.mxu0 0.0
  %2990 = vmatprep.subr.mxu0 0.0
  %2991 = vmatpush1.msra.mxu0 0.0
  %2992 = vmatprep.subr.mxu0 0.0
  %2993 = vmatpush1.msra.mxu0 0.0
  %2994 = vmatprep.subr.mxu0 0.0
  %2995 = vmatpush1.msra.mxu0 0.0
  %2996 = vmatprep.mubr.f32.mxu0 0.0
  %2997 = vmatmul.mubr.f32.gmra.mrb[0].mxu0 %v2914
  %v2998 = vpop.f32.mrb[0].mxu0
  %v2999 = vadd.f32 0.0, %v2998
  %v3000 = vpop.f32.mrb[0].mxu0
  %3001 = vdwg.mxu0
  %3002 = vmatprep.subr.mxu0 0.0
  %3003 = vmatpush1.msra.mxu0 %v2897
  %3004 = vmatprep.subr.mxu0 0.0
  %3005 = vmatpush1.msra.mxu0 %v2898
  %3006 = vmatprep.subr.mxu0 0.0
  %3007 = vmatpush1.msra.mxu0 %v2899
  %3008 = vmatprep.subr.mxu0 0.0
  %3009 = vmatpush1.msra.mxu0 %v2900
  %3010 = vmatprep.subr.mxu0 0.0
  %3011 = vmatpush1.msra.mxu0 %v2901
  %3012 = vmatprep.subr.mxu0 0.0
  %3013 = vmatpush1.msra.mxu0 %v2902
  %3014 = vmatprep.subr.mxu0 0.0
  %3015 = vmatpush1.msra.mxu0 %v2903
  %3016 = vmatprep.subr.mxu0 0.0
  %3017 = vmatpush1.msra.mxu0 %v2904
  %3018 = vmatprep.subr.mxu0 0.0
  %3019 = vmatpush1.msra.mxu0 %v2905
  %3020 = vmatprep.subr.mxu0 0.0
  %3021 = vmatpush1.msra.mxu0 %v2906
  %3022 = vmatprep.subr.mxu0 0.0
  %3023 = vmatpush1.msra.mxu0 %v2907
  %3024 = vmatprep.subr.mxu0 0.0
  %3025 = vmatpush1.msra.mxu0 %v2908
  %3026 = vmatprep.subr.mxu0 0.0
  %3027 = vmatpush1.msra.mxu0 %v2909
  %3028 = vmatprep.subr.mxu0 0.0
  %3029 = vmatpush1.msra.mxu0 %v2910
  %3030 = vmatprep.subr.mxu0 0.0
  %3031 = vmatpush1.msra.mxu0 %v2911
  %3032 = vmatprep.subr.mxu0 0.0
  %3033 = vmatpush1.msra.mxu0 %v2912
  %3034 = vmatprep.subr.mxu0 0.0
  %3035 = vmatpush1.msra.mxu0 0.0
  %3036 = vmatprep.subr.mxu0 0.0
  %3037 = vmatpush1.msra.mxu0 0.0
  %3038 = vmatprep.subr.mxu0 0.0
  %3039 = vmatpush1.msra.mxu0 0.0
  %3040 = vmatprep.subr.mxu0 0.0
  %3041 = vmatpush1.msra.mxu0 0.0
  %3042 = vmatprep.subr.mxu0 0.0
  %3043 = vmatpush1.msra.mxu0 0.0
  %3044 = vmatprep.subr.mxu0 0.0
  %3045 = vmatpush1.msra.mxu0 0.0
  %3046 = vmatprep.subr.mxu0 0.0
  %3047 = vmatpush1.msra.mxu0 0.0
  %3048 = vmatprep.subr.mxu0 0.0
  %3049 = vmatpush1.msra.mxu0 0.0
  %3050 = vmatprep.subr.mxu0 0.0
  %3051 = vmatpush1.msra.mxu0 0.0
  %3052 = vmatprep.subr.mxu0 0.0
  %3053 = vmatpush1.msra.mxu0 0.0
  %3054 = vmatprep.subr.mxu0 0.0
  %3055 = vmatpush1.msra.mxu0 0.0
  %3056 = vmatprep.subr.mxu0 0.0
  %3057 = vmatpush1.msra.mxu0 0.0
  %3058 = vmatprep.subr.mxu0 0.0
  %3059 = vmatpush1.msra.mxu0 0.0
  %3060 = vmatprep.subr.mxu0 0.0
  %3061 = vmatpush1.msra.mxu0 0.0
  %3062 = vmatprep.subr.mxu0 0.0
  %3063 = vmatpush1.msra.mxu0 0.0
  %3064 = vmatprep.subr.mxu0 0.0
  %3065 = vmatpush1.msra.mxu0 0.0
  %3066 = vmatprep.mubr.f32.mxu0 0.0
  %3067 = vmatmul.mubr.f32.gmra.mrb[0].mxu0 %v2896
  %v3068 = vpop.f32.mrb[0].mxu0
  %v3069 = vadd.f32 %v2999, %v3068
  %v3070 = vpop.f32.mrb[0].mxu0
  %3071 = vdwg.mxu0
  %s3072 = scalar_lea.vmem [#allocation5], 2
  %v3073 = vld [vmem:[%s3072] ss:$8 sm:$0xf]
  %s3074 = scalar_lea.vmem %s16, 256
  %v3075 = vld [vmem:[%s3074] sm:$0xff]
  %v3076 = vld [vmem:[%s3074 + $0x8] sm:$0xff]
  %v3077 = vld [vmem:[%s3074 + $0x10] sm:$0xff]
  %v3078 = vld [vmem:[%s3074 + $0x18] sm:$0xff]
  %v3079 = vld [vmem:[%s3074 + $0x20] sm:$0xff]
  %v3080 = vld [vmem:[%s3074 + $0x28] sm:$0xff]
  %v3081 = vld [vmem:[%s3074 + $0x30] sm:$0xff]
  %v3082 = vld [vmem:[%s3074 + $0x38] sm:$0xff]
  %v3083 = vld [vmem:[%s3074 + $0x40] sm:$0xff]
  %v3084 = vld [vmem:[%s3074 + $0x48] sm:$0xff]
  %v3085 = vld [vmem:[%s3074 + $0x50] sm:$0xff]
  %v3086 = vld [vmem:[%s3074 + $0x58] sm:$0xff]
  %v3087 = vld [vmem:[%s3074 + $0x60] sm:$0xff]
  %v3088 = vld [vmem:[%s3074 + $0x68] sm:$0xff]
  %v3089 = vld [vmem:[%s3074 + $0x70] sm:$0xff]
  %v3090 = vld [vmem:[%s3074 + $0x78] sm:$0xff]
  %3091 = vmatprep.subr.mxu0 0.0
  %3092 = vmatpush1.msra.mxu0 %v3075
  %3093 = vmatprep.subr.mxu0 0.0
  %3094 = vmatpush1.msra.mxu0 %v3076
  %3095 = vmatprep.subr.mxu0 0.0
  %3096 = vmatpush1.msra.mxu0 %v3077
  %3097 = vmatprep.subr.mxu0 0.0
  %3098 = vmatpush1.msra.mxu0 %v3078
  %3099 = vmatprep.subr.mxu0 0.0
  %3100 = vmatpush1.msra.mxu0 %v3079
  %3101 = vmatprep.subr.mxu0 0.0
  %3102 = vmatpush1.msra.mxu0 %v3080
  %3103 = vmatprep.subr.mxu0 0.0
  %3104 = vmatpush1.msra.mxu0 %v3081
  %3105 = vmatprep.subr.mxu0 0.0
  %3106 = vmatpush1.msra.mxu0 %v3082
  %3107 = vmatprep.subr.mxu0 0.0
  %3108 = vmatpush1.msra.mxu0 %v3083
  %3109 = vmatprep.subr.mxu0 0.0
  %3110 = vmatpush1.msra.mxu0 %v3084
  %3111 = vmatprep.subr.mxu0 0.0
  %3112 = vmatpush1.msra.mxu0 %v3085
  %3113 = vmatprep.subr.mxu0 0.0
  %3114 = vmatpush1.msra.mxu0 %v3086
  %3115 = vmatprep.subr.mxu0 0.0
  %3116 = vmatpush1.msra.mxu0 %v3087
  %3117 = vmatprep.subr.mxu0 0.0
  %3118 = vmatpush1.msra.mxu0 %v3088
  %3119 = vmatprep.subr.mxu0 0.0
  %3120 = vmatpush1.msra.mxu0 %v3089
  %3121 = vmatprep.subr.mxu0 0.0
  %3122 = vmatpush1.msra.mxu0 %v3090
  %3123 = vmatprep.subr.mxu0 0.0
  %3124 = vmatpush1.msra.mxu0 0.0
  %3125 = vmatprep.subr.mxu0 0.0
  %3126 = vmatpush1.msra.mxu0 0.0
  %3127 = vmatprep.subr.mxu0 0.0
  %3128 = vmatpush1.msra.mxu0 0.0
  %3129 = vmatprep.subr.mxu0 0.0
  %3130 = vmatpush1.msra.mxu0 0.0
  %3131 = vmatprep.subr.mxu0 0.0
  %3132 = vmatpush1.msra.mxu0 0.0
  %3133 = vmatprep.subr.mxu0 0.0
  %3134 = vmatpush1.msra.mxu0 0.0
  %3135 = vmatprep.subr.mxu0 0.0
  %3136 = vmatpush1.msra.mxu0 0.0
  %3137 = vmatprep.subr.mxu0 0.0
  %3138 = vmatpush1.msra.mxu0 0.0
  %3139 = vmatprep.subr.mxu0 0.0
  %3140 = vmatpush1.msra.mxu0 0.0
  %3141 = vmatprep.subr.mxu0 0.0
  %3142 = vmatpush1.msra.mxu0 0.0
  %3143 = vmatprep.subr.mxu0 0.0
  %3144 = vmatpush1.msra.mxu0 0.0
  %3145 = vmatprep.subr.mxu0 0.0
  %3146 = vmatpush1.msra.mxu0 0.0
  %3147 = vmatprep.subr.mxu0 0.0
  %3148 = vmatpush1.msra.mxu0 0.0
  %3149 = vmatprep.subr.mxu0 0.0
  %3150 = vmatpush1.msra.mxu0 0.0
  %3151 = vmatprep.subr.mxu0 0.0
  %3152 = vmatpush1.msra.mxu0 0.0
  %3153 = vmatprep.subr.mxu0 0.0
  %3154 = vmatpush1.msra.mxu0 0.0
  %3155 = vmatprep.mubr.f32.mxu0 0.0
  %3156 = vmatmul.mubr.f32.gmra.mrb[0].mxu0 %v3073
  %v3157 = vpop.f32.mrb[0].mxu0
  %v3158 = vadd.f32 0.0, %v3157
  %v3159 = vpop.f32.mrb[0].mxu0
  %3160 = vdwg.mxu0
  %v3161 = vadd.f32 %v3069, %v3158
  %s3162 = scalar_lea.vmem [#allocation5], 3
  %v3163 = vld [vmem:[%s3162] ss:$8 sm:$0xf]
  %s3164 = scalar_lea.vmem %s16, 384
  %v3165 = vld [vmem:[%s3164] sm:$0xff]
  %v3166 = vld [vmem:[%s3164 + $0x8] sm:$0xff]
  %v3167 = vld [vmem:[%s3164 + $0x10] sm:$0xff]
  %v3168 = vld [vmem:[%s3164 + $0x18] sm:$0xff]
  %v3169 = vld [vmem:[%s3164 + $0x20] sm:$0xff]
  %v3170 = vld [vmem:[%s3164 + $0x28] sm:$0xff]
  %v3171 = vld [vmem:[%s3164 + $0x30] sm:$0xff]
  %v3172 = vld [vmem:[%s3164 + $0x38] sm:$0xff]
  %v3173 = vld [vmem:[%s3164 + $0x40] sm:$0xff]
  %v3174 = vld [vmem:[%s3164 + $0x48] sm:$0xff]
  %v3175 = vld [vmem:[%s3164 + $0x50] sm:$0xff]
  %v3176 = vld [vmem:[%s3164 + $0x58] sm:$0xff]
  %v3177 = vld [vmem:[%s3164 + $0x60] sm:$0xff]
  %v3178 = vld [vmem:[%s3164 + $0x68] sm:$0xff]
  %v3179 = vld [vmem:[%s3164 + $0x70] sm:$0xff]
  %v3180 = vld [vmem:[%s3164 + $0x78] sm:$0xff]
  %3181 = vmatprep.subr.mxu0 0.0
  %3182 = vmatpush1.msra.mxu0 %v3165
  %3183 = vmatprep.subr.mxu0 0.0
  %3184 = vmatpush1.msra.mxu0 %v3166
  %3185 = vmatprep.subr.mxu0 0.0
  %3186 = vmatpush1.msra.mxu0 %v3167
  %3187 = vmatprep.subr.mxu0 0.0
  %3188 = vmatpush1.msra.mxu0 %v3168
  %3189 = vmatprep.subr.mxu0 0.0
  %3190 = vmatpush1.msra.mxu0 %v3169
  %3191 = vmatprep.subr.mxu0 0.0
  %3192 = vmatpush1.msra.mxu0 %v3170
  %3193 = vmatprep.subr.mxu0 0.0
  %3194 = vmatpush1.msra.mxu0 %v3171
  %3195 = vmatprep.subr.mxu0 0.0
  %3196 = vmatpush1.msra.mxu0 %v3172
  %3197 = vmatprep.subr.mxu0 0.0
  %3198 = vmatpush1.msra.mxu0 %v3173
  %3199 = vmatprep.subr.mxu0 0.0
  %3200 = vmatpush1.msra.mxu0 %v3174
  %3201 = vmatprep.subr.mxu0 0.0
  %3202 = vmatpush1.msra.mxu0 %v3175
  %3203 = vmatprep.subr.mxu0 0.0
  %3204 = vmatpush1.msra.mxu0 %v3176
  %3205 = vmatprep.subr.mxu0 0.0
  %3206 = vmatpush1.msra.mxu0 %v3177
  %3207 = vmatprep.subr.mxu0 0.0
  %3208 = vmatpush1.msra.mxu0 %v3178
  %3209 = vmatprep.subr.mxu0 0.0
  %3210 = vmatpush1.msra.mxu0 %v3179
  %3211 = vmatprep.subr.mxu0 0.0
  %3212 = vmatpush1.msra.mxu0 %v3180
  %3213 = vmatprep.subr.mxu0 0.0
  %3214 = vmatpush1.msra.mxu0 0.0
  %3215 = vmatprep.subr.mxu0 0.0
  %3216 = vmatpush1.msra.mxu0 0.0
  %3217 = vmatprep.subr.mxu0 0.0
  %3218 = vmatpush1.msra.mxu0 0.0
  %3219 = vmatprep.subr.mxu0 0.0
  %3220 = vmatpush1.msra.mxu0 0.0
  %3221 = vmatprep.subr.mxu0 0.0
  %3222 = vmatpush1.msra.mxu0 0.0
  %3223 = vmatprep.subr.mxu0 0.0
  %3224 = vmatpush1.msra.mxu0 0.0
  %3225 = vmatprep.subr.mxu0 0.0
  %3226 = vmatpush1.msra.mxu0 0.0
  %3227 = vmatprep.subr.mxu0 0.0
  %3228 = vmatpush1.msra.mxu0 0.0
  %3229 = vmatprep.subr.mxu0 0.0
  %3230 = vmatpush1.msra.mxu0 0.0
  %3231 = vmatprep.subr.mxu0 0.0
  %3232 = vmatpush1.msra.mxu0 0.0
  %3233 = vmatprep.subr.mxu0 0.0
  %3234 = vmatpush1.msra.mxu0 0.0
  %3235 = vmatprep.subr.mxu0 0.0
  %3236 = vmatpush1.msra.mxu0 0.0
  %3237 = vmatprep.subr.mxu0 0.0
  %3238 = vmatpush1.msra.mxu0 0.0
  %3239 = vmatprep.subr.mxu0 0.0
  %3240 = vmatpush1.msra.mxu0 0.0
  %3241 = vmatprep.subr.mxu0 0.0
  %3242 = vmatpush1.msra.mxu0 0.0
  %3243 = vmatprep.subr.mxu0 0.0
  %3244 = vmatpush1.msra.mxu0 0.0
  %3245 = vmatprep.mubr.f32.mxu0 0.0
  %3246 = vmatmul.mubr.f32.gmra.mrb[0].mxu0 %v3163
  %v3247 = vpop.f32.mrb[0].mxu0
  %v3248 = vadd.f32 0.0, %v3247
  %v3249 = vpop.f32.mrb[0].mxu0
  %3250 = vdwg.mxu0
  %v3251 = vadd.f32 %v3161, %v3248
  %s3252 = scalar_lea.vmem [#allocation5], 4
  %v3253 = vld [vmem:[%s3252] ss:$8 sm:$0xf]
  %s3254 = scalar_lea.vmem %s16, 512
  %v3255 = vld [vmem:[%s3254] sm:$0xff]
  %v3256 = vld [vmem:[%s3254 + $0x8] sm:$0xff]
  %v3257 = vld [vmem:[%s3254 + $0x10] sm:$0xff]
  %v3258 = vld [vmem:[%s3254 + $0x18] sm:$0xff]
  %v3259 = vld [vmem:[%s3254 + $0x20] sm:$0xff]
  %v3260 = vld [vmem:[%s3254 + $0x28] sm:$0xff]
  %v3261 = vld [vmem:[%s3254 + $0x30] sm:$0xff]
  %v3262 = vld [vmem:[%s3254 + $0x38] sm:$0xff]
  %v3263 = vld [vmem:[%s3254 + $0x40] sm:$0xff]
  %v3264 = vld [vmem:[%s3254 + $0x48] sm:$0xff]
  %v3265 = vld [vmem:[%s3254 + $0x50] sm:$0xff]
  %v3266 = vld [vmem:[%s3254 + $0x58] sm:$0xff]
  %v3267 = vld [vmem:[%s3254 + $0x60] sm:$0xff]
  %v3268 = vld [vmem:[%s3254 + $0x68] sm:$0xff]
  %v3269 = vld [vmem:[%s3254 + $0x70] sm:$0xff]
  %v3270 = vld [vmem:[%s3254 + $0x78] sm:$0xff]
  %3271 = vmatprep.subr.mxu0 0.0
  %3272 = vmatpush1.msra.mxu0 %v3255
  %3273 = vmatprep.subr.mxu0 0.0
  %3274 = vmatpush1.msra.mxu0 %v3256
  %3275 = vmatprep.subr.mxu0 0.0
  %3276 = vmatpush1.msra.mxu0 %v3257
  %3277 = vmatprep.subr.mxu0 0.0
  %3278 = vmatpush1.msra.mxu0 %v3258
  %3279 = vmatprep.subr.mxu0 0.0
  %3280 = vmatpush1.msra.mxu0 %v3259
  %3281 = vmatprep.subr.mxu0 0.0
  %3282 = vmatpush1.msra.mxu0 %v3260
  %3283 = vmatprep.subr.mxu0 0.0
  %3284 = vmatpush1.msra.mxu0 %v3261
  %3285 = vmatprep.subr.mxu0 0.0
  %3286 = vmatpush1.msra.mxu0 %v3262
  %3287 = vmatprep.subr.mxu0 0.0
  %3288 = vmatpush1.msra.mxu0 %v3263
  %3289 = vmatprep.subr.mxu0 0.0
  %3290 = vmatpush1.msra.mxu0 %v3264
  %3291 = vmatprep.subr.mxu0 0.0
  %3292 = vmatpush1.msra.mxu0 %v3265
  %3293 = vmatprep.subr.mxu0 0.0
  %3294 = vmatpush1.msra.mxu0 %v3266
  %3295 = vmatprep.subr.mxu0 0.0
  %3296 = vmatpush1.msra.mxu0 %v3267
  %3297 = vmatprep.subr.mxu0 0.0
  %3298 = vmatpush1.msra.mxu0 %v3268
  %3299 = vmatprep.subr.mxu0 0.0
  %3300 = vmatpush1.msra.mxu0 %v3269
  %3301 = vmatprep.subr.mxu0 0.0
  %3302 = vmatpush1.msra.mxu0 %v3270
  %3303 = vmatprep.subr.mxu0 0.0
  %3304 = vmatpush1.msra.mxu0 0.0
  %3305 = vmatprep.subr.mxu0 0.0
  %3306 = vmatpush1.msra.mxu0 0.0
  %3307 = vmatprep.subr.mxu0 0.0
  %3308 = vmatpush1.msra.mxu0 0.0
  %3309 = vmatprep.subr.mxu0 0.0
  %3310 = vmatpush1.msra.mxu0 0.0
  %3311 = vmatprep.subr.mxu0 0.0
  %3312 = vmatpush1.msra.mxu0 0.0
  %3313 = vmatprep.subr.mxu0 0.0
  %3314 = vmatpush1.msra.mxu0 0.0
  %3315 = vmatprep.subr.mxu0 0.0
  %3316 = vmatpush1.msra.mxu0 0.0
  %3317 = vmatprep.subr.mxu0 0.0
  %3318 = vmatpush1.msra.mxu0 0.0
  %3319 = vmatprep.subr.mxu0 0.0
  %3320 = vmatpush1.msra.mxu0 0.0
  %3321 = vmatprep.subr.mxu0 0.0
  %3322 = vmatpush1.msra.mxu0 0.0
  %3323 = vmatprep.subr.mxu0 0.0
  %3324 = vmatpush1.msra.mxu0 0.0
  %3325 = vmatprep.subr.mxu0 0.0
  %3326 = vmatpush1.msra.mxu0 0.0
  %3327 = vmatprep.subr.mxu0 0.0
  %3328 = vmatpush1.msra.mxu0 0.0
  %3329 = vmatprep.subr.mxu0 0.0
  %3330 = vmatpush1.msra.mxu0 0.0
  %3331 = vmatprep.subr.mxu0 0.0
  %3332 = vmatpush1.msra.mxu0 0.0
  %3333 = vmatprep.subr.mxu0 0.0
  %3334 = vmatpush1.msra.mxu0 0.0
  %3335 = vmatprep.mubr.f32.mxu0 0.0
  %3336 = vmatmul.mubr.f32.gmra.mrb[0].mxu0 %v3253
  %v3337 = vpop.f32.mrb[0].mxu0
  %v3338 = vadd.f32 0.0, %v3337
  %v3339 = vpop.f32.mrb[0].mxu0
  %3340 = vdwg.mxu0
  %v3341 = vadd.f32 %v3251, %v3338
  %s3342 = scalar_lea.vmem [#allocation5], 5
  %v3343 = vld [vmem:[%s3342] ss:$8 sm:$0xf]
  %s3344 = scalar_lea.vmem %s16, 640
  %v3345 = vld [vmem:[%s3344] sm:$0xff]
  %v3346 = vld [vmem:[%s3344 + $0x8] sm:$0xff]
  %v3347 = vld [vmem:[%s3344 + $0x10] sm:$0xff]
  %v3348 = vld [vmem:[%s3344 + $0x18] sm:$0xff]
  %v3349 = vld [vmem:[%s3344 + $0x20] sm:$0xff]
  %v3350 = vld [vmem:[%s3344 + $0x28] sm:$0xff]
  %v3351 = vld [vmem:[%s3344 + $0x30] sm:$0xff]
  %v3352 = vld [vmem:[%s3344 + $0x38] sm:$0xff]
  %v3353 = vld [vmem:[%s3344 + $0x40] sm:$0xff]
  %v3354 = vld [vmem:[%s3344 + $0x48] sm:$0xff]
  %v3355 = vld [vmem:[%s3344 + $0x50] sm:$0xff]
  %v3356 = vld [vmem:[%s3344 + $0x58] sm:$0xff]
  %v3357 = vld [vmem:[%s3344 + $0x60] sm:$0xff]
  %v3358 = vld [vmem:[%s3344 + $0x68] sm:$0xff]
  %v3359 = vld [vmem:[%s3344 + $0x70] sm:$0xff]
  %v3360 = vld [vmem:[%s3344 + $0x78] sm:$0xff]
  %3361 = vmatprep.subr.mxu0 0.0
  %3362 = vmatpush1.msra.mxu0 %v3345
  %3363 = vmatprep.subr.mxu0 0.0
  %3364 = vmatpush1.msra.mxu0 %v3346
  %3365 = vmatprep.subr.mxu0 0.0
  %3366 = vmatpush1.msra.mxu0 %v3347
  %3367 = vmatprep.subr.mxu0 0.0
  %3368 = vmatpush1.msra.mxu0 %v3348
  %3369 = vmatprep.subr.mxu0 0.0
  %3370 = vmatpush1.msra.mxu0 %v3349
  %3371 = vmatprep.subr.mxu0 0.0
  %3372 = vmatpush1.msra.mxu0 %v3350
  %3373 = vmatprep.subr.mxu0 0.0
  %3374 = vmatpush1.msra.mxu0 %v3351
  %3375 = vmatprep.subr.mxu0 0.0
  %3376 = vmatpush1.msra.mxu0 %v3352
  %3377 = vmatprep.subr.mxu0 0.0
  %3378 = vmatpush1.msra.mxu0 %v3353
  %3379 = vmatprep.subr.mxu0 0.0
  %3380 = vmatpush1.msra.mxu0 %v3354
  %3381 = vmatprep.subr.mxu0 0.0
  %3382 = vmatpush1.msra.mxu0 %v3355
  %3383 = vmatprep.subr.mxu0 0.0
  %3384 = vmatpush1.msra.mxu0 %v3356
  %3385 = vmatprep.subr.mxu0 0.0
  %3386 = vmatpush1.msra.mxu0 %v3357
  %3387 = vmatprep.subr.mxu0 0.0
  %3388 = vmatpush1.msra.mxu0 %v3358
  %3389 = vmatprep.subr.mxu0 0.0
  %3390 = vmatpush1.msra.mxu0 %v3359
  %3391 = vmatprep.subr.mxu0 0.0
  %3392 = vmatpush1.msra.mxu0 %v3360
  %3393 = vmatprep.subr.mxu0 0.0
  %3394 = vmatpush1.msra.mxu0 0.0
  %3395 = vmatprep.subr.mxu0 0.0
  %3396 = vmatpush1.msra.mxu0 0.0
  %3397 = vmatprep.subr.mxu0 0.0
  %3398 = vmatpush1.msra.mxu0 0.0
  %3399 = vmatprep.subr.mxu0 0.0
  %3400 = vmatpush1.msra.mxu0 0.0
  %3401 = vmatprep.subr.mxu0 0.0
  %3402 = vmatpush1.msra.mxu0 0.0
  %3403 = vmatprep.subr.mxu0 0.0
  %3404 = vmatpush1.msra.mxu0 0.0
  %3405 = vmatprep.subr.mxu0 0.0
  %3406 = vmatpush1.msra.mxu0 0.0
  %3407 = vmatprep.subr.mxu0 0.0
  %3408 = vmatpush1.msra.mxu0 0.0
  %3409 = vmatprep.subr.mxu0 0.0
  %3410 = vmatpush1.msra.mxu0 0.0
  %3411 = vmatprep.subr.mxu0 0.0
  %3412 = vmatpush1.msra.mxu0 0.0
  %3413 = vmatprep.subr.mxu0 0.0
  %3414 = vmatpush1.msra.mxu0 0.0
  %3415 = vmatprep.subr.mxu0 0.0
  %3416 = vmatpush1.msra.mxu0 0.0
  %3417 = vmatprep.subr.mxu0 0.0
  %3418 = vmatpush1.msra.mxu0 0.0
  %3419 = vmatprep.subr.mxu0 0.0
  %3420 = vmatpush1.msra.mxu0 0.0
  %3421 = vmatprep.subr.mxu0 0.0
  %3422 = vmatpush1.msra.mxu0 0.0
  %3423 = vmatprep.subr.mxu0 0.0
  %3424 = vmatpush1.msra.mxu0 0.0
  %3425 = vmatprep.mubr.f32.mxu0 0.0
  %3426 = vmatmul.mubr.f32.gmra.mrb[0].mxu0 %v3343
  %v3427 = vpop.f32.mrb[0].mxu0
  %v3428 = vadd.f32 0.0, %v3427
  %v3429 = vpop.f32.mrb[0].mxu0
  %3430 = vdwg.mxu0
  %v3431 = vadd.f32 %v3341, %v3428
  %s3432 = scalar_lea.vmem [#allocation5], 6
  %v3433 = vld [vmem:[%s3432] ss:$8 sm:$0xf]
  %s3434 = scalar_lea.vmem %s16, 768
  %v3435 = vld [vmem:[%s3434] sm:$0xff]
  %v3436 = vld [vmem:[%s3434 + $0x8] sm:$0xff]
  %v3437 = vld [vmem:[%s3434 + $0x10] sm:$0xff]
  %v3438 = vld [vmem:[%s3434 + $0x18] sm:$0xff]
  %v3439 = vld [vmem:[%s3434 + $0x20] sm:$0xff]
  %v3440 = vld [vmem:[%s3434 + $0x28] sm:$0xff]
  %v3441 = vld [vmem:[%s3434 + $0x30] sm:$0xff]
  %v3442 = vld [vmem:[%s3434 + $0x38] sm:$0xff]
  %v3443 = vld [vmem:[%s3434 + $0x40] sm:$0xff]
  %v3444 = vld [vmem:[%s3434 + $0x48] sm:$0xff]
  %v3445 = vld [vmem:[%s3434 + $0x50] sm:$0xff]
  %v3446 = vld [vmem:[%s3434 + $0x58] sm:$0xff]
  %v3447 = vld [vmem:[%s3434 + $0x60] sm:$0xff]
  %v3448 = vld [vmem:[%s3434 + $0x68] sm:$0xff]
  %v3449 = vld [vmem:[%s3434 + $0x70] sm:$0xff]
  %v3450 = vld [vmem:[%s3434 + $0x78] sm:$0xff]
  %3451 = vmatprep.subr.mxu0 0.0
  %3452 = vmatpush1.msra.mxu0 %v3435
  %3453 = vmatprep.subr.mxu0 0.0
  %3454 = vmatpush1.msra.mxu0 %v3436
  %3455 = vmatprep.subr.mxu0 0.0
  %3456 = vmatpush1.msra.mxu0 %v3437
  %3457 = vmatprep.subr.mxu0 0.0
  %3458 = vmatpush1.msra.mxu0 %v3438
  %3459 = vmatprep.subr.mxu0 0.0
  %3460 = vmatpush1.msra.mxu0 %v3439
  %3461 = vmatprep.subr.mxu0 0.0
  %3462 = vmatpush1.msra.mxu0 %v3440
  %3463 = vmatprep.subr.mxu0 0.0
  %3464 = vmatpush1.msra.mxu0 %v3441
  %3465 = vmatprep.subr.mxu0 0.0
  %3466 = vmatpush1.msra.mxu0 %v3442
  %3467 = vmatprep.subr.mxu0 0.0
  %3468 = vmatpush1.msra.mxu0 %v3443
  %3469 = vmatprep.subr.mxu0 0.0
  %3470 = vmatpush1.msra.mxu0 %v3444
  %3471 = vmatprep.subr.mxu0 0.0
  %3472 = vmatpush1.msra.mxu0 %v3445
  %3473 = vmatprep.subr.mxu0 0.0
  %3474 = vmatpush1.msra.mxu0 %v3446
  %3475 = vmatprep.subr.mxu0 0.0
  %3476 = vmatpush1.msra.mxu0 %v3447
  %3477 = vmatprep.subr.mxu0 0.0
  %3478 = vmatpush1.msra.mxu0 %v3448
  %3479 = vmatprep.subr.mxu0 0.0
  %3480 = vmatpush1.msra.mxu0 %v3449
  %3481 = vmatprep.subr.mxu0 0.0
  %3482 = vmatpush1.msra.mxu0 %v3450
  %3483 = vmatprep.subr.mxu0 0.0
  %3484 = vmatpush1.msra.mxu0 0.0
  %3485 = vmatprep.subr.mxu0 0.0
  %3486 = vmatpush1.msra.mxu0 0.0
  %3487 = vmatprep.subr.mxu0 0.0
  %3488 = vmatpush1.msra.mxu0 0.0
  %3489 = vmatprep.subr.mxu0 0.0
  %3490 = vmatpush1.msra.mxu0 0.0
  %3491 = vmatprep.subr.mxu0 0.0
  %3492 = vmatpush1.msra.mxu0 0.0
  %3493 = vmatprep.subr.mxu0 0.0
  %3494 = vmatpush1.msra.mxu0 0.0
  %3495 = vmatprep.subr.mxu0 0.0
  %3496 = vmatpush1.msra.mxu0 0.0
  %3497 = vmatprep.subr.mxu0 0.0
  %3498 = vmatpush1.msra.mxu0 0.0
  %3499 = vmatprep.subr.mxu0 0.0
  %3500 = vmatpush1.msra.mxu0 0.0
  %3501 = vmatprep.subr.mxu0 0.0
  %3502 = vmatpush1.msra.mxu0 0.0
  %3503 = vmatprep.subr.mxu0 0.0
  %3504 = vmatpush1.msra.mxu0 0.0
  %3505 = vmatprep.subr.mxu0 0.0
  %3506 = vmatpush1.msra.mxu0 0.0
  %3507 = vmatprep.subr.mxu0 0.0
  %3508 = vmatpush1.msra.mxu0 0.0
  %3509 = vmatprep.subr.mxu0 0.0
  %3510 = vmatpush1.msra.mxu0 0.0
  %3511 = vmatprep.subr.mxu0 0.0
  %3512 = vmatpush1.msra.mxu0 0.0
  %3513 = vmatprep.subr.mxu0 0.0
  %3514 = vmatpush1.msra.mxu0 0.0
  %3515 = vmatprep.mubr.f32.mxu0 0.0
  %3516 = vmatmul.mubr.f32.gmra.mrb[0].mxu0 %v3433
  %v3517 = vpop.f32.mrb[0].mxu0
  %v3518 = vadd.f32 0.0, %v3517
  %v3519 = vpop.f32.mrb[0].mxu0
  %3520 = vdwg.mxu0
  %v3521 = vadd.f32 %v3431, %v3518
  %s3522 = scalar_lea.vmem [#allocation5], 7
  %v3523 = vld [vmem:[%s3522] ss:$8 sm:$0xf]
  %s3524 = scalar_lea.vmem %s16, 896
  %v3525 = vld [vmem:[%s3524] sm:$0xff]
  %v3526 = vld [vmem:[%s3524 + $0x8] sm:$0xff]
  %v3527 = vld [vmem:[%s3524 + $0x10] sm:$0xff]
  %v3528 = vld [vmem:[%s3524 + $0x18] sm:$0xff]
  %v3529 = vld [vmem:[%s3524 + $0x20] sm:$0xff]
  %v3530 = vld [vmem:[%s3524 + $0x28] sm:$0xff]
  %v3531 = vld [vmem:[%s3524 + $0x30] sm:$0xff]
  %v3532 = vld [vmem:[%s3524 + $0x38] sm:$0xff]
  %v3533 = vld [vmem:[%s3524 + $0x40] sm:$0xff]
  %v3534 = vld [vmem:[%s3524 + $0x48] sm:$0xff]
  %v3535 = vld [vmem:[%s3524 + $0x50] sm:$0xff]
  %v3536 = vld [vmem:[%s3524 + $0x58] sm:$0xff]
  %v3537 = vld [vmem:[%s3524 + $0x60] sm:$0xff]
  %v3538 = vld [vmem:[%s3524 + $0x68] sm:$0xff]
  %v3539 = vld [vmem:[%s3524 + $0x70] sm:$0xff]
  %v3540 = vld [vmem:[%s3524 + $0x78] sm:$0xff]
  %3541 = vmatprep.subr.mxu0 0.0
  %3542 = vmatpush1.msra.mxu0 %v3525
  %3543 = vmatprep.subr.mxu0 0.0
  %3544 = vmatpush1.msra.mxu0 %v3526
  %3545 = vmatprep.subr.mxu0 0.0
  %3546 = vmatpush1.msra.mxu0 %v3527
  %3547 = vmatprep.subr.mxu0 0.0
  %3548 = vmatpush1.msra.mxu0 %v3528
  %3549 = vmatprep.subr.mxu0 0.0
  %3550 = vmatpush1.msra.mxu0 %v3529
  %3551 = vmatprep.subr.mxu0 0.0
  %3552 = vmatpush1.msra.mxu0 %v3530
  %3553 = vmatprep.subr.mxu0 0.0
  %3554 = vmatpush1.msra.mxu0 %v3531
  %3555 = vmatprep.subr.mxu0 0.0
  %3556 = vmatpush1.msra.mxu0 %v3532
  %3557 = vmatprep.subr.mxu0 0.0
  %3558 = vmatpush1.msra.mxu0 %v3533
  %3559 = vmatprep.subr.mxu0 0.0
  %3560 = vmatpush1.msra.mxu0 %v3534
  %3561 = vmatprep.subr.mxu0 0.0
  %3562 = vmatpush1.msra.mxu0 %v3535
  %3563 = vmatprep.subr.mxu0 0.0
  %3564 = vmatpush1.msra.mxu0 %v3536
  %3565 = vmatprep.subr.mxu0 0.0
  %3566 = vmatpush1.msra.mxu0 %v3537
  %3567 = vmatprep.subr.mxu0 0.0
  %3568 = vmatpush1.msra.mxu0 %v3538
  %3569 = vmatprep.subr.mxu0 0.0
  %3570 = vmatpush1.msra.mxu0 %v3539
  %3571 = vmatprep.subr.mxu0 0.0
  %3572 = vmatpush1.msra.mxu0 %v3540
  %3573 = vmatprep.subr.mxu0 0.0
  %3574 = vmatpush1.msra.mxu0 0.0
  %3575 = vmatprep.subr.mxu0 0.0
  %3576 = vmatpush1.msra.mxu0 0.0
  %3577 = vmatprep.subr.mxu0 0.0
  %3578 = vmatpush1.msra.mxu0 0.0
  %3579 = vmatprep.subr.mxu0 0.0
  %3580 = vmatpush1.msra.mxu0 0.0
  %3581 = vmatprep.subr.mxu0 0.0
  %3582 = vmatpush1.msra.mxu0 0.0
  %3583 = vmatprep.subr.mxu0 0.0
  %3584 = vmatpush1.msra.mxu0 0.0
  %3585 = vmatprep.subr.mxu0 0.0
  %3586 = vmatpush1.msra.mxu0 0.0
  %3587 = vmatprep.subr.mxu0 0.0
  %3588 = vmatpush1.msra.mxu0 0.0
  %3589 = vmatprep.subr.mxu0 0.0
  %3590 = vmatpush1.msra.mxu0 0.0
  %3591 = vmatprep.subr.mxu0 0.0
  %3592 = vmatpush1.msra.mxu0 0.0
  %3593 = vmatprep.subr.mxu0 0.0
  %3594 = vmatpush1.msra.mxu0 0.0
  %3595 = vmatprep.subr.mxu0 0.0
  %3596 = vmatpush1.msra.mxu0 0.0
  %3597 = vmatprep.subr.mxu0 0.0
  %3598 = vmatpush1.msra.mxu0 0.0
  %3599 = vmatprep.subr.mxu0 0.0
  %3600 = vmatpush1.msra.mxu0 0.0
  %3601 = vmatprep.subr.mxu0 0.0
  %3602 = vmatpush1.msra.mxu0 0.0
  %3603 = vmatprep.subr.mxu0 0.0
  %3604 = vmatpush1.msra.mxu0 0.0
  %3605 = vmatprep.mubr.f32.mxu0 0.0
  %3606 = vmatmul.mubr.f32.gmra.mrb[0].mxu0 %v3523
  %v3607 = vpop.f32.mrb[0].mxu0
  %v3608 = vadd.f32 0.0, %v3607
  %v3609 = vpop.f32.mrb[0].mxu0
  %3610 = vdwg.mxu0
  %v3611 = vadd.f32 %v3521, %v3608
  %v3612 = vld [vmem:[%s17] sm:$0x1]
  %v3614 = vlaneseq
  %v3615 = vshrl.u32 %v3614, 7
  %v3616 = vsub.s32 0, %v3615
  %v3617 = vrot.slane %v3612, %v3616
  %v3619 = vmul.f32 %v3611, %v3617
  %v3620 = vld [vmem:[%s18] sm:$0x1]
  %v3622 = vlaneseq
  %v3623 = vshrl.u32 %v3622, 7
  %v3624 = vsub.s32 0, %v3623
  %v3625 = vrot.slane %v3620, %v3624
  %v3627 = vadd.f32 %v3619, %v3625
  %v3628 = vmax.f32 %v3627, 0.0
  %v3629 = vld [vmem:[%s19] sm:$0x1]
  %v3631 = vlaneseq
  %v3632 = vshrl.u32 %v3631, 7
  %v3633 = vsub.s32 0, %v3632
  %v3634 = vrot.slane %v3629, %v3633
  %v3636 = vmul.f32 %v3628, %v3634
  %vm3637 = vcmask 519168
  %v3638 = vsel %vm3637, %v3636, 0.0
  %3639 = vadd.xlane.f32.xlu0 %v3638
  %v3640 = vpop.xlane.xlu0 %3639
  %v3641 = vld [vmem:[#allocation6] sm:$0x1]
  %v3643 = vlaneseq
  %v3644 = vshrl.u32 %v3643, 7
  %v3645 = vsub.s32 0, %v3644
  %v3646 = vrot.slane %v3641, %v3645
  %v3648 = vadd.f32 %v3640, %v3646
  %vm3649 = vcmask 3072
  %3650 = vst.msk [vmem:[%s21] sm:$0xf] %vm3649, %v3648
  // Predicated region
  $region86: #{baseline_cnn_forward.1} parent=0 // pred_check
    _
  $region87: #{baseline_cnn_forward.1} parent=0 // pred_check_branch
    %3652 = sbr.rel (0) target = $region89
  $region88: #{baseline_cnn_forward.1} parent=0 // pred_region
    _
  $region89: #{baseline_cnn_forward.1} parent=0 // pred_fallthru
    _
  // Predicated region
  $region90: #{baseline_cnn_forward.1} parent=0 // pred_check
    _
  $region91: #{baseline_cnn_forward.1} parent=0 // pred_check_branch
    %3654 = sbr.rel (0) target = $region93
  $region92: #{baseline_cnn_forward.1} parent=0 // pred_region
    _
  $region93: #{baseline_cnn_forward.1} parent=0 // pred_fallthru
    _

</llo_original>
